<compile_context>
chip_gen: v7x
topology: tpu7x:2x2x1
jax: 0.10.0
libtpu: 0.0.40
codegen_flags: <defaults>
</compile_context>

<pallas_src>
import functools

import jax
import jax.numpy as jnp
from jax.experimental import pallas as pl
from jax.experimental.pallas import tpu as pltpu


XYZ_PAD = 128   # tmp_xyz channels zero-padded 3 -> 128 (aligned K for layer-1b matmul)
OUT_PAD = 128   # conv3 output channels zero-padded 3 -> 128 (lane-dense store)


# ----------------------------------------------------------------------------
# Fused kernel: conv1+bn1+relu -> conv2+bn2+relu -> conv3, on one row tile.
# ----------------------------------------------------------------------------
def _sc_comp_kernel(feat_ref, xyz_ref,
                    w1a_ref, w1b_ref, b1_ref,
                    w2_ref, b2_ref,
                    w3_ref, b3_ref,
                    out_ref):
    # Layer 1 (split-K across the torch concat boundary), f32 accumulation.
    z1 = jnp.dot(feat_ref[...], w1a_ref[...], preferred_element_type=jnp.float32)
    z1 = z1 + jnp.dot(xyz_ref[...], w1b_ref[...], preferred_element_type=jnp.float32)
    h1 = jnp.maximum(z1 + b1_ref[...], 0.0).astype(jnp.bfloat16)

    # Layer 2.
    z2 = jnp.dot(h1, w2_ref[...], preferred_element_type=jnp.float32)
    h2 = jnp.maximum(z2 + b2_ref[...], 0.0).astype(jnp.bfloat16)

    # Layer 3 (no BN, no ReLU); output lanes 3..127 are zeros by construction.
    z3 = jnp.dot(h2, w3_ref[...], preferred_element_type=jnp.float32) + b3_ref[...]
    out_ref[...] = z3.astype(out_ref.dtype)


def _sc_comp_pallas(feat_rows, xyz_rows, params, *, tile_rows):
    w1a, w1b, b1, w2, b2, w3p, b3p = params
    R, k_feat = feat_rows.shape
    assert R % tile_rows == 0

    def row_spec(width):
        return pl.BlockSpec((tile_rows, width), lambda i: (i, 0))

    def const_spec(shape):
        # Weights/biases are fully VMEM-resident (constant index_map).  bf16
        # weights total ~1 MiB, so default buffering fits easily under every
        # generation's scoped-VMEM default (16/32 MiB).
        return pl.BlockSpec(shape, lambda i: (0, 0))

    return pl.pallas_call(
        _sc_comp_kernel,
        out_shape=jax.ShapeDtypeStruct((R, OUT_PAD), jnp.float32),
        grid=(R // tile_rows,),
        in_specs=[
            row_spec(k_feat),
            row_spec(XYZ_PAD),
            const_spec(w1a.shape), const_spec(w1b.shape), const_spec(b1.shape),
            const_spec(w2.shape), const_spec(b2.shape),
            const_spec(w3p.shape), const_spec(b3p.shape),
        ],
        out_specs=row_spec(OUT_PAD),
        compiler_params=pltpu.CompilerParams(
            dimension_semantics=("parallel",)),   # row tiles shard across TCs
    )(feat_rows, xyz_rows, w1a, w1b, b1, w2, b2, w3p, b3p)


# ----------------------------------------------------------------------------
# Full forward, matching SC_Comp_Small.forward.
# ----------------------------------------------------------------------------
@functools.partial(jax.jit, static_argnames=("dim_th", "tile_rows"))
def sc_comp_small_forward(feat_comp, tmp_xyz, params, *, dim_th, tile_rows=256):
    B, C, N = feat_comp.shape
    k_feat = params[0].shape[0]          # dim_th rounded up to a multiple of 128

    # feat_comp[:, -dim_th:, :]  +  NCL -> rows-of-points, bf16, zero-pad the
    # channel (lane) dim to the aligned width of W1a (one fused XLA copy pass).
    feat_rows = jnp.transpose(feat_comp[:, C - dim_th:, :], (0, 2, 1))
    feat_rows = feat_rows.reshape(B * N, dim_th).astype(jnp.bfloat16)
    feat_rows = jnp.pad(feat_rows, ((0, 0), (0, k_feat - dim_th)))

    xyz_rows = jnp.transpose(tmp_xyz, (0, 2, 1)).reshape(B * N, 3)
    xyz_rows = jnp.pad(xyz_rows.astype(jnp.bfloat16), ((0, 0), (0, XYZ_PAD - 3)))

    R = B * N
    R_pad = pl.cdiv(R, tile_rows) * tile_rows
    if R_pad != R:                       # arbitrary point counts supported
        feat_rows = jnp.pad(feat_rows, ((0, R_pad - R), (0, 0)))
        xyz_rows = jnp.pad(xyz_rows, ((0, R_pad - R), (0, 0)))

    out = _sc_comp_pallas(feat_rows, xyz_rows, params, tile_rows=tile_rows)
    # Drop padded rows and the 125 zero output lanes -> (B, N, 3), matching
    # y.transpose(2, 1).contiguous() in torch.
    return out[:R, :3].reshape(B, N, 3)


# ----------------------------------------------------------------------------
# Deterministic parameter construction + eval-mode BN folding.
# ----------------------------------------------------------------------------
def _fold_bn(w, b, gamma, beta, mean, var, eps=1e-5):
    """Fold eval-mode BatchNorm1d into a pointwise conv (W: (c_in, c_out))."""
    scale = gamma / jnp.sqrt(var + eps)
    return w * scale[None, :], (b - mean) * scale + beta


def make_params(dim_th, key):
    """Params for conv1/bn1, conv2/bn2, conv3 with BN folded, stored bf16."""
    c_in1 = dim_th + 3
    ks = jax.random.split(key, 5)

    def conv_init(kk, ci, co):
        kw, kb = jax.random.split(kk)
        bound = 1.0 / jnp.sqrt(jnp.float32(ci))
        w = jax.random.uniform(kw, (ci, co), jnp.float32, -bound, bound)
        b = jax.random.uniform(kb, (co,), jnp.float32, -bound, bound)
        return w, b

    def bn_init(kk, c):
        kg, kb, km, kv = jax.random.split(kk, 4)
        return (jax.random.uniform(kg, (c,), jnp.float32, 0.5, 1.5),
                jax.random.uniform(kb, (c,), jnp.float32, -0.5, 0.5),
                jax.random.uniform(km, (c,), jnp.float32, -0.5, 0.5),
                jax.random.uniform(kv, (c,), jnp.float32, 0.5, 1.5))

    w1, b1 = conv_init(ks[0], c_in1, 512)
    w2, b2 = conv_init(ks[1], 512, 128)
    w3, b3 = conv_init(ks[2], 128, 3)
    w1, b1 = _fold_bn(w1, b1, *bn_init(ks[3], 512))
    w2, b2 = _fold_bn(w2, b2, *bn_init(ks[4], 128))

    # Split conv1 over the concat boundary; zero-pad both K pieces to
    # lane-aligned widths (matching zero-padded input columns).
    k_feat = pl.cdiv(dim_th, 128) * 128
    w1a = jnp.zeros((k_feat, 512), jnp.float32).at[:dim_th].set(w1[:dim_th])
    w1b = jnp.zeros((XYZ_PAD, 512), jnp.float32).at[:3].set(w1[dim_th:])

    # Zero-pad conv3 to a lane-dense 128-wide output.
    w3p = jnp.zeros((128, OUT_PAD), jnp.float32).at[:, :3].set(w3)
    b3p = jnp.zeros((OUT_PAD,), jnp.float32).at[:3].set(b3)

    bf16 = jnp.bfloat16
    return (w1a.astype(bf16), w1b.astype(bf16), b1.reshape(1, -1),
            w2.astype(bf16), b2.reshape(1, -1),
            w3p.astype(bf16), b3p.reshape(1, -1))


# ----------------------------------------------------------------------------
# Pure-JAX reference (same folded bf16 params) for a correctness sanity check.
# ----------------------------------------------------------------------------
def _reference_forward(feat_comp, tmp_xyz, params, dim_th):
    w1a, w1b, b1, w2, b2, w3p, b3p = params
    B, C, N = feat_comp.shape
    feat = jnp.transpose(feat_comp[:, C - dim_th:, :], (0, 2, 1))
    feat = feat.reshape(B * N, dim_th).astype(jnp.bfloat16)
    xyz = jnp.transpose(tmp_xyz, (0, 2, 1)).reshape(B * N, 3).astype(jnp.bfloat16)

    z1 = (jnp.dot(feat, w1a[:dim_th], preferred_element_type=jnp.float32)
          + jnp.dot(xyz, w1b[:3], preferred_element_type=jnp.float32) + b1)
    h1 = jnp.maximum(z1, 0.0).astype(jnp.bfloat16)
    z2 = jnp.dot(h1, w2, preferred_element_type=jnp.float32) + b2
    h2 = jnp.maximum(z2, 0.0).astype(jnp.bfloat16)
    z3 = jnp.dot(h2, w3p, preferred_element_type=jnp.float32) + b3p
    return z3[:, :3].reshape(B, N, 3)


if __name__ == "__main__":
    # Module-default channel dims; small batch / point count.
    B, CH_IN, N = 2, 1305, 256
    DIM_TH = 512 + 256 + 64 + 16   # 848

    key = jax.random.PRNGKey(0)
    k_params, k_feat, k_xyz = jax.random.split(key, 3)
    params = make_params(DIM_TH, k_params)
    feat_comp = jax.random.normal(k_feat, (B, CH_IN, N), dtype=jnp.float32)
    tmp_xyz = jax.random.normal(k_xyz, (B, 3, N), dtype=jnp.float32)

    y = sc_comp_small_forward(feat_comp, tmp_xyz, params,
                              dim_th=DIM_TH, tile_rows=256)
    y = jax.block_until_ready(y)

    y_ref = _reference_forward(feat_comp, tmp_xyz, params, DIM_TH)
    assert y.shape == (B, N, 3), y.shape
    max_err = float(jnp.max(jnp.abs(y - y_ref)))
    assert jnp.allclose(y, y_ref, atol=2e-2, rtol=2e-2), f"mismatch: {max_err}"

    print("KERNEL_OK")
</pallas_src>

<mosaic_0001>
module attributes {stable_mosaic.version = 11 : i64} {
  func.func @_sc_comp_kernel(%arg0: i32, %arg1: memref<256x896xbf16, #tpu.memory_space<vmem>>, %arg2: memref<256x128xbf16, #tpu.memory_space<vmem>>, %arg3: memref<896x512xbf16, #tpu.memory_space<vmem>>, %arg4: memref<128x512xbf16, #tpu.memory_space<vmem>>, %arg5: memref<1x512xf32, #tpu.memory_space<vmem>>, %arg6: memref<512x128xbf16, #tpu.memory_space<vmem>>, %arg7: memref<1x128xf32, #tpu.memory_space<vmem>>, %arg8: memref<128x128xbf16, #tpu.memory_space<vmem>>, %arg9: memref<1x128xf32, #tpu.memory_space<vmem>>, %arg10: memref<256x128xf32, #tpu.memory_space<vmem>>) attributes {dimension_semantics = [#tpu.dimension_semantics<parallel>], iteration_bounds = array<i64: 2>, scalar_prefetch = 0 : i64, scratch_operands = 0 : i64, tpu.core_type = #tpu.core_type<tc>, window_params = [{transform_indices = @transform_0, window_bounds = array<i64: 256, 896>}, {transform_indices = @transform_1, window_bounds = array<i64: 256, 128>}, {pipeline_mode = #tpu.pipeline_mode<synchronous>, transform_indices = @transform_2, window_bounds = array<i64: 896, 512>}, {pipeline_mode = #tpu.pipeline_mode<synchronous>, transform_indices = @transform_3, window_bounds = array<i64: 128, 512>}, {pipeline_mode = #tpu.pipeline_mode<synchronous>, transform_indices = @transform_4, window_bounds = array<i64: 1, 512>}, {pipeline_mode = #tpu.pipeline_mode<synchronous>, transform_indices = @transform_5, window_bounds = array<i64: 512, 128>}, {pipeline_mode = #tpu.pipeline_mode<synchronous>, transform_indices = @transform_6, window_bounds = array<i64: 1, 128>}, {pipeline_mode = #tpu.pipeline_mode<synchronous>, transform_indices = @transform_7, window_bounds = array<i64: 128, 128>}, {pipeline_mode = #tpu.pipeline_mode<synchronous>, transform_indices = @transform_8, window_bounds = array<i64: 1, 128>}, {transform_indices = @transform_9, window_bounds = array<i64: 256, 128>}]} {
    %c0 = arith.constant 0 : index
    %c0_0 = arith.constant 0 : index
    %0 = vector.load %arg1[%c0, %c0_0] : memref<256x896xbf16, #tpu.memory_space<vmem>>, vector<256x896xbf16>
    %c0_1 = arith.constant 0 : index
    %c0_2 = arith.constant 0 : index
    %1 = vector.load %arg3[%c0_1, %c0_2] : memref<896x512xbf16, #tpu.memory_space<vmem>>, vector<896x512xbf16>
    %cst = arith.constant dense<0.000000e+00> : vector<256x512xf32>
    %2 = tpu.matmul %0, %1, %cst {dimension_numbers = #tpu.dot_dimension_numbers<[1], [0], [0], [1], [0, 0, 1, 1], [], []>} : vector<256x896xbf16>, vector<896x512xbf16>, vector<256x512xf32> -> vector<256x512xf32>
    %c0_3 = arith.constant 0 : index
    %c0_4 = arith.constant 0 : index
    %3 = vector.load %arg2[%c0_3, %c0_4] : memref<256x128xbf16, #tpu.memory_space<vmem>>, vector<256x128xbf16>
    %c0_5 = arith.constant 0 : index
    %c0_6 = arith.constant 0 : index
    %4 = vector.load %arg4[%c0_5, %c0_6] : memref<128x512xbf16, #tpu.memory_space<vmem>>, vector<128x512xbf16>
    %cst_7 = arith.constant dense<0.000000e+00> : vector<256x512xf32>
    %5 = tpu.matmul %3, %4, %cst_7 {dimension_numbers = #tpu.dot_dimension_numbers<[1], [0], [0], [1], [0, 0, 1, 1], [], []>} : vector<256x128xbf16>, vector<128x512xbf16>, vector<256x512xf32> -> vector<256x512xf32>
    %6 = arith.addf %2, %5 : vector<256x512xf32>
    %c0_8 = arith.constant 0 : index
    %c0_9 = arith.constant 0 : index
    %7 = vector.load %arg5[%c0_8, %c0_9] : memref<1x512xf32, #tpu.memory_space<vmem>>, vector<1x512xf32>
    %8 = vector.broadcast %7 : vector<1x512xf32> to vector<256x512xf32>
    %9 = arith.addf %6, %8 : vector<256x512xf32>
    %cst_10 = arith.constant 0.000000e+00 : f32
    %10 = vector.broadcast %cst_10 : f32 to vector<256x512xf32>
    %11 = arith.maximumf %9, %10 : vector<256x512xf32>
    %12 = arith.truncf %11 : vector<256x512xf32> to vector<256x512xbf16>
    %c0_11 = arith.constant 0 : index
    %c0_12 = arith.constant 0 : index
    %13 = vector.load %arg6[%c0_11, %c0_12] : memref<512x128xbf16, #tpu.memory_space<vmem>>, vector<512x128xbf16>
    %cst_13 = arith.constant dense<0.000000e+00> : vector<256x128xf32>
    %14 = tpu.matmul %12, %13, %cst_13 {dimension_numbers = #tpu.dot_dimension_numbers<[1], [0], [0], [1], [0, 0, 1, 1], [], []>} : vector<256x512xbf16>, vector<512x128xbf16>, vector<256x128xf32> -> vector<256x128xf32>
    %c0_14 = arith.constant 0 : index
    %c0_15 = arith.constant 0 : index
    %15 = vector.load %arg7[%c0_14, %c0_15] : memref<1x128xf32, #tpu.memory_space<vmem>>, vector<1x128xf32>
    %16 = vector.broadcast %15 : vector<1x128xf32> to vector<256x128xf32>
    %17 = arith.addf %14, %16 : vector<256x128xf32>
    %cst_16 = arith.constant 0.000000e+00 : f32
    %18 = vector.broadcast %cst_16 : f32 to vector<256x128xf32>
    %19 = arith.maximumf %17, %18 : vector<256x128xf32>
    %20 = arith.truncf %19 : vector<256x128xf32> to vector<256x128xbf16>
    %c0_17 = arith.constant 0 : index
    %c0_18 = arith.constant 0 : index
    %21 = vector.load %arg8[%c0_17, %c0_18] : memref<128x128xbf16, #tpu.memory_space<vmem>>, vector<128x128xbf16>
    %cst_19 = arith.constant dense<0.000000e+00> : vector<256x128xf32>
    %22 = tpu.matmul %20, %21, %cst_19 {dimension_numbers = #tpu.dot_dimension_numbers<[1], [0], [0], [1], [0, 0, 1, 1], [], []>} : vector<256x128xbf16>, vector<128x128xbf16>, vector<256x128xf32> -> vector<256x128xf32>
    %c0_20 = arith.constant 0 : index
    %c0_21 = arith.constant 0 : index
    %23 = vector.load %arg9[%c0_20, %c0_21] : memref<1x128xf32, #tpu.memory_space<vmem>>, vector<1x128xf32>
    %24 = vector.broadcast %23 : vector<1x128xf32> to vector<256x128xf32>
    %25 = arith.addf %22, %24 : vector<256x128xf32>
    %c0_22 = arith.constant 0 : index
    %c0_23 = arith.constant 0 : index
    %26 = vector.load %arg10[%c0_22, %c0_23] : memref<256x128xf32, #tpu.memory_space<vmem>>, vector<256x128xf32>
    tpu.vector_store %arg10[%c0_22, %c0_23], %25 {strides = array<i32>} : memref<256x128xf32, #tpu.memory_space<vmem>>, vector<256x128xf32>,
    return
  }
  func.func @transform_0(%arg0: i32) -> (i32, i32) {
    %c0_i32 = arith.constant 0 : i32
    %c0_i32_0 = arith.constant 0 : i32
    return %arg0, %c0_i32 : i32, i32
  }
  func.func @transform_1(%arg0: i32) -> (i32, i32) {
    %c0_i32 = arith.constant 0 : i32
    %c0_i32_0 = arith.constant 0 : i32
    return %arg0, %c0_i32 : i32, i32
  }
  func.func @transform_2(%arg0: i32) -> (i32, i32) {
    %c0_i32 = arith.constant 0 : i32
    %c0_i32_0 = arith.constant 0 : i32
    %c0_i32_1 = arith.constant 0 : i32
    return %c0_i32, %c0_i32_0 : i32, i32
  }
  func.func @transform_3(%arg0: i32) -> (i32, i32) {
    %c0_i32 = arith.constant 0 : i32
    %c0_i32_0 = arith.constant 0 : i32
    %c0_i32_1 = arith.constant 0 : i32
    return %c0_i32, %c0_i32_0 : i32, i32
  }
  func.func @transform_4(%arg0: i32) -> (i32, i32) {
    %c0_i32 = arith.constant 0 : i32
    %c0_i32_0 = arith.constant 0 : i32
    %c0_i32_1 = arith.constant 0 : i32
    return %c0_i32, %c0_i32_0 : i32, i32
  }
  func.func @transform_5(%arg0: i32) -> (i32, i32) {
    %c0_i32 = arith.constant 0 : i32
    %c0_i32_0 = arith.constant 0 : i32
    %c0_i32_1 = arith.constant 0 : i32
    return %c0_i32, %c0_i32_0 : i32, i32
  }
  func.func @transform_6(%arg0: i32) -> (i32, i32) {
    %c0_i32 = arith.constant 0 : i32
    %c0_i32_0 = arith.constant 0 : i32
    %c0_i32_1 = arith.constant 0 : i32
    return %c0_i32, %c0_i32_0 : i32, i32
  }
  func.func @transform_7(%arg0: i32) -> (i32, i32) {
    %c0_i32 = arith.constant 0 : i32
    %c0_i32_0 = arith.constant 0 : i32
    %c0_i32_1 = arith.constant 0 : i32
    return %c0_i32, %c0_i32_0 : i32, i32
  }
  func.func @transform_8(%arg0: i32) -> (i32, i32) {
    %c0_i32 = arith.constant 0 : i32
    %c0_i32_0 = arith.constant 0 : i32
    %c0_i32_1 = arith.constant 0 : i32
    return %c0_i32, %c0_i32_0 : i32, i32
  }
  func.func @transform_9(%arg0: i32) -> (i32, i32) {
    %c0_i32 = arith.constant 0 : i32
    %c0_i32_0 = arith.constant 0 : i32
    return %arg0, %c0_i32 : i32, i32
  }
}

</mosaic_0001>

<llo_original>
// kernel: sc_comp_small_forward.1
$region0: #{sc_comp_small_forward.1}
  #allocation0 [shape = 'u32[]', space=smem, size = 0x4, offset = 0x4, fixed_abs, tag = 'smem constant byte address 0x4 - core index']
  #allocation1 [shape = 'u32[144,128]{1,0:T(1,128)}', space=vmem, size = 0x12000, scoped, tag = 'internal scratch']
  %s0 = inlined_call_operand.vmem [shape: bf16[512,896], index: 0, kind: input, shape index: {}]
  %s1 = inlined_call_operand.vmem [shape: bf16[512,128], index: 1, kind: input, shape index: {}]
  %s2 = inlined_call_operand.vmem [shape: bf16[896,512], index: 2, kind: input, shape index: {}]
  %s3 = inlined_call_operand.vmem [shape: bf16[128,512], index: 3, kind: input, shape index: {}]
  %s4 = inlined_call_operand.vmem [shape: f32[1,512], index: 4, kind: input, shape index: {}]
  %s5 = inlined_call_operand.vmem [shape: bf16[512,128], index: 5, kind: input, shape index: {}]
  %s6 = inlined_call_operand.vmem [shape: f32[1,128], index: 6, kind: input, shape index: {}]
  %s7 = inlined_call_operand.vmem [shape: bf16[128,128], index: 7, kind: input, shape index: {}]
  %s8 = inlined_call_operand.vmem [shape: f32[1,128], index: 8, kind: input, shape index: {}]
  %s9 = inlined_call_operand.vmem [shape: f32[512,128], index: 9, kind: output, shape index: {}]
  %s10 = sld [smem:[#allocation0]]
  $region69: #{sc_comp_small_forward.1} parent=0
    _
  %s12 = ssub.s32 1, %s10
  %s13 = scalar_select 0, %s12, %s10
  loop: start=0, step=1, limit=4
  $region2: #{sc_comp_small_forward.1} parent=0 // loop_pre_header
    _
  $region3: #{sc_comp_small_forward.1} parent=0 // loop_header
    %s15 = sphi 0, %s19
    %p16 = scmp.ge.s32.totalorder %s15, 4
    %s25 = sphi 0, %s27
    %s28 = sphi 0, %s25
    %s29 = sphi 0, %s28
    %s45 = sphi 0, %s29
    %s51 = sphi 0, %s53
    %s54 = sphi 0, %s51
    %s55 = sphi 0, %s54
    %s71 = sphi 0, %s55
    %s75 = sphi 0, %s75
    %s77 = sphi 0, %s75
    %s78 = sphi 0, %s77
    %s92 = sphi 0, %s78
    %s96 = sphi 0, %s96
    %s98 = sphi 0, %s96
    %s99 = sphi 0, %s98
    %s113 = sphi 0, %s99
    %s117 = sphi 0, %s117
    %s119 = sphi 0, %s117
    %s120 = sphi 0, %s119
    %s134 = sphi 0, %s120
    %s138 = sphi 0, %s138
    %s140 = sphi 0, %s138
    %s141 = sphi 0, %s140
    %s155 = sphi 0, %s141
    %s159 = sphi 0, %s159
    %s161 = sphi 0, %s159
    %s162 = sphi 0, %s161
    %s176 = sphi 0, %s162
    %s180 = sphi 0, %s180
    %s182 = sphi 0, %s180
    %s183 = sphi 0, %s182
    %s197 = sphi 0, %s183
    %s201 = sphi 0, %s201
    %s203 = sphi 0, %s201
    %s204 = sphi 0, %s203
    %s218 = sphi 0, %s204
    %s224 = sphi 0, %s226
    %s227 = sphi 0, %s224
    %s228 = sphi 0, %s227
    %s244 = sphi 0, %s228
  $region4: #{sc_comp_small_forward.1} parent=0 // loop_header_branch
    %18 = sbr.rel (%p16) target = $region8
  $region5: #{sc_comp_small_forward.1} parent=0 // loop_body
    %s20 = ssub.s32 %s15, 1
    %s21 = ssub.s32 %s15, 2
    %s22 = sadd.s32 %s15, 1
    %s23 = ssub.s32 %s15, %s22
    %p24 = scmp.eq.s32.totalorder %s23, 0
    %s26 = sadd.s32 %s25, 1
    %s27 = scalar_select %p24, %s25, %s26
    %p30 = pneg %p24
    %p31 = scmp.eq.s32.totalorder %s15, 1
    %p32 = por %p30, %p31
    %p33 = scmp.ne.s32.totalorder %s25, %s28
    %p34 = scmp.eq.s32.totalorder %s15, 0
    %p35 = por %p33, %p34
    %p36 = scmp.ne.s32.totalorder %s25, %s28
    %p37 = scmp.eq.s32.totalorder %s20, 1
    %p38 = por %p36, %p37
    %p39 = scmp.ne.s32.totalorder %s28, %s29
    %p40 = scmp.eq.s32.totalorder %s20, 0
    %p41 = por %p39, %p40
    %p42 = scmp.ne.s32.totalorder %s28, %s29
    %p43 = scmp.eq.s32.totalorder %s21, 1
    %p44 = por %p42, %p43
    %p46 = scmp.ne.s32.totalorder %s29, %s45
    %p47 = scmp.eq.s32.totalorder %s21, 0
    %p48 = por %p46, %p47
    %s49 = ssub.s32 %s15, %s22
    %p50 = scmp.eq.s32.totalorder %s49, 0
    %s52 = sadd.s32 %s51, 1
    %s53 = scalar_select %p50, %s51, %s52
    %p56 = pneg %p50
    %p57 = scmp.eq.s32.totalorder %s15, 1
    %p58 = por %p56, %p57
    %p59 = scmp.ne.s32.totalorder %s51, %s54
    %p60 = scmp.eq.s32.totalorder %s15, 0
    %p61 = por %p59, %p60
    %p62 = scmp.ne.s32.totalorder %s51, %s54
    %p63 = scmp.eq.s32.totalorder %s20, 1
    %p64 = por %p62, %p63
    %p65 = scmp.ne.s32.totalorder %s54, %s55
    %p66 = scmp.eq.s32.totalorder %s20, 0
    %p67 = por %p65, %p66
    %p68 = scmp.ne.s32.totalorder %s54, %s55
    %p69 = scmp.eq.s32.totalorder %s21, 1
    %p70 = por %p68, %p69
    %p72 = scmp.ne.s32.totalorder %s55, %s71
    %p73 = scmp.eq.s32.totalorder %s21, 0
    %p74 = por %p72, %p73
    %s76 = sadd.s32 %s75, 1
    %p79 = scmp.eq.s32.totalorder %s15, 1
    %p80 = scmp.ne.s32.totalorder %s75, %s77
    %p81 = scmp.eq.s32.totalorder %s15, 0
    %p82 = por %p80, %p81
    %p83 = scmp.ne.s32.totalorder %s75, %s77
    %p84 = scmp.eq.s32.totalorder %s20, 1
    %p85 = por %p83, %p84
    %p86 = scmp.ne.s32.totalorder %s77, %s78
    %p87 = scmp.eq.s32.totalorder %s20, 0
    %p88 = por %p86, %p87
    %p89 = scmp.ne.s32.totalorder %s77, %s78
    %p90 = scmp.eq.s32.totalorder %s21, 1
    %p91 = por %p89, %p90
    %p93 = scmp.ne.s32.totalorder %s78, %s92
    %p94 = scmp.eq.s32.totalorder %s21, 0
    %p95 = por %p93, %p94
    %s97 = sadd.s32 %s96, 1
    %p100 = scmp.eq.s32.totalorder %s15, 1
    %p101 = scmp.ne.s32.totalorder %s96, %s98
    %p102 = scmp.eq.s32.totalorder %s15, 0
    %p103 = por %p101, %p102
    %p104 = scmp.ne.s32.totalorder %s96, %s98
    %p105 = scmp.eq.s32.totalorder %s20, 1
    %p106 = por %p104, %p105
    %p107 = scmp.ne.s32.totalorder %s98, %s99
    %p108 = scmp.eq.s32.totalorder %s20, 0
    %p109 = por %p107, %p108
    %p110 = scmp.ne.s32.totalorder %s98, %s99
    %p111 = scmp.eq.s32.totalorder %s21, 1
    %p112 = por %p110, %p111
    %p114 = scmp.ne.s32.totalorder %s99, %s113
    %p115 = scmp.eq.s32.totalorder %s21, 0
    %p116 = por %p114, %p115
    %s118 = sadd.s32 %s117, 1
    %p121 = scmp.eq.s32.totalorder %s15, 1
    %p122 = scmp.ne.s32.totalorder %s117, %s119
    %p123 = scmp.eq.s32.totalorder %s15, 0
    %p124 = por %p122, %p123
    %p125 = scmp.ne.s32.totalorder %s117, %s119
    %p126 = scmp.eq.s32.totalorder %s20, 1
    %p127 = por %p125, %p126
    %p128 = scmp.ne.s32.totalorder %s119, %s120
    %p129 = scmp.eq.s32.totalorder %s20, 0
    %p130 = por %p128, %p129
    %p131 = scmp.ne.s32.totalorder %s119, %s120
    %p132 = scmp.eq.s32.totalorder %s21, 1
    %p133 = por %p131, %p132
    %p135 = scmp.ne.s32.totalorder %s120, %s134
    %p136 = scmp.eq.s32.totalorder %s21, 0
    %p137 = por %p135, %p136
    %s139 = sadd.s32 %s138, 1
    %p142 = scmp.eq.s32.totalorder %s15, 1
    %p143 = scmp.ne.s32.totalorder %s138, %s140
    %p144 = scmp.eq.s32.totalorder %s15, 0
    %p145 = por %p143, %p144
    %p146 = scmp.ne.s32.totalorder %s138, %s140
    %p147 = scmp.eq.s32.totalorder %s20, 1
    %p148 = por %p146, %p147
    %p149 = scmp.ne.s32.totalorder %s140, %s141
    %p150 = scmp.eq.s32.totalorder %s20, 0
    %p151 = por %p149, %p150
    %p152 = scmp.ne.s32.totalorder %s140, %s141
    %p153 = scmp.eq.s32.totalorder %s21, 1
    %p154 = por %p152, %p153
    %p156 = scmp.ne.s32.totalorder %s141, %s155
    %p157 = scmp.eq.s32.totalorder %s21, 0
    %p158 = por %p156, %p157
    %s160 = sadd.s32 %s159, 1
    %p163 = scmp.eq.s32.totalorder %s15, 1
    %p164 = scmp.ne.s32.totalorder %s159, %s161
    %p165 = scmp.eq.s32.totalorder %s15, 0
    %p166 = por %p164, %p165
    %p167 = scmp.ne.s32.totalorder %s159, %s161
    %p168 = scmp.eq.s32.totalorder %s20, 1
    %p169 = por %p167, %p168
    %p170 = scmp.ne.s32.totalorder %s161, %s162
    %p171 = scmp.eq.s32.totalorder %s20, 0
    %p172 = por %p170, %p171
    %p173 = scmp.ne.s32.totalorder %s161, %s162
    %p174 = scmp.eq.s32.totalorder %s21, 1
    %p175 = por %p173, %p174
    %p177 = scmp.ne.s32.totalorder %s162, %s176
    %p178 = scmp.eq.s32.totalorder %s21, 0
    %p179 = por %p177, %p178
    %s181 = sadd.s32 %s180, 1
    %p184 = scmp.eq.s32.totalorder %s15, 1
    %p185 = scmp.ne.s32.totalorder %s180, %s182
    %p186 = scmp.eq.s32.totalorder %s15, 0
    %p187 = por %p185, %p186
    %p188 = scmp.ne.s32.totalorder %s180, %s182
    %p189 = scmp.eq.s32.totalorder %s20, 1
    %p190 = por %p188, %p189
    %p191 = scmp.ne.s32.totalorder %s182, %s183
    %p192 = scmp.eq.s32.totalorder %s20, 0
    %p193 = por %p191, %p192
    %p194 = scmp.ne.s32.totalorder %s182, %s183
    %p195 = scmp.eq.s32.totalorder %s21, 1
    %p196 = por %p194, %p195
    %p198 = scmp.ne.s32.totalorder %s183, %s197
    %p199 = scmp.eq.s32.totalorder %s21, 0
    %p200 = por %p198, %p199
    %s202 = sadd.s32 %s201, 1
    %p205 = scmp.eq.s32.totalorder %s15, 1
    %p206 = scmp.ne.s32.totalorder %s201, %s203
    %p207 = scmp.eq.s32.totalorder %s15, 0
    %p208 = por %p206, %p207
    %p209 = scmp.ne.s32.totalorder %s201, %s203
    %p210 = scmp.eq.s32.totalorder %s20, 1
    %p211 = por %p209, %p210
    %p212 = scmp.ne.s32.totalorder %s203, %s204
    %p213 = scmp.eq.s32.totalorder %s20, 0
    %p214 = por %p212, %p213
    %p215 = scmp.ne.s32.totalorder %s203, %s204
    %p216 = scmp.eq.s32.totalorder %s21, 1
    %p217 = por %p215, %p216
    %p219 = scmp.ne.s32.totalorder %s204, %s218
    %p220 = scmp.eq.s32.totalorder %s21, 0
    %p221 = por %p219, %p220
    %s222 = ssub.s32 %s15, %s22
    %p223 = scmp.eq.s32.totalorder %s222, 0
    %s225 = sadd.s32 %s224, 1
    %s226 = scalar_select %p223, %s224, %s225
    %p229 = pneg %p223
    %p230 = scmp.eq.s32.totalorder %s15, 1
    %p231 = por %p229, %p230
    %p232 = scmp.ne.s32.totalorder %s224, %s227
    %p233 = scmp.eq.s32.totalorder %s15, 0
    %p234 = por %p232, %p233
    %p235 = scmp.ne.s32.totalorder %s224, %s227
    %p236 = scmp.eq.s32.totalorder %s20, 1
    %p237 = por %p235, %p236
    %p238 = scmp.ne.s32.totalorder %s227, %s228
    %p239 = scmp.eq.s32.totalorder %s20, 0
    %p240 = por %p238, %p239
    %p241 = scmp.ne.s32.totalorder %s227, %s228
    %p242 = scmp.eq.s32.totalorder %s21, 1
    %p243 = por %p241, %p242
    %p245 = scmp.ne.s32.totalorder %s228, %s244
    %p246 = scmp.eq.s32.totalorder %s21, 0
    %p247 = por %p245, %p246
    %p248 = scmp.le.s32.totalorder 1, %s15
    %p249 = scmp.lt.s32.totalorder %s15, 3
    %p250 = pnand %p248, %p249
    %p251 = pneg %p250
    // Predicated region
    $region9: #{sc_comp_small_forward.1} parent=5 // pred_check
      _
    $region10: #{sc_comp_small_forward.1} parent=5 // pred_check_branch
      %253 = sbr.rel (%p250) target = $region12
    $region11: #{sc_comp_small_forward.1} parent=5 // pred_region
      %s254 = ssub.s32 %s15, 1
      // Predicated region
      $region13: #{sc_comp_small_forward.1} parent=11 // pred_check
        %p255 = pneg %p88
      $region14: #{sc_comp_small_forward.1} parent=11 // pred_check_branch
        %257 = sbr.rel (%p255) target = $region16
      $region15: #{sc_comp_small_forward.1} parent=11 // pred_region
        _
      $region16: #{sc_comp_small_forward.1} parent=11 // pred_fallthru
        _
      // Predicated region
      $region17: #{sc_comp_small_forward.1} parent=11 // pred_check
        %p258 = pneg %p109
      $region18: #{sc_comp_small_forward.1} parent=11 // pred_check_branch
        %260 = sbr.rel (%p258) target = $region20
      $region19: #{sc_comp_small_forward.1} parent=11 // pred_region
        _
      $region20: #{sc_comp_small_forward.1} parent=11 // pred_fallthru
        _
      // Predicated region
      $region21: #{sc_comp_small_forward.1} parent=11 // pred_check
        %p261 = pneg %p130
      $region22: #{sc_comp_small_forward.1} parent=11 // pred_check_branch
        %263 = sbr.rel (%p261) target = $region24
      $region23: #{sc_comp_small_forward.1} parent=11 // pred_region
        _
      $region24: #{sc_comp_small_forward.1} parent=11 // pred_fallthru
        _
      // Predicated region
      $region25: #{sc_comp_small_forward.1} parent=11 // pred_check
        %p264 = pneg %p151
      $region26: #{sc_comp_small_forward.1} parent=11 // pred_check_branch
        %266 = sbr.rel (%p264) target = $region28
      $region27: #{sc_comp_small_forward.1} parent=11 // pred_region
        _
      $region28: #{sc_comp_small_forward.1} parent=11 // pred_fallthru
        _
      // Predicated region
      $region29: #{sc_comp_small_forward.1} parent=11 // pred_check
        %p267 = pneg %p172
      $region30: #{sc_comp_small_forward.1} parent=11 // pred_check_branch
        %269 = sbr.rel (%p267) target = $region32
      $region31: #{sc_comp_small_forward.1} parent=11 // pred_region
        _
      $region32: #{sc_comp_small_forward.1} parent=11 // pred_fallthru
        _
      // Predicated region
      $region33: #{sc_comp_small_forward.1} parent=11 // pred_check
        %p270 = pneg %p193
      $region34: #{sc_comp_small_forward.1} parent=11 // pred_check_branch
        %272 = sbr.rel (%p270) target = $region36
      $region35: #{sc_comp_small_forward.1} parent=11 // pred_region
        _
      $region36: #{sc_comp_small_forward.1} parent=11 // pred_fallthru
        _
      // Predicated region
      $region37: #{sc_comp_small_forward.1} parent=11 // pred_check
        %p273 = pneg %p214
      $region38: #{sc_comp_small_forward.1} parent=11 // pred_check_branch
        %275 = sbr.rel (%p273) target = $region40
      $region39: #{sc_comp_small_forward.1} parent=11 // pred_region
        _
      $region40: #{sc_comp_small_forward.1} parent=11 // pred_fallthru
        _
    $region12: #{sc_comp_small_forward.1} parent=5 // pred_fallthru
      _
    %p276 = scmp.lt.s32.totalorder %s15, 2
    // Predicated region
    $region41: #{sc_comp_small_forward.1} parent=5 // pred_check
      %p277 = pneg %p276
    $region42: #{sc_comp_small_forward.1} parent=5 // pred_check_branch
      %279 = sbr.rel (%p277) target = $region44
    $region43: #{sc_comp_small_forward.1} parent=5 // pred_region
      // Predicated region
      $region45: #{sc_comp_small_forward.1} parent=43 // pred_check
        %p280 = pneg %p35
      $region46: #{sc_comp_small_forward.1} parent=43 // pred_check_branch
        %282 = sbr.rel (%p280) target = $region48
      $region47: #{sc_comp_small_forward.1} parent=43 // pred_region
        %s283 = smul.u32 32, %s15
        %p284 = scmp.lt.s32.totalorder %s283, 63
        %s285 = scalar_select %p284, %s283, 63
        %s286 = smul.addr %s285, 7
        %s287 = smul.addr %s286, 4
        %s288 = scalar_lea.vmem %s0, %s287
        %s289 = smul.u32 32, %s15
      $region48: #{sc_comp_small_forward.1} parent=43 // pred_fallthru
        _
      // Predicated region
      $region49: #{sc_comp_small_forward.1} parent=43 // pred_check
        %p290 = pneg %p61
      $region50: #{sc_comp_small_forward.1} parent=43 // pred_check_branch
        %292 = sbr.rel (%p290) target = $region52
      $region51: #{sc_comp_small_forward.1} parent=43 // pred_region
        %s293 = smul.u32 32, %s15
        %p294 = scmp.lt.s32.totalorder %s293, 63
        %s295 = scalar_select %p294, %s293, 63
        %s296 = smul.addr %s295, 4
        %s297 = scalar_lea.vmem %s1, %s296
        %s298 = smul.u32 32, %s15
      $region52: #{sc_comp_small_forward.1} parent=43 // pred_fallthru
        _
    $region44: #{sc_comp_small_forward.1} parent=5 // pred_fallthru
      _
    %p299 = scmp.le.s32.totalorder 1, %s15
    %p300 = scmp.lt.s32.totalorder %s15, 3
    %p301 = pnand %p299, %p300
    %p302 = pneg %p301
    // Predicated region
    $region53: #{sc_comp_small_forward.1} parent=5 // pred_check
      _
    $region54: #{sc_comp_small_forward.1} parent=5 // pred_check_branch
      %304 = sbr.rel (%p301) target = $region56
    $region55: #{sc_comp_small_forward.1} parent=5 // pred_region
      %s305 = ssub.s32 %s15, 1
      %s306 = smul.u32 32, %s20
      %p307 = scmp.lt.s32.totalorder %s306, 63
      %s308 = scalar_select %p307, %s306, 63
      %s309 = smul.addr %s308, 7
      %s310 = smul.addr %s309, 4
      %s311 = scalar_lea.vmem %s0, %s310
      %p312 = pneg %p41
      %p313 = pneg %p38
      %s314 = smul.u32 32, %s20
      %p315 = scmp.lt.s32.totalorder %s314, 63
      %s316 = scalar_select %p315, %s314, 63
      %s317 = smul.addr %s316, 4
      %s318 = scalar_lea.vmem %s1, %s317
      %p319 = pneg %p67
      %p320 = pneg %p64
      %p321 = pneg %p88
      %p322 = pneg %p85
      %p323 = pneg %p109
      %p324 = pneg %p106
      %p325 = pneg %p130
      %p326 = pneg %p127
      %p327 = pneg %p151
      %p328 = pneg %p148
      %p329 = pneg %p172
      %p330 = pneg %p169
      %p331 = pneg %p193
      %p332 = pneg %p190
      %p333 = pneg %p214
      %p334 = pneg %p211
      %p335 = pneg %p240
      %p336 = pneg %p237
      %s337 = smul.u32 32, %s20
      %p338 = scmp.lt.s32.totalorder %s337, 63
      %s339 = scalar_select %p338, %s337, 63
      %s340 = smul.addr %s339, 8
      %s341 = scalar_lea.vmem %s9, %s340
      %s342 = smul.u32 32, %s20
      %p343 = scmp.lt.s32.totalorder %s342, 63
      %s344 = scalar_select %p343, %s342, 63
      %s345 = smul.addr %s344, 7
      %s346 = smul.addr %s345, 4
      %s347 = scalar_lea.vmem %s0, %s346
      %s348 = smul.u32 32, %s20
      %s349 = smul.u32 32, %s20
      %p350 = scmp.lt.s32.totalorder %s349, 63
      %s351 = scalar_select %p350, %s349, 63
      %s352 = smul.addr %s351, 4
      %s353 = scalar_lea.vmem %s1, %s352
      %s354 = smul.u32 32, %s20
      %s355 = smul.u32 32, %s20
      %p356 = scmp.lt.s32.totalorder %s355, 63
      %s357 = scalar_select %p356, %s355, 63
      %s358 = smul.addr %s357, 8
      %s359 = scalar_lea.vmem %s9, %s358
      %s360 = smul.u32 32, %s20
      %v362 = vld [vmem:[%s347] sm:$0xff]
      %v363 = vld [vmem:[%s347 + $0x8] sm:$0xff]
      %v364 = vld [vmem:[%s347 + $0x10] sm:$0xff]
      %v365 = vld [vmem:[%s347 + $0x18] sm:$0xf]
      %v366 = vld [vmem:[%s347 + $0x1c] sm:$0xff]
      %v367 = vld [vmem:[%s347 + $0x24] sm:$0xff]
      %v368 = vld [vmem:[%s347 + $0x2c] sm:$0xff]
      %v369 = vld [vmem:[%s347 + $0x34] sm:$0xf]
      %v370 = vld [vmem:[%s347 + $0x38] sm:$0xff]
      %v371 = vld [vmem:[%s347 + $0x40] sm:$0xff]
      %v372 = vld [vmem:[%s347 + $0x48] sm:$0xff]
      %v373 = vld [vmem:[%s347 + $0x50] sm:$0xf]
      %v374 = vld [vmem:[%s347 + $0x54] sm:$0xff]
      %v375 = vld [vmem:[%s347 + $0x5c] sm:$0xff]
      %v376 = vld [vmem:[%s347 + $0x64] sm:$0xff]
      %v377 = vld [vmem:[%s347 + $0x6c] sm:$0xf]
      %v378 = vld [vmem:[%s347 + $0x70] sm:$0xff]
      %v379 = vld [vmem:[%s347 + $0x78] sm:$0xff]
      %v380 = vld [vmem:[%s347 + $0x80] sm:$0xff]
      %v381 = vld [vmem:[%s347 + $0x88] sm:$0xf]
      %v382 = vld [vmem:[%s347 + $0x8c] sm:$0xff]
      %v383 = vld [vmem:[%s347 + $0x94] sm:$0xff]
      %v384 = vld [vmem:[%s347 + $0x9c] sm:$0xff]
      %v385 = vld [vmem:[%s347 + $0xa4] sm:$0xf]
      %v386 = vld [vmem:[%s347 + $0xa8] sm:$0xff]
      %v387 = vld [vmem:[%s347 + $0xb0] sm:$0xff]
      %v388 = vld [vmem:[%s347 + $0xb8] sm:$0xff]
      %v389 = vld [vmem:[%s347 + $0xc0] sm:$0xf]
      %v390 = vld [vmem:[%s347 + $0xc4] sm:$0xff]
      %v391 = vld [vmem:[%s347 + $0xcc] sm:$0xff]
      %v392 = vld [vmem:[%s347 + $0xd4] sm:$0xff]
      %v393 = vld [vmem:[%s347 + $0xdc] sm:$0xf]
      %v394 = vld [vmem:[%s347 + $0xe0] sm:$0xff]
      %v395 = vld [vmem:[%s347 + $0xe8] sm:$0xff]
      %v396 = vld [vmem:[%s347 + $0xf0] sm:$0xff]
      %v397 = vld [vmem:[%s347 + $0xf8] sm:$0xf]
      %v398 = vld [vmem:[%s347 + $0xfc] sm:$0xff]
      %v399 = vld [vmem:[%s347 + $0x104] sm:$0xff]
      %v400 = vld [vmem:[%s347 + $0x10c] sm:$0xff]
      %v401 = vld [vmem:[%s347 + $0x114] sm:$0xf]
      %v402 = vld [vmem:[%s347 + $0x118] sm:$0xff]
      %v403 = vld [vmem:[%s347 + $0x120] sm:$0xff]
      %v404 = vld [vmem:[%s347 + $0x128] sm:$0xff]
      %v405 = vld [vmem:[%s347 + $0x130] sm:$0xf]
      %v406 = vld [vmem:[%s347 + $0x134] sm:$0xff]
      %v407 = vld [vmem:[%s347 + $0x13c] sm:$0xff]
      %v408 = vld [vmem:[%s347 + $0x144] sm:$0xff]
      %v409 = vld [vmem:[%s347 + $0x14c] sm:$0xf]
      %v410 = vld [vmem:[%s347 + $0x150] sm:$0xff]
      %v411 = vld [vmem:[%s347 + $0x158] sm:$0xff]
      %v412 = vld [vmem:[%s347 + $0x160] sm:$0xff]
      %v413 = vld [vmem:[%s347 + $0x168] sm:$0xf]
      %v414 = vld [vmem:[%s347 + $0x16c] sm:$0xff]
      %v415 = vld [vmem:[%s347 + $0x174] sm:$0xff]
      %v416 = vld [vmem:[%s347 + $0x17c] sm:$0xff]
      %v417 = vld [vmem:[%s347 + $0x184] sm:$0xf]
      %v418 = vld [vmem:[%s347 + $0x188] sm:$0xff]
      %v419 = vld [vmem:[%s347 + $0x190] sm:$0xff]
      %v420 = vld [vmem:[%s347 + $0x198] sm:$0xff]
      %v421 = vld [vmem:[%s347 + $0x1a0] sm:$0xf]
      %v422 = vld [vmem:[%s347 + $0x1a4] sm:$0xff]
      %v423 = vld [vmem:[%s347 + $0x1ac] sm:$0xff]
      %v424 = vld [vmem:[%s347 + $0x1b4] sm:$0xff]
      %v425 = vld [vmem:[%s347 + $0x1bc] sm:$0xf]
      %v426 = vld [vmem:[%s347 + $0x1c0] sm:$0xff]
      %v427 = vld [vmem:[%s347 + $0x1c8] sm:$0xff]
      %v428 = vld [vmem:[%s347 + $0x1d0] sm:$0xff]
      %v429 = vld [vmem:[%s347 + $0x1d8] sm:$0xf]
      %v430 = vld [vmem:[%s347 + $0x1dc] sm:$0xff]
      %v431 = vld [vmem:[%s347 + $0x1e4] sm:$0xff]
      %v432 = vld [vmem:[%s347 + $0x1ec] sm:$0xff]
      %v433 = vld [vmem:[%s347 + $0x1f4] sm:$0xf]
      %v434 = vld [vmem:[%s347 + $0x1f8] sm:$0xff]
      %v435 = vld [vmem:[%s347 + $0x200] sm:$0xff]
      %v436 = vld [vmem:[%s347 + $0x208] sm:$0xff]
      %v437 = vld [vmem:[%s347 + $0x210] sm:$0xf]
      %v438 = vld [vmem:[%s347 + $0x214] sm:$0xff]
      %v439 = vld [vmem:[%s347 + $0x21c] sm:$0xff]
      %v440 = vld [vmem:[%s347 + $0x224] sm:$0xff]
      %v441 = vld [vmem:[%s347 + $0x22c] sm:$0xf]
      %v442 = vld [vmem:[%s347 + $0x230] sm:$0xff]
      %v443 = vld [vmem:[%s347 + $0x238] sm:$0xff]
      %v444 = vld [vmem:[%s347 + $0x240] sm:$0xff]
      %v445 = vld [vmem:[%s347 + $0x248] sm:$0xf]
      %v446 = vld [vmem:[%s347 + $0x24c] sm:$0xff]
      %v447 = vld [vmem:[%s347 + $0x254] sm:$0xff]
      %v448 = vld [vmem:[%s347 + $0x25c] sm:$0xff]
      %v449 = vld [vmem:[%s347 + $0x264] sm:$0xf]
      %v450 = vld [vmem:[%s347 + $0x268] sm:$0xff]
      %v451 = vld [vmem:[%s347 + $0x270] sm:$0xff]
      %v452 = vld [vmem:[%s347 + $0x278] sm:$0xff]
      %v453 = vld [vmem:[%s347 + $0x280] sm:$0xf]
      %v454 = vld [vmem:[%s347 + $0x284] sm:$0xff]
      %v455 = vld [vmem:[%s347 + $0x28c] sm:$0xff]
      %v456 = vld [vmem:[%s347 + $0x294] sm:$0xff]
      %v457 = vld [vmem:[%s347 + $0x29c] sm:$0xf]
      %v458 = vld [vmem:[%s347 + $0x2a0] sm:$0xff]
      %v459 = vld [vmem:[%s347 + $0x2a8] sm:$0xff]
      %v460 = vld [vmem:[%s347 + $0x2b0] sm:$0xff]
      %v461 = vld [vmem:[%s347 + $0x2b8] sm:$0xf]
      %v462 = vld [vmem:[%s347 + $0x2bc] sm:$0xff]
      %v463 = vld [vmem:[%s347 + $0x2c4] sm:$0xff]
      %v464 = vld [vmem:[%s347 + $0x2cc] sm:$0xff]
      %v465 = vld [vmem:[%s347 + $0x2d4] sm:$0xf]
      %v466 = vld [vmem:[%s347 + $0x2d8] sm:$0xff]
      %v467 = vld [vmem:[%s347 + $0x2e0] sm:$0xff]
      %v468 = vld [vmem:[%s347 + $0x2e8] sm:$0xff]
      %v469 = vld [vmem:[%s347 + $0x2f0] sm:$0xf]
      %v470 = vld [vmem:[%s347 + $0x2f4] sm:$0xff]
      %v471 = vld [vmem:[%s347 + $0x2fc] sm:$0xff]
      %v472 = vld [vmem:[%s347 + $0x304] sm:$0xff]
      %v473 = vld [vmem:[%s347 + $0x30c] sm:$0xf]
      %v474 = vld [vmem:[%s347 + $0x310] sm:$0xff]
      %v475 = vld [vmem:[%s347 + $0x318] sm:$0xff]
      %v476 = vld [vmem:[%s347 + $0x320] sm:$0xff]
      %v477 = vld [vmem:[%s347 + $0x328] sm:$0xf]
      %v478 = vld [vmem:[%s347 + $0x32c] sm:$0xff]
      %v479 = vld [vmem:[%s347 + $0x334] sm:$0xff]
      %v480 = vld [vmem:[%s347 + $0x33c] sm:$0xff]
      %v481 = vld [vmem:[%s347 + $0x344] sm:$0xf]
      %v482 = vld [vmem:[%s347 + $0x348] sm:$0xff]
      %v483 = vld [vmem:[%s347 + $0x350] sm:$0xff]
      %v484 = vld [vmem:[%s347 + $0x358] sm:$0xff]
      %v485 = vld [vmem:[%s347 + $0x360] sm:$0xf]
      %v486 = vld [vmem:[%s347 + $0x364] sm:$0xff]
      %v487 = vld [vmem:[%s347 + $0x36c] sm:$0xff]
      %v488 = vld [vmem:[%s347 + $0x374] sm:$0xff]
      %v489 = vld [vmem:[%s347 + $0x37c] sm:$0xf]
      %v490 = vld [vmem:[%s2] sm:$0xff]
      %v491 = vld [vmem:[%s2 + $0x8] sm:$0xff]
      %v492 = vld [vmem:[%s2 + $0x10] sm:$0xff]
      %v493 = vld [vmem:[%s2 + $0x18] sm:$0xff]
      %v494 = vld [vmem:[%s2 + $0x20] sm:$0xff]
      %v495 = vld [vmem:[%s2 + $0x28] sm:$0xff]
      %v496 = vld [vmem:[%s2 + $0x30] sm:$0xff]
      %v497 = vld [vmem:[%s2 + $0x38] sm:$0xff]
      %v498 = vld [vmem:[%s2 + $0x40] sm:$0xff]
      %v499 = vld [vmem:[%s2 + $0x48] sm:$0xff]
      %v500 = vld [vmem:[%s2 + $0x50] sm:$0xff]
      %v501 = vld [vmem:[%s2 + $0x58] sm:$0xff]
      %v502 = vld [vmem:[%s2 + $0x60] sm:$0xff]
      %v503 = vld [vmem:[%s2 + $0x68] sm:$0xff]
      %v504 = vld [vmem:[%s2 + $0x70] sm:$0xff]
      %v505 = vld [vmem:[%s2 + $0x78] sm:$0xff]
      %v506 = vld [vmem:[%s2 + $0x80] sm:$0xff]
      %v507 = vld [vmem:[%s2 + $0x88] sm:$0xff]
      %v508 = vld [vmem:[%s2 + $0x90] sm:$0xff]
      %v509 = vld [vmem:[%s2 + $0x98] sm:$0xff]
      %v510 = vld [vmem:[%s2 + $0xa0] sm:$0xff]
      %v511 = vld [vmem:[%s2 + $0xa8] sm:$0xff]
      %v512 = vld [vmem:[%s2 + $0xb0] sm:$0xff]
      %v513 = vld [vmem:[%s2 + $0xb8] sm:$0xff]
      %v514 = vld [vmem:[%s2 + $0xc0] sm:$0xff]
      %v515 = vld [vmem:[%s2 + $0xc8] sm:$0xff]
      %v516 = vld [vmem:[%s2 + $0xd0] sm:$0xff]
      %v517 = vld [vmem:[%s2 + $0xd8] sm:$0xff]
      %v518 = vld [vmem:[%s2 + $0xe0] sm:$0xff]
      %v519 = vld [vmem:[%s2 + $0xe8] sm:$0xff]
      %v520 = vld [vmem:[%s2 + $0xf0] sm:$0xff]
      %v521 = vld [vmem:[%s2 + $0xf8] sm:$0xff]
      %v522 = vld [vmem:[%s2 + $0x100] sm:$0xff]
      %v523 = vld [vmem:[%s2 + $0x108] sm:$0xff]
      %v524 = vld [vmem:[%s2 + $0x110] sm:$0xff]
      %v525 = vld [vmem:[%s2 + $0x118] sm:$0xff]
      %v526 = vld [vmem:[%s2 + $0x120] sm:$0xff]
      %v527 = vld [vmem:[%s2 + $0x128] sm:$0xff]
      %v528 = vld [vmem:[%s2 + $0x130] sm:$0xff]
      %v529 = vld [vmem:[%s2 + $0x138] sm:$0xff]
      %v530 = vld [vmem:[%s2 + $0x140] sm:$0xff]
      %v531 = vld [vmem:[%s2 + $0x148] sm:$0xff]
      %v532 = vld [vmem:[%s2 + $0x150] sm:$0xff]
      %v533 = vld [vmem:[%s2 + $0x158] sm:$0xff]
      %v534 = vld [vmem:[%s2 + $0x160] sm:$0xff]
      %v535 = vld [vmem:[%s2 + $0x168] sm:$0xff]
      %v536 = vld [vmem:[%s2 + $0x170] sm:$0xff]
      %v537 = vld [vmem:[%s2 + $0x178] sm:$0xff]
      %v538 = vld [vmem:[%s2 + $0x180] sm:$0xff]
      %v539 = vld [vmem:[%s2 + $0x188] sm:$0xff]
      %v540 = vld [vmem:[%s2 + $0x190] sm:$0xff]
      %v541 = vld [vmem:[%s2 + $0x198] sm:$0xff]
      %v542 = vld [vmem:[%s2 + $0x1a0] sm:$0xff]
      %v543 = vld [vmem:[%s2 + $0x1a8] sm:$0xff]
      %v544 = vld [vmem:[%s2 + $0x1b0] sm:$0xff]
      %v545 = vld [vmem:[%s2 + $0x1b8] sm:$0xff]
      %v546 = vld [vmem:[%s2 + $0x1c0] sm:$0xff]
      %v547 = vld [vmem:[%s2 + $0x1c8] sm:$0xff]
      %v548 = vld [vmem:[%s2 + $0x1d0] sm:$0xff]
      %v549 = vld [vmem:[%s2 + $0x1d8] sm:$0xff]
      %v550 = vld [vmem:[%s2 + $0x1e0] sm:$0xff]
      %v551 = vld [vmem:[%s2 + $0x1e8] sm:$0xff]
      %v552 = vld [vmem:[%s2 + $0x1f0] sm:$0xff]
      %v553 = vld [vmem:[%s2 + $0x1f8] sm:$0xff]
      %v554 = vld [vmem:[%s2 + $0x200] sm:$0xff]
      %v555 = vld [vmem:[%s2 + $0x208] sm:$0xff]
      %v556 = vld [vmem:[%s2 + $0x210] sm:$0xff]
      %v557 = vld [vmem:[%s2 + $0x218] sm:$0xff]
      %v558 = vld [vmem:[%s2 + $0x220] sm:$0xff]
      %v559 = vld [vmem:[%s2 + $0x228] sm:$0xff]
      %v560 = vld [vmem:[%s2 + $0x230] sm:$0xff]
      %v561 = vld [vmem:[%s2 + $0x238] sm:$0xff]
      %v562 = vld [vmem:[%s2 + $0x240] sm:$0xff]
      %v563 = vld [vmem:[%s2 + $0x248] sm:$0xff]
      %v564 = vld [vmem:[%s2 + $0x250] sm:$0xff]
      %v565 = vld [vmem:[%s2 + $0x258] sm:$0xff]
      %v566 = vld [vmem:[%s2 + $0x260] sm:$0xff]
      %v567 = vld [vmem:[%s2 + $0x268] sm:$0xff]
      %v568 = vld [vmem:[%s2 + $0x270] sm:$0xff]
      %v569 = vld [vmem:[%s2 + $0x278] sm:$0xff]
      %v570 = vld [vmem:[%s2 + $0x280] sm:$0xff]
      %v571 = vld [vmem:[%s2 + $0x288] sm:$0xff]
      %v572 = vld [vmem:[%s2 + $0x290] sm:$0xff]
      %v573 = vld [vmem:[%s2 + $0x298] sm:$0xff]
      %v574 = vld [vmem:[%s2 + $0x2a0] sm:$0xff]
      %v575 = vld [vmem:[%s2 + $0x2a8] sm:$0xff]
      %v576 = vld [vmem:[%s2 + $0x2b0] sm:$0xff]
      %v577 = vld [vmem:[%s2 + $0x2b8] sm:$0xff]
      %v578 = vld [vmem:[%s2 + $0x2c0] sm:$0xff]
      %v579 = vld [vmem:[%s2 + $0x2c8] sm:$0xff]
      %v580 = vld [vmem:[%s2 + $0x2d0] sm:$0xff]
      %v581 = vld [vmem:[%s2 + $0x2d8] sm:$0xff]
      %v582 = vld [vmem:[%s2 + $0x2e0] sm:$0xff]
      %v583 = vld [vmem:[%s2 + $0x2e8] sm:$0xff]
      %v584 = vld [vmem:[%s2 + $0x2f0] sm:$0xff]
      %v585 = vld [vmem:[%s2 + $0x2f8] sm:$0xff]
      %v586 = vld [vmem:[%s2 + $0x300] sm:$0xff]
      %v587 = vld [vmem:[%s2 + $0x308] sm:$0xff]
      %v588 = vld [vmem:[%s2 + $0x310] sm:$0xff]
      %v589 = vld [vmem:[%s2 + $0x318] sm:$0xff]
      %v590 = vld [vmem:[%s2 + $0x320] sm:$0xff]
      %v591 = vld [vmem:[%s2 + $0x328] sm:$0xff]
      %v592 = vld [vmem:[%s2 + $0x330] sm:$0xff]
      %v593 = vld [vmem:[%s2 + $0x338] sm:$0xff]
      %v594 = vld [vmem:[%s2 + $0x340] sm:$0xff]
      %v595 = vld [vmem:[%s2 + $0x348] sm:$0xff]
      %v596 = vld [vmem:[%s2 + $0x350] sm:$0xff]
      %v597 = vld [vmem:[%s2 + $0x358] sm:$0xff]
      %v598 = vld [vmem:[%s2 + $0x360] sm:$0xff]
      %v599 = vld [vmem:[%s2 + $0x368] sm:$0xff]
      %v600 = vld [vmem:[%s2 + $0x370] sm:$0xff]
      %v601 = vld [vmem:[%s2 + $0x378] sm:$0xff]
      %v602 = vld [vmem:[%s2 + $0x380] sm:$0xff]
      %v603 = vld [vmem:[%s2 + $0x388] sm:$0xff]
      %v604 = vld [vmem:[%s2 + $0x390] sm:$0xff]
      %v605 = vld [vmem:[%s2 + $0x398] sm:$0xff]
      %v606 = vld [vmem:[%s2 + $0x3a0] sm:$0xff]
      %v607 = vld [vmem:[%s2 + $0x3a8] sm:$0xff]
      %v608 = vld [vmem:[%s2 + $0x3b0] sm:$0xff]
      %v609 = vld [vmem:[%s2 + $0x3b8] sm:$0xff]
      %v610 = vld [vmem:[%s2 + $0x3c0] sm:$0xff]
      %v611 = vld [vmem:[%s2 + $0x3c8] sm:$0xff]
      %v612 = vld [vmem:[%s2 + $0x3d0] sm:$0xff]
      %v613 = vld [vmem:[%s2 + $0x3d8] sm:$0xff]
      %v614 = vld [vmem:[%s2 + $0x3e0] sm:$0xff]
      %v615 = vld [vmem:[%s2 + $0x3e8] sm:$0xff]
      %v616 = vld [vmem:[%s2 + $0x3f0] sm:$0xff]
      %v617 = vld [vmem:[%s2 + $0x3f8] sm:$0xff]
      %v618 = vld [vmem:[%s2 + $0x400] sm:$0xff]
      %v619 = vld [vmem:[%s2 + $0x408] sm:$0xff]
      %v620 = vld [vmem:[%s2 + $0x410] sm:$0xff]
      %v621 = vld [vmem:[%s2 + $0x418] sm:$0xff]
      %v622 = vld [vmem:[%s2 + $0x420] sm:$0xff]
      %v623 = vld [vmem:[%s2 + $0x428] sm:$0xff]
      %v624 = vld [vmem:[%s2 + $0x430] sm:$0xff]
      %v625 = vld [vmem:[%s2 + $0x438] sm:$0xff]
      %v626 = vld [vmem:[%s2 + $0x440] sm:$0xff]
      %v627 = vld [vmem:[%s2 + $0x448] sm:$0xff]
      %v628 = vld [vmem:[%s2 + $0x450] sm:$0xff]
      %v629 = vld [vmem:[%s2 + $0x458] sm:$0xff]
      %v630 = vld [vmem:[%s2 + $0x460] sm:$0xff]
      %v631 = vld [vmem:[%s2 + $0x468] sm:$0xff]
      %v632 = vld [vmem:[%s2 + $0x470] sm:$0xff]
      %v633 = vld [vmem:[%s2 + $0x478] sm:$0xff]
      %v634 = vld [vmem:[%s2 + $0x480] sm:$0xff]
      %v635 = vld [vmem:[%s2 + $0x488] sm:$0xff]
      %v636 = vld [vmem:[%s2 + $0x490] sm:$0xff]
      %v637 = vld [vmem:[%s2 + $0x498] sm:$0xff]
      %v638 = vld [vmem:[%s2 + $0x4a0] sm:$0xff]
      %v639 = vld [vmem:[%s2 + $0x4a8] sm:$0xff]
      %v640 = vld [vmem:[%s2 + $0x4b0] sm:$0xff]
      %v641 = vld [vmem:[%s2 + $0x4b8] sm:$0xff]
      %v642 = vld [vmem:[%s2 + $0x4c0] sm:$0xff]
      %v643 = vld [vmem:[%s2 + $0x4c8] sm:$0xff]
      %v644 = vld [vmem:[%s2 + $0x4d0] sm:$0xff]
      %v645 = vld [vmem:[%s2 + $0x4d8] sm:$0xff]
      %v646 = vld [vmem:[%s2 + $0x4e0] sm:$0xff]
      %v647 = vld [vmem:[%s2 + $0x4e8] sm:$0xff]
      %v648 = vld [vmem:[%s2 + $0x4f0] sm:$0xff]
      %v649 = vld [vmem:[%s2 + $0x4f8] sm:$0xff]
      %v650 = vld [vmem:[%s2 + $0x500] sm:$0xff]
      %v651 = vld [vmem:[%s2 + $0x508] sm:$0xff]
      %v652 = vld [vmem:[%s2 + $0x510] sm:$0xff]
      %v653 = vld [vmem:[%s2 + $0x518] sm:$0xff]
      %v654 = vld [vmem:[%s2 + $0x520] sm:$0xff]
      %v655 = vld [vmem:[%s2 + $0x528] sm:$0xff]
      %v656 = vld [vmem:[%s2 + $0x530] sm:$0xff]
      %v657 = vld [vmem:[%s2 + $0x538] sm:$0xff]
      %v658 = vld [vmem:[%s2 + $0x540] sm:$0xff]
      %v659 = vld [vmem:[%s2 + $0x548] sm:$0xff]
      %v660 = vld [vmem:[%s2 + $0x550] sm:$0xff]
      %v661 = vld [vmem:[%s2 + $0x558] sm:$0xff]
      %v662 = vld [vmem:[%s2 + $0x560] sm:$0xff]
      %v663 = vld [vmem:[%s2 + $0x568] sm:$0xff]
      %v664 = vld [vmem:[%s2 + $0x570] sm:$0xff]
      %v665 = vld [vmem:[%s2 + $0x578] sm:$0xff]
      %v666 = vld [vmem:[%s2 + $0x580] sm:$0xff]
      %v667 = vld [vmem:[%s2 + $0x588] sm:$0xff]
      %v668 = vld [vmem:[%s2 + $0x590] sm:$0xff]
      %v669 = vld [vmem:[%s2 + $0x598] sm:$0xff]
      %v670 = vld [vmem:[%s2 + $0x5a0] sm:$0xff]
      %v671 = vld [vmem:[%s2 + $0x5a8] sm:$0xff]
      %v672 = vld [vmem:[%s2 + $0x5b0] sm:$0xff]
      %v673 = vld [vmem:[%s2 + $0x5b8] sm:$0xff]
      %v674 = vld [vmem:[%s2 + $0x5c0] sm:$0xff]
      %v675 = vld [vmem:[%s2 + $0x5c8] sm:$0xff]
      %v676 = vld [vmem:[%s2 + $0x5d0] sm:$0xff]
      %v677 = vld [vmem:[%s2 + $0x5d8] sm:$0xff]
      %v678 = vld [vmem:[%s2 + $0x5e0] sm:$0xff]
      %v679 = vld [vmem:[%s2 + $0x5e8] sm:$0xff]
      %v680 = vld [vmem:[%s2 + $0x5f0] sm:$0xff]
      %v681 = vld [vmem:[%s2 + $0x5f8] sm:$0xff]
      %v682 = vld [vmem:[%s2 + $0x600] sm:$0xff]
      %v683 = vld [vmem:[%s2 + $0x608] sm:$0xff]
      %v684 = vld [vmem:[%s2 + $0x610] sm:$0xff]
      %v685 = vld [vmem:[%s2 + $0x618] sm:$0xff]
      %v686 = vld [vmem:[%s2 + $0x620] sm:$0xff]
      %v687 = vld [vmem:[%s2 + $0x628] sm:$0xff]
      %v688 = vld [vmem:[%s2 + $0x630] sm:$0xff]
      %v689 = vld [vmem:[%s2 + $0x638] sm:$0xff]
      %v690 = vld [vmem:[%s2 + $0x640] sm:$0xff]
      %v691 = vld [vmem:[%s2 + $0x648] sm:$0xff]
      %v692 = vld [vmem:[%s2 + $0x650] sm:$0xff]
      %v693 = vld [vmem:[%s2 + $0x658] sm:$0xff]
      %v694 = vld [vmem:[%s2 + $0x660] sm:$0xff]
      %v695 = vld [vmem:[%s2 + $0x668] sm:$0xff]
      %v696 = vld [vmem:[%s2 + $0x670] sm:$0xff]
      %v697 = vld [vmem:[%s2 + $0x678] sm:$0xff]
      %v698 = vld [vmem:[%s2 + $0x680] sm:$0xff]
      %v699 = vld [vmem:[%s2 + $0x688] sm:$0xff]
      %v700 = vld [vmem:[%s2 + $0x690] sm:$0xff]
      %v701 = vld [vmem:[%s2 + $0x698] sm:$0xff]
      %v702 = vld [vmem:[%s2 + $0x6a0] sm:$0xff]
      %v703 = vld [vmem:[%s2 + $0x6a8] sm:$0xff]
      %v704 = vld [vmem:[%s2 + $0x6b0] sm:$0xff]
      %v705 = vld [vmem:[%s2 + $0x6b8] sm:$0xff]
      %v706 = vld [vmem:[%s2 + $0x6c0] sm:$0xff]
      %v707 = vld [vmem:[%s2 + $0x6c8] sm:$0xff]
      %v708 = vld [vmem:[%s2 + $0x6d0] sm:$0xff]
      %v709 = vld [vmem:[%s2 + $0x6d8] sm:$0xff]
      %v710 = vld [vmem:[%s2 + $0x6e0] sm:$0xff]
      %v711 = vld [vmem:[%s2 + $0x6e8] sm:$0xff]
      %v712 = vld [vmem:[%s2 + $0x6f0] sm:$0xff]
      %v713 = vld [vmem:[%s2 + $0x6f8] sm:$0xff]
      %v714 = vld [vmem:[%s353] sm:$0xf]
      %v715 = vld [vmem:[%s353 + $0x4] sm:$0xf]
      %v716 = vld [vmem:[%s353 + $0x8] sm:$0xf]
      %v717 = vld [vmem:[%s353 + $0xc] sm:$0xf]
      %v718 = vld [vmem:[%s353 + $0x10] sm:$0xf]
      %v719 = vld [vmem:[%s353 + $0x14] sm:$0xf]
      %v720 = vld [vmem:[%s353 + $0x18] sm:$0xf]
      %v721 = vld [vmem:[%s353 + $0x1c] sm:$0xf]
      %v722 = vld [vmem:[%s353 + $0x20] sm:$0xf]
      %v723 = vld [vmem:[%s353 + $0x24] sm:$0xf]
      %v724 = vld [vmem:[%s353 + $0x28] sm:$0xf]
      %v725 = vld [vmem:[%s353 + $0x2c] sm:$0xf]
      %v726 = vld [vmem:[%s353 + $0x30] sm:$0xf]
      %v727 = vld [vmem:[%s353 + $0x34] sm:$0xf]
      %v728 = vld [vmem:[%s353 + $0x38] sm:$0xf]
      %v729 = vld [vmem:[%s353 + $0x3c] sm:$0xf]
      %v730 = vld [vmem:[%s353 + $0x40] sm:$0xf]
      %v731 = vld [vmem:[%s353 + $0x44] sm:$0xf]
      %v732 = vld [vmem:[%s353 + $0x48] sm:$0xf]
      %v733 = vld [vmem:[%s353 + $0x4c] sm:$0xf]
      %v734 = vld [vmem:[%s353 + $0x50] sm:$0xf]
      %v735 = vld [vmem:[%s353 + $0x54] sm:$0xf]
      %v736 = vld [vmem:[%s353 + $0x58] sm:$0xf]
      %v737 = vld [vmem:[%s353 + $0x5c] sm:$0xf]
      %v738 = vld [vmem:[%s353 + $0x60] sm:$0xf]
      %v739 = vld [vmem:[%s353 + $0x64] sm:$0xf]
      %v740 = vld [vmem:[%s353 + $0x68] sm:$0xf]
      %v741 = vld [vmem:[%s353 + $0x6c] sm:$0xf]
      %v742 = vld [vmem:[%s353 + $0x70] sm:$0xf]
      %v743 = vld [vmem:[%s353 + $0x74] sm:$0xf]
      %v744 = vld [vmem:[%s353 + $0x78] sm:$0xf]
      %v745 = vld [vmem:[%s353 + $0x7c] sm:$0xf]
      %v746 = vld [vmem:[%s3] sm:$0xff]
      %v747 = vld [vmem:[%s3 + $0x8] sm:$0xff]
      %v748 = vld [vmem:[%s3 + $0x10] sm:$0xff]
      %v749 = vld [vmem:[%s3 + $0x18] sm:$0xff]
      %v750 = vld [vmem:[%s3 + $0x20] sm:$0xff]
      %v751 = vld [vmem:[%s3 + $0x28] sm:$0xff]
      %v752 = vld [vmem:[%s3 + $0x30] sm:$0xff]
      %v753 = vld [vmem:[%s3 + $0x38] sm:$0xff]
      %v754 = vld [vmem:[%s3 + $0x40] sm:$0xff]
      %v755 = vld [vmem:[%s3 + $0x48] sm:$0xff]
      %v756 = vld [vmem:[%s3 + $0x50] sm:$0xff]
      %v757 = vld [vmem:[%s3 + $0x58] sm:$0xff]
      %v758 = vld [vmem:[%s3 + $0x60] sm:$0xff]
      %v759 = vld [vmem:[%s3 + $0x68] sm:$0xff]
      %v760 = vld [vmem:[%s3 + $0x70] sm:$0xff]
      %v761 = vld [vmem:[%s3 + $0x78] sm:$0xff]
      %v762 = vld [vmem:[%s3 + $0x80] sm:$0xff]
      %v763 = vld [vmem:[%s3 + $0x88] sm:$0xff]
      %v764 = vld [vmem:[%s3 + $0x90] sm:$0xff]
      %v765 = vld [vmem:[%s3 + $0x98] sm:$0xff]
      %v766 = vld [vmem:[%s3 + $0xa0] sm:$0xff]
      %v767 = vld [vmem:[%s3 + $0xa8] sm:$0xff]
      %v768 = vld [vmem:[%s3 + $0xb0] sm:$0xff]
      %v769 = vld [vmem:[%s3 + $0xb8] sm:$0xff]
      %v770 = vld [vmem:[%s3 + $0xc0] sm:$0xff]
      %v771 = vld [vmem:[%s3 + $0xc8] sm:$0xff]
      %v772 = vld [vmem:[%s3 + $0xd0] sm:$0xff]
      %v773 = vld [vmem:[%s3 + $0xd8] sm:$0xff]
      %v774 = vld [vmem:[%s3 + $0xe0] sm:$0xff]
      %v775 = vld [vmem:[%s3 + $0xe8] sm:$0xff]
      %v776 = vld [vmem:[%s3 + $0xf0] sm:$0xff]
      %v777 = vld [vmem:[%s3 + $0xf8] sm:$0xff]
      %v810 = vunpack.c.l.b16 %v714
      %v811 = vunpack.c.l.b16 %v715
      %v812 = vunpack.c.l.b16 %v716
      %v813 = vunpack.c.l.b16 %v717
      %v814 = vunpack.c.l.b16 %v718
      %v815 = vunpack.c.l.b16 %v719
      %v816 = vunpack.c.l.b16 %v720
      %v817 = vunpack.c.l.b16 %v721
      %v818 = vunpack.c.l.b16 %v722
      %v819 = vunpack.c.l.b16 %v723
      %v820 = vunpack.c.l.b16 %v724
      %v821 = vunpack.c.l.b16 %v725
      %v822 = vunpack.c.l.b16 %v726
      %v823 = vunpack.c.l.b16 %v727
      %v824 = vunpack.c.l.b16 %v728
      %v825 = vunpack.c.l.b16 %v729
      %v826 = vunpack.c.l.b16 %v730
      %v827 = vunpack.c.l.b16 %v731
      %v828 = vunpack.c.l.b16 %v732
      %v829 = vunpack.c.l.b16 %v733
      %v830 = vunpack.c.l.b16 %v734
      %v831 = vunpack.c.l.b16 %v735
      %v832 = vunpack.c.l.b16 %v736
      %v833 = vunpack.c.l.b16 %v737
      %v834 = vunpack.c.l.b16 %v738
      %v835 = vunpack.c.l.b16 %v739
      %v836 = vunpack.c.l.b16 %v740
      %v837 = vunpack.c.l.b16 %v741
      %v838 = vunpack.c.l.b16 %v742
      %v839 = vunpack.c.l.b16 %v743
      %v840 = vunpack.c.l.b16 %v744
      %v841 = vunpack.c.l.b16 %v745
      %v842 = vpack.c.b16 %v811, %v810
      %v843 = vpack.c.b16 %v813, %v812
      %v844 = vpack.c.b16 %v815, %v814
      %v845 = vpack.c.b16 %v817, %v816
      %v846 = vpack.c.b16 %v819, %v818
      %v847 = vpack.c.b16 %v821, %v820
      %v848 = vpack.c.b16 %v823, %v822
      %v849 = vpack.c.b16 %v825, %v824
      %v850 = vpack.c.b16 %v827, %v826
      %v851 = vpack.c.b16 %v829, %v828
      %v852 = vpack.c.b16 %v831, %v830
      %v853 = vpack.c.b16 %v833, %v832
      %v854 = vpack.c.b16 %v835, %v834
      %v855 = vpack.c.b16 %v837, %v836
      %v856 = vpack.c.b16 %v839, %v838
      %v857 = vpack.c.b16 %v841, %v840
      %v906 = vunpack.c.l.b16 %v746
      %v907 = vunpack.c.h.b16 %v746
      %v908 = vunpack.c.l.b16 %v747
      %v909 = vunpack.c.h.b16 %v747
      %v910 = vunpack.c.l.b16 %v748
      %v911 = vunpack.c.h.b16 %v748
      %v912 = vunpack.c.l.b16 %v749
      %v913 = vunpack.c.h.b16 %v749
      %v914 = vunpack.c.l.b16 %v750
      %v915 = vunpack.c.h.b16 %v750
      %v916 = vunpack.c.l.b16 %v751
      %v917 = vunpack.c.h.b16 %v751
      %v918 = vunpack.c.l.b16 %v752
      %v919 = vunpack.c.h.b16 %v752
      %v920 = vunpack.c.l.b16 %v753
      %v921 = vunpack.c.h.b16 %v753
      %v922 = vunpack.c.l.b16 %v754
      %v923 = vunpack.c.h.b16 %v754
      %v924 = vunpack.c.l.b16 %v755
      %v925 = vunpack.c.h.b16 %v755
      %v926 = vunpack.c.l.b16 %v756
      %v927 = vunpack.c.h.b16 %v756
      %v928 = vunpack.c.l.b16 %v757
      %v929 = vunpack.c.h.b16 %v757
      %v930 = vunpack.c.l.b16 %v758
      %v931 = vunpack.c.h.b16 %v758
      %v932 = vunpack.c.l.b16 %v759
      %v933 = vunpack.c.h.b16 %v759
      %v934 = vunpack.c.l.b16 %v760
      %v935 = vunpack.c.h.b16 %v760
      %v936 = vunpack.c.l.b16 %v761
      %v937 = vunpack.c.h.b16 %v761
      %v938 = vunpack.c.l.b16 %v762
      %v939 = vunpack.c.h.b16 %v762
      %v940 = vunpack.c.l.b16 %v763
      %v941 = vunpack.c.h.b16 %v763
      %v942 = vunpack.c.l.b16 %v764
      %v943 = vunpack.c.h.b16 %v764
      %v944 = vunpack.c.l.b16 %v765
      %v945 = vunpack.c.h.b16 %v765
      %v946 = vunpack.c.l.b16 %v766
      %v947 = vunpack.c.h.b16 %v766
      %v948 = vunpack.c.l.b16 %v767
      %v949 = vunpack.c.h.b16 %v767
      %v950 = vunpack.c.l.b16 %v768
      %v951 = vunpack.c.h.b16 %v768
      %v952 = vunpack.c.l.b16 %v769
      %v953 = vunpack.c.h.b16 %v769
      %v954 = vunpack.c.l.b16 %v770
      %v955 = vunpack.c.h.b16 %v770
      %v956 = vunpack.c.l.b16 %v771
      %v957 = vunpack.c.h.b16 %v771
      %v958 = vunpack.c.l.b16 %v772
      %v959 = vunpack.c.h.b16 %v772
      %v960 = vunpack.c.l.b16 %v773
      %v961 = vunpack.c.h.b16 %v773
      %v962 = vunpack.c.l.b16 %v774
      %v963 = vunpack.c.h.b16 %v774
      %v964 = vunpack.c.l.b16 %v775
      %v965 = vunpack.c.h.b16 %v775
      %v966 = vunpack.c.l.b16 %v776
      %v967 = vunpack.c.h.b16 %v776
      %v968 = vunpack.c.l.b16 %v777
      %v969 = vunpack.c.h.b16 %v777
      %v970 = vpack.c.b16 %v910, %v906
      %v971 = vpack.c.b16 %v911, %v907
      %v972 = vpack.c.b16 %v912, %v908
      %v973 = vpack.c.b16 %v913, %v909
      %v974 = vpack.c.b16 %v918, %v914
      %v975 = vpack.c.b16 %v919, %v915
      %v976 = vpack.c.b16 %v920, %v916
      %v977 = vpack.c.b16 %v921, %v917
      %v978 = vpack.c.b16 %v926, %v922
      %v979 = vpack.c.b16 %v927, %v923
      %v980 = vpack.c.b16 %v928, %v924
      %v981 = vpack.c.b16 %v929, %v925
      %v982 = vpack.c.b16 %v934, %v930
      %v983 = vpack.c.b16 %v935, %v931
      %v984 = vpack.c.b16 %v936, %v932
      %v985 = vpack.c.b16 %v937, %v933
      %v986 = vpack.c.b16 %v942, %v938
      %v987 = vpack.c.b16 %v943, %v939
      %v988 = vpack.c.b16 %v944, %v940
      %v989 = vpack.c.b16 %v945, %v941
      %v990 = vpack.c.b16 %v950, %v946
      %v991 = vpack.c.b16 %v951, %v947
      %v992 = vpack.c.b16 %v952, %v948
      %v993 = vpack.c.b16 %v953, %v949
      %v994 = vpack.c.b16 %v958, %v954
      %v995 = vpack.c.b16 %v959, %v955
      %v996 = vpack.c.b16 %v960, %v956
      %v997 = vpack.c.b16 %v961, %v957
      %v998 = vpack.c.b16 %v966, %v962
      %v999 = vpack.c.b16 %v967, %v963
      %v1000 = vpack.c.b16 %v968, %v964
      %v1001 = vpack.c.b16 %v969, %v965
      %1034 = vmatprep.subr.bf16.mxu0 %v971
      %1035 = vmatpush1.bf16.msra.mxu0 %v970
      %1036 = vmatprep.subr.bf16.mxu0 %v975
      %1037 = vmatpush1.bf16.msra.mxu0 %v974
      %1038 = vmatprep.subr.bf16.mxu0 %v979
      %1039 = vmatpush1.bf16.msra.mxu0 %v978
      %1040 = vmatprep.subr.bf16.mxu0 %v983
      %1041 = vmatpush1.bf16.msra.mxu0 %v982
      %1042 = vmatprep.subr.bf16.mxu0 %v987
      %1043 = vmatpush1.bf16.msra.mxu0 %v986
      %1044 = vmatprep.subr.bf16.mxu0 %v991
      %1045 = vmatpush1.bf16.msra.mxu0 %v990
      %1046 = vmatprep.subr.bf16.mxu0 %v995
      %1047 = vmatpush1.bf16.msra.mxu0 %v994
      %1048 = vmatprep.subr.bf16.mxu0 %v999
      %1049 = vmatpush1.bf16.msra.mxu0 %v998
      %1050 = vmatprep.subr.bf16.mxu0 0
      %1051 = vmatpush1.bf16.msra.mxu0 0
      %1052 = vmatprep.subr.bf16.mxu0 0
      %1053 = vmatpush1.bf16.msra.mxu0 0
      %1054 = vmatprep.subr.bf16.mxu0 0
      %1055 = vmatpush1.bf16.msra.mxu0 0
      %1056 = vmatprep.subr.bf16.mxu0 0
      %1057 = vmatpush1.bf16.msra.mxu0 0
      %1058 = vmatprep.subr.bf16.mxu0 0
      %1059 = vmatpush1.bf16.msra.mxu0 0
      %1060 = vmatprep.subr.bf16.mxu0 0
      %1061 = vmatpush1.bf16.msra.mxu0 0
      %1062 = vmatprep.subr.bf16.mxu0 0
      %1063 = vmatpush1.bf16.msra.mxu0 0
      %1064 = vmatprep.subr.bf16.mxu0 0
      %1065 = vmatpush1.bf16.msra.mxu0 0
      %1066 = vmatprep.mubr.bf16.mxu0 0
      %1067 = vmatmul.mubr.bf16.gmra.mrb[0].mxu0 %v842
      %v1068 = vpop.f32.mrb[0].mxu0
      %v1069 = vadd.f32 0.0, %v1068
      %v1070 = vpop.f32.mrb[0].mxu0
      %v1071 = vadd.f32 0.0, %v1070
      %v1072 = vpop.f32.mrb[0].mxu0
      %v1073 = vadd.f32 0.0, %v1072
      %v1074 = vpop.f32.mrb[0].mxu0
      %v1075 = vadd.f32 0.0, %v1074
      %1076 = vmatprep.mubr.bf16.mxu0 0
      %1077 = vmatmul.mubr.bf16.gmra.mrb[0].mxu0 %v843
      %v1078 = vpop.f32.mrb[0].mxu0
      %v1079 = vadd.f32 0.0, %v1078
      %v1080 = vpop.f32.mrb[0].mxu0
      %v1081 = vadd.f32 0.0, %v1080
      %v1082 = vpop.f32.mrb[0].mxu0
      %v1083 = vadd.f32 0.0, %v1082
      %v1084 = vpop.f32.mrb[0].mxu0
      %v1085 = vadd.f32 0.0, %v1084
      %1086 = vmatprep.mubr.bf16.mxu0 0
      %1087 = vmatmul.mubr.bf16.gmra.mrb[0].mxu0 %v844
      %v1088 = vpop.f32.mrb[0].mxu0
      %v1089 = vadd.f32 0.0, %v1088
      %v1090 = vpop.f32.mrb[0].mxu0
      %v1091 = vadd.f32 0.0, %v1090
      %v1092 = vpop.f32.mrb[0].mxu0
      %v1093 = vadd.f32 0.0, %v1092
      %v1094 = vpop.f32.mrb[0].mxu0
      %v1095 = vadd.f32 0.0, %v1094
      %1096 = vmatprep.mubr.bf16.mxu0 0
      %1097 = vmatmul.mubr.bf16.gmra.mrb[0].mxu0 %v845
      %v1098 = vpop.f32.mrb[0].mxu0
      %v1099 = vadd.f32 0.0, %v1098
      %v1100 = vpop.f32.mrb[0].mxu0
      %v1101 = vadd.f32 0.0, %v1100
      %v1102 = vpop.f32.mrb[0].mxu0
      %v1103 = vadd.f32 0.0, %v1102
      %v1104 = vpop.f32.mrb[0].mxu0
      %v1105 = vadd.f32 0.0, %v1104
      %1106 = vmatprep.mubr.bf16.mxu0 0
      %1107 = vmatmul.mubr.bf16.gmra.mrb[0].mxu0 %v846
      %v1108 = vpop.f32.mrb[0].mxu0
      %v1109 = vadd.f32 0.0, %v1108
      %v1110 = vpop.f32.mrb[0].mxu0
      %v1111 = vadd.f32 0.0, %v1110
      %v1112 = vpop.f32.mrb[0].mxu0
      %v1113 = vadd.f32 0.0, %v1112
      %v1114 = vpop.f32.mrb[0].mxu0
      %v1115 = vadd.f32 0.0, %v1114
      %1116 = vmatprep.mubr.bf16.mxu0 0
      %1117 = vmatmul.mubr.bf16.gmra.mrb[0].mxu0 %v847
      %v1118 = vpop.f32.mrb[0].mxu0
      %v1119 = vadd.f32 0.0, %v1118
      %v1120 = vpop.f32.mrb[0].mxu0
      %v1121 = vadd.f32 0.0, %v1120
      %v1122 = vpop.f32.mrb[0].mxu0
      %v1123 = vadd.f32 0.0, %v1122
      %v1124 = vpop.f32.mrb[0].mxu0
      %v1125 = vadd.f32 0.0, %v1124
      %1126 = vmatprep.mubr.bf16.mxu0 0
      %1127 = vmatmul.mubr.bf16.gmra.mrb[0].mxu0 %v848
      %v1128 = vpop.f32.mrb[0].mxu0
      %v1129 = vadd.f32 0.0, %v1128
      %v1130 = vpop.f32.mrb[0].mxu0
      %v1131 = vadd.f32 0.0, %v1130
      %v1132 = vpop.f32.mrb[0].mxu0
      %v1133 = vadd.f32 0.0, %v1132
      %v1134 = vpop.f32.mrb[0].mxu0
      %v1135 = vadd.f32 0.0, %v1134
      %1136 = vmatprep.mubr.bf16.mxu0 0
      %1137 = vmatmul.mubr.bf16.gmra.mrb[0].mxu0 %v849
      %v1138 = vpop.f32.mrb[0].mxu0
      %v1139 = vadd.f32 0.0, %v1138
      %v1140 = vpop.f32.mrb[0].mxu0
      %v1141 = vadd.f32 0.0, %v1140
      %v1142 = vpop.f32.mrb[0].mxu0
      %v1143 = vadd.f32 0.0, %v1142
      %v1144 = vpop.f32.mrb[0].mxu0
      %v1145 = vadd.f32 0.0, %v1144
      %1146 = vmatprep.mubr.bf16.mxu0 0
      %1147 = vmatmul.mubr.bf16.gmra.mrb[0].mxu0 %v850
      %v1148 = vpop.f32.mrb[0].mxu0
      %v1149 = vadd.f32 0.0, %v1148
      %v1150 = vpop.f32.mrb[0].mxu0
      %v1151 = vadd.f32 0.0, %v1150
      %v1152 = vpop.f32.mrb[0].mxu0
      %v1153 = vadd.f32 0.0, %v1152
      %v1154 = vpop.f32.mrb[0].mxu0
      %v1155 = vadd.f32 0.0, %v1154
      %1156 = vmatprep.mubr.bf16.mxu0 0
      %1157 = vmatmul.mubr.bf16.gmra.mrb[0].mxu0 %v851
      %v1158 = vpop.f32.mrb[0].mxu0
      %v1159 = vadd.f32 0.0, %v1158
      %v1160 = vpop.f32.mrb[0].mxu0
      %v1161 = vadd.f32 0.0, %v1160
      %v1162 = vpop.f32.mrb[0].mxu0
      %v1163 = vadd.f32 0.0, %v1162
      %v1164 = vpop.f32.mrb[0].mxu0
      %v1165 = vadd.f32 0.0, %v1164
      %1166 = vmatprep.mubr.bf16.mxu0 0
      %1167 = vmatmul.mubr.bf16.gmra.mrb[0].mxu0 %v852
      %v1168 = vpop.f32.mrb[0].mxu0
      %v1169 = vadd.f32 0.0, %v1168
      %v1170 = vpop.f32.mrb[0].mxu0
      %v1171 = vadd.f32 0.0, %v1170
      %v1172 = vpop.f32.mrb[0].mxu0
      %v1173 = vadd.f32 0.0, %v1172
      %v1174 = vpop.f32.mrb[0].mxu0
      %v1175 = vadd.f32 0.0, %v1174
      %1176 = vmatprep.mubr.bf16.mxu0 0
      %1177 = vmatmul.mubr.bf16.gmra.mrb[0].mxu0 %v853
      %v1178 = vpop.f32.mrb[0].mxu0
      %v1179 = vadd.f32 0.0, %v1178
      %v1180 = vpop.f32.mrb[0].mxu0
      %v1181 = vadd.f32 0.0, %v1180
      %v1182 = vpop.f32.mrb[0].mxu0
      %v1183 = vadd.f32 0.0, %v1182
      %v1184 = vpop.f32.mrb[0].mxu0
      %v1185 = vadd.f32 0.0, %v1184
      %1186 = vmatprep.mubr.bf16.mxu0 0
      %1187 = vmatmul.mubr.bf16.gmra.mrb[0].mxu0 %v854
      %v1188 = vpop.f32.mrb[0].mxu0
      %v1189 = vadd.f32 0.0, %v1188
      %v1190 = vpop.f32.mrb[0].mxu0
      %v1191 = vadd.f32 0.0, %v1190
      %v1192 = vpop.f32.mrb[0].mxu0
      %v1193 = vadd.f32 0.0, %v1192
      %v1194 = vpop.f32.mrb[0].mxu0
      %v1195 = vadd.f32 0.0, %v1194
      %1196 = vmatprep.mubr.bf16.mxu0 0
      %1197 = vmatmul.mubr.bf16.gmra.mrb[0].mxu0 %v855
      %v1198 = vpop.f32.mrb[0].mxu0
      %v1199 = vadd.f32 0.0, %v1198
      %v1200 = vpop.f32.mrb[0].mxu0
      %v1201 = vadd.f32 0.0, %v1200
      %v1202 = vpop.f32.mrb[0].mxu0
      %v1203 = vadd.f32 0.0, %v1202
      %v1204 = vpop.f32.mrb[0].mxu0
      %v1205 = vadd.f32 0.0, %v1204
      %1206 = vmatprep.mubr.bf16.mxu0 0
      %1207 = vmatmul.mubr.bf16.gmra.mrb[0].mxu0 %v856
      %v1208 = vpop.f32.mrb[0].mxu0
      %v1209 = vadd.f32 0.0, %v1208
      %v1210 = vpop.f32.mrb[0].mxu0
      %v1211 = vadd.f32 0.0, %v1210
      %v1212 = vpop.f32.mrb[0].mxu0
      %v1213 = vadd.f32 0.0, %v1212
      %v1214 = vpop.f32.mrb[0].mxu0
      %v1215 = vadd.f32 0.0, %v1214
      %1216 = vmatprep.mubr.bf16.mxu0 0
      %1217 = vmatmul.mubr.bf16.gmra.mrb[0].mxu0 %v857
      %v1218 = vpop.f32.mrb[0].mxu0
      %v1219 = vadd.f32 0.0, %v1218
      %v1220 = vpop.f32.mrb[0].mxu0
      %v1221 = vadd.f32 0.0, %v1220
      %v1222 = vpop.f32.mrb[0].mxu0
      %v1223 = vadd.f32 0.0, %v1222
      %v1224 = vpop.f32.mrb[0].mxu0
      %v1225 = vadd.f32 0.0, %v1224
      %1226 = vdwg.mxu0
      %1227 = vmatprep.subr.bf16.mxu0 %v973
      %1228 = vmatpush1.bf16.msra.mxu0 %v972
      %1229 = vmatprep.subr.bf16.mxu0 %v977
      %1230 = vmatpush1.bf16.msra.mxu0 %v976
      %1231 = vmatprep.subr.bf16.mxu0 %v981
      %1232 = vmatpush1.bf16.msra.mxu0 %v980
      %1233 = vmatprep.subr.bf16.mxu0 %v985
      %1234 = vmatpush1.bf16.msra.mxu0 %v984
      %1235 = vmatprep.subr.bf16.mxu0 %v989
      %1236 = vmatpush1.bf16.msra.mxu0 %v988
      %1237 = vmatprep.subr.bf16.mxu0 %v993
      %1238 = vmatpush1.bf16.msra.mxu0 %v992
      %1239 = vmatprep.subr.bf16.mxu0 %v997
      %1240 = vmatpush1.bf16.msra.mxu0 %v996
      %1241 = vmatprep.subr.bf16.mxu0 %v1001
      %1242 = vmatpush1.bf16.msra.mxu0 %v1000
      %1243 = vmatprep.subr.bf16.mxu0 0
      %1244 = vmatpush1.bf16.msra.mxu0 0
      %1245 = vmatprep.subr.bf16.mxu0 0
      %1246 = vmatpush1.bf16.msra.mxu0 0
      %1247 = vmatprep.subr.bf16.mxu0 0
      %1248 = vmatpush1.bf16.msra.mxu0 0
      %1249 = vmatprep.subr.bf16.mxu0 0
      %1250 = vmatpush1.bf16.msra.mxu0 0
      %1251 = vmatprep.subr.bf16.mxu0 0
      %1252 = vmatpush1.bf16.msra.mxu0 0
      %1253 = vmatprep.subr.bf16.mxu0 0
      %1254 = vmatpush1.bf16.msra.mxu0 0
      %1255 = vmatprep.subr.bf16.mxu0 0
      %1256 = vmatpush1.bf16.msra.mxu0 0
      %1257 = vmatprep.subr.bf16.mxu0 0
      %1258 = vmatpush1.bf16.msra.mxu0 0
      %1259 = vmatprep.mubr.bf16.mxu0 0
      %1260 = vmatmul.mubr.bf16.gmra.mrb[0].mxu0 %v842
      %v1261 = vpop.f32.mrb[0].mxu0
      %v1262 = vadd.f32 0.0, %v1261
      %v1263 = vpop.f32.mrb[0].mxu0
      %v1264 = vadd.f32 0.0, %v1263
      %v1265 = vpop.f32.mrb[0].mxu0
      %v1266 = vadd.f32 0.0, %v1265
      %v1267 = vpop.f32.mrb[0].mxu0
      %v1268 = vadd.f32 0.0, %v1267
      %1269 = vmatprep.mubr.bf16.mxu0 0
      %1270 = vmatmul.mubr.bf16.gmra.mrb[0].mxu0 %v843
      %v1271 = vpop.f32.mrb[0].mxu0
      %v1272 = vadd.f32 0.0, %v1271
      %v1273 = vpop.f32.mrb[0].mxu0
      %v1274 = vadd.f32 0.0, %v1273
      %v1275 = vpop.f32.mrb[0].mxu0
      %v1276 = vadd.f32 0.0, %v1275
      %v1277 = vpop.f32.mrb[0].mxu0
      %v1278 = vadd.f32 0.0, %v1277
      %1279 = vmatprep.mubr.bf16.mxu0 0
      %1280 = vmatmul.mubr.bf16.gmra.mrb[0].mxu0 %v844
      %v1281 = vpop.f32.mrb[0].mxu0
      %v1282 = vadd.f32 0.0, %v1281
      %v1283 = vpop.f32.mrb[0].mxu0
      %v1284 = vadd.f32 0.0, %v1283
      %v1285 = vpop.f32.mrb[0].mxu0
      %v1286 = vadd.f32 0.0, %v1285
      %v1287 = vpop.f32.mrb[0].mxu0
      %v1288 = vadd.f32 0.0, %v1287
      %1289 = vmatprep.mubr.bf16.mxu0 0
      %1290 = vmatmul.mubr.bf16.gmra.mrb[0].mxu0 %v845
      %v1291 = vpop.f32.mrb[0].mxu0
      %v1292 = vadd.f32 0.0, %v1291
      %v1293 = vpop.f32.mrb[0].mxu0
      %v1294 = vadd.f32 0.0, %v1293
      %v1295 = vpop.f32.mrb[0].mxu0
      %v1296 = vadd.f32 0.0, %v1295
      %v1297 = vpop.f32.mrb[0].mxu0
      %v1298 = vadd.f32 0.0, %v1297
      %1299 = vmatprep.mubr.bf16.mxu0 0
      %1300 = vmatmul.mubr.bf16.gmra.mrb[0].mxu0 %v846
      %v1301 = vpop.f32.mrb[0].mxu0
      %v1302 = vadd.f32 0.0, %v1301
      %v1303 = vpop.f32.mrb[0].mxu0
      %v1304 = vadd.f32 0.0, %v1303
      %v1305 = vpop.f32.mrb[0].mxu0
      %v1306 = vadd.f32 0.0, %v1305
      %v1307 = vpop.f32.mrb[0].mxu0
      %v1308 = vadd.f32 0.0, %v1307
      %1309 = vmatprep.mubr.bf16.mxu0 0
      %1310 = vmatmul.mubr.bf16.gmra.mrb[0].mxu0 %v847
      %v1311 = vpop.f32.mrb[0].mxu0
      %v1312 = vadd.f32 0.0, %v1311
      %v1313 = vpop.f32.mrb[0].mxu0
      %v1314 = vadd.f32 0.0, %v1313
      %v1315 = vpop.f32.mrb[0].mxu0
      %v1316 = vadd.f32 0.0, %v1315
      %v1317 = vpop.f32.mrb[0].mxu0
      %v1318 = vadd.f32 0.0, %v1317
      %1319 = vmatprep.mubr.bf16.mxu0 0
      %1320 = vmatmul.mubr.bf16.gmra.mrb[0].mxu0 %v848
      %v1321 = vpop.f32.mrb[0].mxu0
      %v1322 = vadd.f32 0.0, %v1321
      %v1323 = vpop.f32.mrb[0].mxu0
      %v1324 = vadd.f32 0.0, %v1323
      %v1325 = vpop.f32.mrb[0].mxu0
      %v1326 = vadd.f32 0.0, %v1325
      %v1327 = vpop.f32.mrb[0].mxu0
      %v1328 = vadd.f32 0.0, %v1327
      %1329 = vmatprep.mubr.bf16.mxu0 0
      %1330 = vmatmul.mubr.bf16.gmra.mrb[0].mxu0 %v849
      %v1331 = vpop.f32.mrb[0].mxu0
      %v1332 = vadd.f32 0.0, %v1331
      %v1333 = vpop.f32.mrb[0].mxu0
      %v1334 = vadd.f32 0.0, %v1333
      %v1335 = vpop.f32.mrb[0].mxu0
      %v1336 = vadd.f32 0.0, %v1335
      %v1337 = vpop.f32.mrb[0].mxu0
      %v1338 = vadd.f32 0.0, %v1337
      %1339 = vmatprep.mubr.bf16.mxu0 0
      %1340 = vmatmul.mubr.bf16.gmra.mrb[0].mxu0 %v850
      %v1341 = vpop.f32.mrb[0].mxu0
      %v1342 = vadd.f32 0.0, %v1341
      %v1343 = vpop.f32.mrb[0].mxu0
      %v1344 = vadd.f32 0.0, %v1343
      %v1345 = vpop.f32.mrb[0].mxu0
      %v1346 = vadd.f32 0.0, %v1345
      %v1347 = vpop.f32.mrb[0].mxu0
      %v1348 = vadd.f32 0.0, %v1347
      %1349 = vmatprep.mubr.bf16.mxu0 0
      %1350 = vmatmul.mubr.bf16.gmra.mrb[0].mxu0 %v851
      %v1351 = vpop.f32.mrb[0].mxu0
      %v1352 = vadd.f32 0.0, %v1351
      %v1353 = vpop.f32.mrb[0].mxu0
      %v1354 = vadd.f32 0.0, %v1353
      %v1355 = vpop.f32.mrb[0].mxu0
      %v1356 = vadd.f32 0.0, %v1355
      %v1357 = vpop.f32.mrb[0].mxu0
      %v1358 = vadd.f32 0.0, %v1357
      %1359 = vmatprep.mubr.bf16.mxu0 0
      %1360 = vmatmul.mubr.bf16.gmra.mrb[0].mxu0 %v852
      %v1361 = vpop.f32.mrb[0].mxu0
      %v1362 = vadd.f32 0.0, %v1361
      %v1363 = vpop.f32.mrb[0].mxu0
      %v1364 = vadd.f32 0.0, %v1363
      %v1365 = vpop.f32.mrb[0].mxu0
      %v1366 = vadd.f32 0.0, %v1365
      %v1367 = vpop.f32.mrb[0].mxu0
      %v1368 = vadd.f32 0.0, %v1367
      %1369 = vmatprep.mubr.bf16.mxu0 0
      %1370 = vmatmul.mubr.bf16.gmra.mrb[0].mxu0 %v853
      %v1371 = vpop.f32.mrb[0].mxu0
      %v1372 = vadd.f32 0.0, %v1371
      %v1373 = vpop.f32.mrb[0].mxu0
      %v1374 = vadd.f32 0.0, %v1373
      %v1375 = vpop.f32.mrb[0].mxu0
      %v1376 = vadd.f32 0.0, %v1375
      %v1377 = vpop.f32.mrb[0].mxu0
      %v1378 = vadd.f32 0.0, %v1377
      %1379 = vmatprep.mubr.bf16.mxu0 0
      %1380 = vmatmul.mubr.bf16.gmra.mrb[0].mxu0 %v854
      %v1381 = vpop.f32.mrb[0].mxu0
      %v1382 = vadd.f32 0.0, %v1381
      %v1383 = vpop.f32.mrb[0].mxu0
      %v1384 = vadd.f32 0.0, %v1383
      %v1385 = vpop.f32.mrb[0].mxu0
      %v1386 = vadd.f32 0.0, %v1385
      %v1387 = vpop.f32.mrb[0].mxu0
      %v1388 = vadd.f32 0.0, %v1387
      %1389 = vmatprep.mubr.bf16.mxu0 0
      %1390 = vmatmul.mubr.bf16.gmra.mrb[0].mxu0 %v855
      %v1391 = vpop.f32.mrb[0].mxu0
      %v1392 = vadd.f32 0.0, %v1391
      %v1393 = vpop.f32.mrb[0].mxu0
      %v1394 = vadd.f32 0.0, %v1393
      %v1395 = vpop.f32.mrb[0].mxu0
      %v1396 = vadd.f32 0.0, %v1395
      %v1397 = vpop.f32.mrb[0].mxu0
      %v1398 = vadd.f32 0.0, %v1397
      %1399 = vmatprep.mubr.bf16.mxu0 0
      %1400 = vmatmul.mubr.bf16.gmra.mrb[0].mxu0 %v856
      %v1401 = vpop.f32.mrb[0].mxu0
      %v1402 = vadd.f32 0.0, %v1401
      %v1403 = vpop.f32.mrb[0].mxu0
      %v1404 = vadd.f32 0.0, %v1403
      %v1405 = vpop.f32.mrb[0].mxu0
      %v1406 = vadd.f32 0.0, %v1405
      %v1407 = vpop.f32.mrb[0].mxu0
      %v1408 = vadd.f32 0.0, %v1407
      %1409 = vmatprep.mubr.bf16.mxu0 0
      %1410 = vmatmul.mubr.bf16.gmra.mrb[0].mxu0 %v857
      %v1411 = vpop.f32.mrb[0].mxu0
      %v1412 = vadd.f32 0.0, %v1411
      %v1413 = vpop.f32.mrb[0].mxu0
      %v1414 = vadd.f32 0.0, %v1413
      %v1415 = vpop.f32.mrb[0].mxu0
      %v1416 = vadd.f32 0.0, %v1415
      %v1417 = vpop.f32.mrb[0].mxu0
      %v1418 = vadd.f32 0.0, %v1417
      %1419 = vdwg.mxu0
      %v1548 = vunpack.c.l.b16 %v362
      %v1549 = vunpack.c.h.b16 %v362
      %v1550 = vunpack.c.l.b16 %v363
      %v1551 = vunpack.c.h.b16 %v363
      %v1552 = vunpack.c.l.b16 %v364
      %v1553 = vunpack.c.h.b16 %v364
      %v1554 = vunpack.c.l.b16 %v365
      %v1555 = vunpack.c.l.b16 %v366
      %v1556 = vunpack.c.h.b16 %v366
      %v1557 = vunpack.c.l.b16 %v367
      %v1558 = vunpack.c.h.b16 %v367
      %v1559 = vunpack.c.l.b16 %v368
      %v1560 = vunpack.c.h.b16 %v368
      %v1561 = vunpack.c.l.b16 %v369
      %v1562 = vunpack.c.l.b16 %v370
      %v1563 = vunpack.c.h.b16 %v370
      %v1564 = vunpack.c.l.b16 %v371
      %v1565 = vunpack.c.h.b16 %v371
      %v1566 = vunpack.c.l.b16 %v372
      %v1567 = vunpack.c.h.b16 %v372
      %v1568 = vunpack.c.l.b16 %v373
      %v1569 = vunpack.c.l.b16 %v374
      %v1570 = vunpack.c.h.b16 %v374
      %v1571 = vunpack.c.l.b16 %v375
      %v1572 = vunpack.c.h.b16 %v375
      %v1573 = vunpack.c.l.b16 %v376
      %v1574 = vunpack.c.h.b16 %v376
      %v1575 = vunpack.c.l.b16 %v377
      %v1576 = vunpack.c.l.b16 %v378
      %v1577 = vunpack.c.h.b16 %v378
      %v1578 = vunpack.c.l.b16 %v379
      %v1579 = vunpack.c.h.b16 %v379
      %v1580 = vunpack.c.l.b16 %v380
      %v1581 = vunpack.c.h.b16 %v380
      %v1582 = vunpack.c.l.b16 %v381
      %v1583 = vunpack.c.l.b16 %v382
      %v1584 = vunpack.c.h.b16 %v382
      %v1585 = vunpack.c.l.b16 %v383
      %v1586 = vunpack.c.h.b16 %v383
      %v1587 = vunpack.c.l.b16 %v384
      %v1588 = vunpack.c.h.b16 %v384
      %v1589 = vunpack.c.l.b16 %v385
      %v1590 = vunpack.c.l.b16 %v386
      %v1591 = vunpack.c.h.b16 %v386
      %v1592 = vunpack.c.l.b16 %v387
      %v1593 = vunpack.c.h.b16 %v387
      %v1594 = vunpack.c.l.b16 %v388
      %v1595 = vunpack.c.h.b16 %v388
      %v1596 = vunpack.c.l.b16 %v389
      %v1597 = vunpack.c.l.b16 %v390
      %v1598 = vunpack.c.h.b16 %v390
      %v1599 = vunpack.c.l.b16 %v391
      %v1600 = vunpack.c.h.b16 %v391
      %v1601 = vunpack.c.l.b16 %v392
      %v1602 = vunpack.c.h.b16 %v392
      %v1603 = vunpack.c.l.b16 %v393
      %v1604 = vunpack.c.l.b16 %v394
      %v1605 = vunpack.c.h.b16 %v394
      %v1606 = vunpack.c.l.b16 %v395
      %v1607 = vunpack.c.h.b16 %v395
      %v1608 = vunpack.c.l.b16 %v396
      %v1609 = vunpack.c.h.b16 %v396
      %v1610 = vunpack.c.l.b16 %v397
      %v1611 = vunpack.c.l.b16 %v398
      %v1612 = vunpack.c.h.b16 %v398
      %v1613 = vunpack.c.l.b16 %v399
      %v1614 = vunpack.c.h.b16 %v399
      %v1615 = vunpack.c.l.b16 %v400
      %v1616 = vunpack.c.h.b16 %v400
      %v1617 = vunpack.c.l.b16 %v401
      %v1618 = vunpack.c.l.b16 %v402
      %v1619 = vunpack.c.h.b16 %v402
      %v1620 = vunpack.c.l.b16 %v403
      %v1621 = vunpack.c.h.b16 %v403
      %v1622 = vunpack.c.l.b16 %v404
      %v1623 = vunpack.c.h.b16 %v404
      %v1624 = vunpack.c.l.b16 %v405
      %v1625 = vunpack.c.l.b16 %v406
      %v1626 = vunpack.c.h.b16 %v406
      %v1627 = vunpack.c.l.b16 %v407
      %v1628 = vunpack.c.h.b16 %v407
      %v1629 = vunpack.c.l.b16 %v408
      %v1630 = vunpack.c.h.b16 %v408
      %v1631 = vunpack.c.l.b16 %v409
      %v1632 = vunpack.c.l.b16 %v410
      %v1633 = vunpack.c.h.b16 %v410
      %v1634 = vunpack.c.l.b16 %v411
      %v1635 = vunpack.c.h.b16 %v411
      %v1636 = vunpack.c.l.b16 %v412
      %v1637 = vunpack.c.h.b16 %v412
      %v1638 = vunpack.c.l.b16 %v413
      %v1639 = vunpack.c.l.b16 %v414
      %v1640 = vunpack.c.h.b16 %v414
      %v1641 = vunpack.c.l.b16 %v415
      %v1642 = vunpack.c.h.b16 %v415
      %v1643 = vunpack.c.l.b16 %v416
      %v1644 = vunpack.c.h.b16 %v416
      %v1645 = vunpack.c.l.b16 %v417
      %v1646 = vunpack.c.l.b16 %v418
      %v1647 = vunpack.c.h.b16 %v418
      %v1648 = vunpack.c.l.b16 %v419
      %v1649 = vunpack.c.h.b16 %v419
      %v1650 = vunpack.c.l.b16 %v420
      %v1651 = vunpack.c.h.b16 %v420
      %v1652 = vunpack.c.l.b16 %v421
      %v1653 = vunpack.c.l.b16 %v422
      %v1654 = vunpack.c.h.b16 %v422
      %v1655 = vunpack.c.l.b16 %v423
      %v1656 = vunpack.c.h.b16 %v423
      %v1657 = vunpack.c.l.b16 %v424
      %v1658 = vunpack.c.h.b16 %v424
      %v1659 = vunpack.c.l.b16 %v425
      %v1660 = vunpack.c.l.b16 %v426
      %v1661 = vunpack.c.h.b16 %v426
      %v1662 = vunpack.c.l.b16 %v427
      %v1663 = vunpack.c.h.b16 %v427
      %v1664 = vunpack.c.l.b16 %v428
      %v1665 = vunpack.c.h.b16 %v428
      %v1666 = vunpack.c.l.b16 %v429
      %v1667 = vunpack.c.l.b16 %v430
      %v1668 = vunpack.c.h.b16 %v430
      %v1669 = vunpack.c.l.b16 %v431
      %v1670 = vunpack.c.h.b16 %v431
      %v1671 = vunpack.c.l.b16 %v432
      %v1672 = vunpack.c.h.b16 %v432
      %v1673 = vunpack.c.l.b16 %v433
      %v1674 = vunpack.c.l.b16 %v434
      %v1675 = vunpack.c.h.b16 %v434
      %v1676 = vunpack.c.l.b16 %v435
      %v1677 = vunpack.c.h.b16 %v435
      %v1678 = vunpack.c.l.b16 %v436
      %v1679 = vunpack.c.h.b16 %v436
      %v1680 = vunpack.c.l.b16 %v437
      %v1681 = vunpack.c.l.b16 %v438
      %v1682 = vunpack.c.h.b16 %v438
      %v1683 = vunpack.c.l.b16 %v439
      %v1684 = vunpack.c.h.b16 %v439
      %v1685 = vunpack.c.l.b16 %v440
      %v1686 = vunpack.c.h.b16 %v440
      %v1687 = vunpack.c.l.b16 %v441
      %v1688 = vunpack.c.l.b16 %v442
      %v1689 = vunpack.c.h.b16 %v442
      %v1690 = vunpack.c.l.b16 %v443
      %v1691 = vunpack.c.h.b16 %v443
      %v1692 = vunpack.c.l.b16 %v444
      %v1693 = vunpack.c.h.b16 %v444
      %v1694 = vunpack.c.l.b16 %v445
      %v1695 = vunpack.c.l.b16 %v446
      %v1696 = vunpack.c.h.b16 %v446
      %v1697 = vunpack.c.l.b16 %v447
      %v1698 = vunpack.c.h.b16 %v447
      %v1699 = vunpack.c.l.b16 %v448
      %v1700 = vunpack.c.h.b16 %v448
      %v1701 = vunpack.c.l.b16 %v449
      %v1702 = vunpack.c.l.b16 %v450
      %v1703 = vunpack.c.h.b16 %v450
      %v1704 = vunpack.c.l.b16 %v451
      %v1705 = vunpack.c.h.b16 %v451
      %v1706 = vunpack.c.l.b16 %v452
      %v1707 = vunpack.c.h.b16 %v452
      %v1708 = vunpack.c.l.b16 %v453
      %v1709 = vunpack.c.l.b16 %v454
      %v1710 = vunpack.c.h.b16 %v454
      %v1711 = vunpack.c.l.b16 %v455
      %v1712 = vunpack.c.h.b16 %v455
      %v1713 = vunpack.c.l.b16 %v456
      %v1714 = vunpack.c.h.b16 %v456
      %v1715 = vunpack.c.l.b16 %v457
      %v1716 = vunpack.c.l.b16 %v458
      %v1717 = vunpack.c.h.b16 %v458
      %v1718 = vunpack.c.l.b16 %v459
      %v1719 = vunpack.c.h.b16 %v459
      %v1720 = vunpack.c.l.b16 %v460
      %v1721 = vunpack.c.h.b16 %v460
      %v1722 = vunpack.c.l.b16 %v461
      %v1723 = vunpack.c.l.b16 %v462
      %v1724 = vunpack.c.h.b16 %v462
      %v1725 = vunpack.c.l.b16 %v463
      %v1726 = vunpack.c.h.b16 %v463
      %v1727 = vunpack.c.l.b16 %v464
      %v1728 = vunpack.c.h.b16 %v464
      %v1729 = vunpack.c.l.b16 %v465
      %v1730 = vunpack.c.l.b16 %v466
      %v1731 = vunpack.c.h.b16 %v466
      %v1732 = vunpack.c.l.b16 %v467
      %v1733 = vunpack.c.h.b16 %v467
      %v1734 = vunpack.c.l.b16 %v468
      %v1735 = vunpack.c.h.b16 %v468
      %v1736 = vunpack.c.l.b16 %v469
      %v1737 = vunpack.c.l.b16 %v470
      %v1738 = vunpack.c.h.b16 %v470
      %v1739 = vunpack.c.l.b16 %v471
      %v1740 = vunpack.c.h.b16 %v471
      %v1741 = vunpack.c.l.b16 %v472
      %v1742 = vunpack.c.h.b16 %v472
      %v1743 = vunpack.c.l.b16 %v473
      %v1744 = vunpack.c.l.b16 %v474
      %v1745 = vunpack.c.h.b16 %v474
      %v1746 = vunpack.c.l.b16 %v475
      %v1747 = vunpack.c.h.b16 %v475
      %v1748 = vunpack.c.l.b16 %v476
      %v1749 = vunpack.c.h.b16 %v476
      %v1750 = vunpack.c.l.b16 %v477
      %v1751 = vunpack.c.l.b16 %v478
      %v1752 = vunpack.c.h.b16 %v478
      %v1753 = vunpack.c.l.b16 %v479
      %v1754 = vunpack.c.h.b16 %v479
      %v1755 = vunpack.c.l.b16 %v480
      %v1756 = vunpack.c.h.b16 %v480
      %v1757 = vunpack.c.l.b16 %v481
      %v1758 = vunpack.c.l.b16 %v482
      %v1759 = vunpack.c.h.b16 %v482
      %v1760 = vunpack.c.l.b16 %v483
      %v1761 = vunpack.c.h.b16 %v483
      %v1762 = vunpack.c.l.b16 %v484
      %v1763 = vunpack.c.h.b16 %v484
      %v1764 = vunpack.c.l.b16 %v485
      %v1765 = vunpack.c.l.b16 %v486
      %v1766 = vunpack.c.h.b16 %v486
      %v1767 = vunpack.c.l.b16 %v487
      %v1768 = vunpack.c.h.b16 %v487
      %v1769 = vunpack.c.l.b16 %v488
      %v1770 = vunpack.c.h.b16 %v488
      %v1771 = vunpack.c.l.b16 %v489
      %v1772 = vpack.c.b16 %v1555, %v1548
      %v1773 = vpack.c.b16 %v1556, %v1549
      %v1774 = vpack.c.b16 %v1557, %v1550
      %v1775 = vpack.c.b16 %v1558, %v1551
      %v1776 = vpack.c.b16 %v1559, %v1552
      %v1777 = vpack.c.b16 %v1560, %v1553
      %v1778 = vpack.c.b16 %v1561, %v1554
      %v1779 = vpack.c.b16 %v1569, %v1562
      %v1780 = vpack.c.b16 %v1570, %v1563
      %v1781 = vpack.c.b16 %v1571, %v1564
      %v1782 = vpack.c.b16 %v1572, %v1565
      %v1783 = vpack.c.b16 %v1573, %v1566
      %v1784 = vpack.c.b16 %v1574, %v1567
      %v1785 = vpack.c.b16 %v1575, %v1568
      %v1786 = vpack.c.b16 %v1583, %v1576
      %v1787 = vpack.c.b16 %v1584, %v1577
      %v1788 = vpack.c.b16 %v1585, %v1578
      %v1789 = vpack.c.b16 %v1586, %v1579
      %v1790 = vpack.c.b16 %v1587, %v1580
      %v1791 = vpack.c.b16 %v1588, %v1581
      %v1792 = vpack.c.b16 %v1589, %v1582
      %v1793 = vpack.c.b16 %v1597, %v1590
      %v1794 = vpack.c.b16 %v1598, %v1591
      %v1795 = vpack.c.b16 %v1599, %v1592
      %v1796 = vpack.c.b16 %v1600, %v1593
      %v1797 = vpack.c.b16 %v1601, %v1594
      %v1798 = vpack.c.b16 %v1602, %v1595
      %v1799 = vpack.c.b16 %v1603, %v1596
      %v1800 = vpack.c.b16 %v1611, %v1604
      %v1801 = vpack.c.b16 %v1612, %v1605
      %v1802 = vpack.c.b16 %v1613, %v1606
      %v1803 = vpack.c.b16 %v1614, %v1607
      %v1804 = vpack.c.b16 %v1615, %v1608
      %v1805 = vpack.c.b16 %v1616, %v1609
      %v1806 = vpack.c.b16 %v1617, %v1610
      %v1807 = vpack.c.b16 %v1625, %v1618
      %v1808 = vpack.c.b16 %v1626, %v1619
      %v1809 = vpack.c.b16 %v1627, %v1620
      %v1810 = vpack.c.b16 %v1628, %v1621
      %v1811 = vpack.c.b16 %v1629, %v1622
      %v1812 = vpack.c.b16 %v1630, %v1623
      %v1813 = vpack.c.b16 %v1631, %v1624
      %v1814 = vpack.c.b16 %v1639, %v1632
      %v1815 = vpack.c.b16 %v1640, %v1633
      %v1816 = vpack.c.b16 %v1641, %v1634
      %v1817 = vpack.c.b16 %v1642, %v1635
      %v1818 = vpack.c.b16 %v1643, %v1636
      %v1819 = vpack.c.b16 %v1644, %v1637
      %v1820 = vpack.c.b16 %v1645, %v1638
      %v1821 = vpack.c.b16 %v1653, %v1646
      %v1822 = vpack.c.b16 %v1654, %v1647
      %v1823 = vpack.c.b16 %v1655, %v1648
      %v1824 = vpack.c.b16 %v1656, %v1649
      %v1825 = vpack.c.b16 %v1657, %v1650
      %v1826 = vpack.c.b16 %v1658, %v1651
      %v1827 = vpack.c.b16 %v1659, %v1652
      %v1828 = vpack.c.b16 %v1667, %v1660
      %v1829 = vpack.c.b16 %v1668, %v1661
      %v1830 = vpack.c.b16 %v1669, %v1662
      %v1831 = vpack.c.b16 %v1670, %v1663
      %v1832 = vpack.c.b16 %v1671, %v1664
      %v1833 = vpack.c.b16 %v1672, %v1665
      %v1834 = vpack.c.b16 %v1673, %v1666
      %v1835 = vpack.c.b16 %v1681, %v1674
      %v1836 = vpack.c.b16 %v1682, %v1675
      %v1837 = vpack.c.b16 %v1683, %v1676
      %v1838 = vpack.c.b16 %v1684, %v1677
      %v1839 = vpack.c.b16 %v1685, %v1678
      %v1840 = vpack.c.b16 %v1686, %v1679
      %v1841 = vpack.c.b16 %v1687, %v1680
      %v1842 = vpack.c.b16 %v1695, %v1688
      %v1843 = vpack.c.b16 %v1696, %v1689
      %v1844 = vpack.c.b16 %v1697, %v1690
      %v1845 = vpack.c.b16 %v1698, %v1691
      %v1846 = vpack.c.b16 %v1699, %v1692
      %v1847 = vpack.c.b16 %v1700, %v1693
      %v1848 = vpack.c.b16 %v1701, %v1694
      %v1849 = vpack.c.b16 %v1709, %v1702
      %v1850 = vpack.c.b16 %v1710, %v1703
      %v1851 = vpack.c.b16 %v1711, %v1704
      %v1852 = vpack.c.b16 %v1712, %v1705
      %v1853 = vpack.c.b16 %v1713, %v1706
      %v1854 = vpack.c.b16 %v1714, %v1707
      %v1855 = vpack.c.b16 %v1715, %v1708
      %v1856 = vpack.c.b16 %v1723, %v1716
      %v1857 = vpack.c.b16 %v1724, %v1717
      %v1858 = vpack.c.b16 %v1725, %v1718
      %v1859 = vpack.c.b16 %v1726, %v1719
      %v1860 = vpack.c.b16 %v1727, %v1720
      %v1861 = vpack.c.b16 %v1728, %v1721
      %v1862 = vpack.c.b16 %v1729, %v1722
      %v1863 = vpack.c.b16 %v1737, %v1730
      %v1864 = vpack.c.b16 %v1738, %v1731
      %v1865 = vpack.c.b16 %v1739, %v1732
      %v1866 = vpack.c.b16 %v1740, %v1733
      %v1867 = vpack.c.b16 %v1741, %v1734
      %v1868 = vpack.c.b16 %v1742, %v1735
      %v1869 = vpack.c.b16 %v1743, %v1736
      %v1870 = vpack.c.b16 %v1751, %v1744
      %v1871 = vpack.c.b16 %v1752, %v1745
      %v1872 = vpack.c.b16 %v1753, %v1746
      %v1873 = vpack.c.b16 %v1754, %v1747
      %v1874 = vpack.c.b16 %v1755, %v1748
      %v1875 = vpack.c.b16 %v1756, %v1749
      %v1876 = vpack.c.b16 %v1757, %v1750
      %v1877 = vpack.c.b16 %v1765, %v1758
      %v1878 = vpack.c.b16 %v1766, %v1759
      %v1879 = vpack.c.b16 %v1767, %v1760
      %v1880 = vpack.c.b16 %v1768, %v1761
      %v1881 = vpack.c.b16 %v1769, %v1762
      %v1882 = vpack.c.b16 %v1770, %v1763
      %v1883 = vpack.c.b16 %v1771, %v1764
      %v2220 = vunpack.c.l.b16 %v490
      %v2221 = vunpack.c.h.b16 %v490
      %v2222 = vunpack.c.l.b16 %v491
      %v2223 = vunpack.c.h.b16 %v491
      %v2224 = vunpack.c.l.b16 %v492
      %v2225 = vunpack.c.h.b16 %v492
      %v2226 = vunpack.c.l.b16 %v493
      %v2227 = vunpack.c.h.b16 %v493
      %v2228 = vunpack.c.l.b16 %v494
      %v2229 = vunpack.c.h.b16 %v494
      %v2230 = vunpack.c.l.b16 %v495
      %v2231 = vunpack.c.h.b16 %v495
      %v2232 = vunpack.c.l.b16 %v496
      %v2233 = vunpack.c.h.b16 %v496
      %v2234 = vunpack.c.l.b16 %v497
      %v2235 = vunpack.c.h.b16 %v497
      %v2236 = vunpack.c.l.b16 %v498
      %v2237 = vunpack.c.h.b16 %v498
      %v2238 = vunpack.c.l.b16 %v499
      %v2239 = vunpack.c.h.b16 %v499
      %v2240 = vunpack.c.l.b16 %v500
      %v2241 = vunpack.c.h.b16 %v500
      %v2242 = vunpack.c.l.b16 %v501
      %v2243 = vunpack.c.h.b16 %v501
      %v2244 = vunpack.c.l.b16 %v502
      %v2245 = vunpack.c.h.b16 %v502
      %v2246 = vunpack.c.l.b16 %v503
      %v2247 = vunpack.c.h.b16 %v503
      %v2248 = vunpack.c.l.b16 %v504
      %v2249 = vunpack.c.h.b16 %v504
      %v2250 = vunpack.c.l.b16 %v505
      %v2251 = vunpack.c.h.b16 %v505
      %v2252 = vunpack.c.l.b16 %v506
      %v2253 = vunpack.c.h.b16 %v506
      %v2254 = vunpack.c.l.b16 %v507
      %v2255 = vunpack.c.h.b16 %v507
      %v2256 = vunpack.c.l.b16 %v508
      %v2257 = vunpack.c.h.b16 %v508
      %v2258 = vunpack.c.l.b16 %v509
      %v2259 = vunpack.c.h.b16 %v509
      %v2260 = vunpack.c.l.b16 %v510
      %v2261 = vunpack.c.h.b16 %v510
      %v2262 = vunpack.c.l.b16 %v511
      %v2263 = vunpack.c.h.b16 %v511
      %v2264 = vunpack.c.l.b16 %v512
      %v2265 = vunpack.c.h.b16 %v512
      %v2266 = vunpack.c.l.b16 %v513
      %v2267 = vunpack.c.h.b16 %v513
      %v2268 = vunpack.c.l.b16 %v514
      %v2269 = vunpack.c.h.b16 %v514
      %v2270 = vunpack.c.l.b16 %v515
      %v2271 = vunpack.c.h.b16 %v515
      %v2272 = vunpack.c.l.b16 %v516
      %v2273 = vunpack.c.h.b16 %v516
      %v2274 = vunpack.c.l.b16 %v517
      %v2275 = vunpack.c.h.b16 %v517
      %v2276 = vunpack.c.l.b16 %v518
      %v2277 = vunpack.c.h.b16 %v518
      %v2278 = vunpack.c.l.b16 %v519
      %v2279 = vunpack.c.h.b16 %v519
      %v2280 = vunpack.c.l.b16 %v520
      %v2281 = vunpack.c.h.b16 %v520
      %v2282 = vunpack.c.l.b16 %v521
      %v2283 = vunpack.c.h.b16 %v521
      %v2284 = vunpack.c.l.b16 %v522
      %v2285 = vunpack.c.h.b16 %v522
      %v2286 = vunpack.c.l.b16 %v523
      %v2287 = vunpack.c.h.b16 %v523
      %v2288 = vunpack.c.l.b16 %v524
      %v2289 = vunpack.c.h.b16 %v524
      %v2290 = vunpack.c.l.b16 %v525
      %v2291 = vunpack.c.h.b16 %v525
      %v2292 = vunpack.c.l.b16 %v526
      %v2293 = vunpack.c.h.b16 %v526
      %v2294 = vunpack.c.l.b16 %v527
      %v2295 = vunpack.c.h.b16 %v527
      %v2296 = vunpack.c.l.b16 %v528
      %v2297 = vunpack.c.h.b16 %v528
      %v2298 = vunpack.c.l.b16 %v529
      %v2299 = vunpack.c.h.b16 %v529
      %v2300 = vunpack.c.l.b16 %v530
      %v2301 = vunpack.c.h.b16 %v530
      %v2302 = vunpack.c.l.b16 %v531
      %v2303 = vunpack.c.h.b16 %v531
      %v2304 = vunpack.c.l.b16 %v532
      %v2305 = vunpack.c.h.b16 %v532
      %v2306 = vunpack.c.l.b16 %v533
      %v2307 = vunpack.c.h.b16 %v533
      %v2308 = vunpack.c.l.b16 %v534
      %v2309 = vunpack.c.h.b16 %v534
      %v2310 = vunpack.c.l.b16 %v535
      %v2311 = vunpack.c.h.b16 %v535
      %v2312 = vunpack.c.l.b16 %v536
      %v2313 = vunpack.c.h.b16 %v536
      %v2314 = vunpack.c.l.b16 %v537
      %v2315 = vunpack.c.h.b16 %v537
      %v2316 = vunpack.c.l.b16 %v538
      %v2317 = vunpack.c.h.b16 %v538
      %v2318 = vunpack.c.l.b16 %v539
      %v2319 = vunpack.c.h.b16 %v539
      %v2320 = vunpack.c.l.b16 %v540
      %v2321 = vunpack.c.h.b16 %v540
      %v2322 = vunpack.c.l.b16 %v541
      %v2323 = vunpack.c.h.b16 %v541
      %v2324 = vunpack.c.l.b16 %v542
      %v2325 = vunpack.c.h.b16 %v542
      %v2326 = vunpack.c.l.b16 %v543
      %v2327 = vunpack.c.h.b16 %v543
      %v2328 = vunpack.c.l.b16 %v544
      %v2329 = vunpack.c.h.b16 %v544
      %v2330 = vunpack.c.l.b16 %v545
      %v2331 = vunpack.c.h.b16 %v545
      %v2332 = vunpack.c.l.b16 %v546
      %v2333 = vunpack.c.h.b16 %v546
      %v2334 = vunpack.c.l.b16 %v547
      %v2335 = vunpack.c.h.b16 %v547
      %v2336 = vunpack.c.l.b16 %v548
      %v2337 = vunpack.c.h.b16 %v548
      %v2338 = vunpack.c.l.b16 %v549
      %v2339 = vunpack.c.h.b16 %v549
      %v2340 = vunpack.c.l.b16 %v550
      %v2341 = vunpack.c.h.b16 %v550
      %v2342 = vunpack.c.l.b16 %v551
      %v2343 = vunpack.c.h.b16 %v551
      %v2344 = vunpack.c.l.b16 %v552
      %v2345 = vunpack.c.h.b16 %v552
      %v2346 = vunpack.c.l.b16 %v553
      %v2347 = vunpack.c.h.b16 %v553
      %v2348 = vunpack.c.l.b16 %v554
      %v2349 = vunpack.c.h.b16 %v554
      %v2350 = vunpack.c.l.b16 %v555
      %v2351 = vunpack.c.h.b16 %v555
      %v2352 = vunpack.c.l.b16 %v556
      %v2353 = vunpack.c.h.b16 %v556
      %v2354 = vunpack.c.l.b16 %v557
      %v2355 = vunpack.c.h.b16 %v557
      %v2356 = vunpack.c.l.b16 %v558
      %v2357 = vunpack.c.h.b16 %v558
      %v2358 = vunpack.c.l.b16 %v559
      %v2359 = vunpack.c.h.b16 %v559
      %v2360 = vunpack.c.l.b16 %v560
      %v2361 = vunpack.c.h.b16 %v560
      %v2362 = vunpack.c.l.b16 %v561
      %v2363 = vunpack.c.h.b16 %v561
      %v2364 = vunpack.c.l.b16 %v562
      %v2365 = vunpack.c.h.b16 %v562
      %v2366 = vunpack.c.l.b16 %v563
      %v2367 = vunpack.c.h.b16 %v563
      %v2368 = vunpack.c.l.b16 %v564
      %v2369 = vunpack.c.h.b16 %v564
      %v2370 = vunpack.c.l.b16 %v565
      %v2371 = vunpack.c.h.b16 %v565
      %v2372 = vunpack.c.l.b16 %v566
      %v2373 = vunpack.c.h.b16 %v566
      %v2374 = vunpack.c.l.b16 %v567
      %v2375 = vunpack.c.h.b16 %v567
      %v2376 = vunpack.c.l.b16 %v568
      %v2377 = vunpack.c.h.b16 %v568
      %v2378 = vunpack.c.l.b16 %v569
      %v2379 = vunpack.c.h.b16 %v569
      %v2380 = vunpack.c.l.b16 %v570
      %v2381 = vunpack.c.h.b16 %v570
      %v2382 = vunpack.c.l.b16 %v571
      %v2383 = vunpack.c.h.b16 %v571
      %v2384 = vunpack.c.l.b16 %v572
      %v2385 = vunpack.c.h.b16 %v572
      %v2386 = vunpack.c.l.b16 %v573
      %v2387 = vunpack.c.h.b16 %v573
      %v2388 = vunpack.c.l.b16 %v574
      %v2389 = vunpack.c.h.b16 %v574
      %v2390 = vunpack.c.l.b16 %v575
      %v2391 = vunpack.c.h.b16 %v575
      %v2392 = vunpack.c.l.b16 %v576
      %v2393 = vunpack.c.h.b16 %v576
      %v2394 = vunpack.c.l.b16 %v577
      %v2395 = vunpack.c.h.b16 %v577
      %v2396 = vunpack.c.l.b16 %v578
      %v2397 = vunpack.c.h.b16 %v578
      %v2398 = vunpack.c.l.b16 %v579
      %v2399 = vunpack.c.h.b16 %v579
      %v2400 = vunpack.c.l.b16 %v580
      %v2401 = vunpack.c.h.b16 %v580
      %v2402 = vunpack.c.l.b16 %v581
      %v2403 = vunpack.c.h.b16 %v581
      %v2404 = vunpack.c.l.b16 %v582
      %v2405 = vunpack.c.h.b16 %v582
      %v2406 = vunpack.c.l.b16 %v583
      %v2407 = vunpack.c.h.b16 %v583
      %v2408 = vunpack.c.l.b16 %v584
      %v2409 = vunpack.c.h.b16 %v584
      %v2410 = vunpack.c.l.b16 %v585
      %v2411 = vunpack.c.h.b16 %v585
      %v2412 = vunpack.c.l.b16 %v586
      %v2413 = vunpack.c.h.b16 %v586
      %v2414 = vunpack.c.l.b16 %v587
      %v2415 = vunpack.c.h.b16 %v587
      %v2416 = vunpack.c.l.b16 %v588
      %v2417 = vunpack.c.h.b16 %v588
      %v2418 = vunpack.c.l.b16 %v589
      %v2419 = vunpack.c.h.b16 %v589
      %v2420 = vunpack.c.l.b16 %v590
      %v2421 = vunpack.c.h.b16 %v590
      %v2422 = vunpack.c.l.b16 %v591
      %v2423 = vunpack.c.h.b16 %v591
      %v2424 = vunpack.c.l.b16 %v592
      %v2425 = vunpack.c.h.b16 %v592
      %v2426 = vunpack.c.l.b16 %v593
      %v2427 = vunpack.c.h.b16 %v593
      %v2428 = vunpack.c.l.b16 %v594
      %v2429 = vunpack.c.h.b16 %v594
      %v2430 = vunpack.c.l.b16 %v595
      %v2431 = vunpack.c.h.b16 %v595
      %v2432 = vunpack.c.l.b16 %v596
      %v2433 = vunpack.c.h.b16 %v596
      %v2434 = vunpack.c.l.b16 %v597
      %v2435 = vunpack.c.h.b16 %v597
      %v2436 = vunpack.c.l.b16 %v598
      %v2437 = vunpack.c.h.b16 %v598
      %v2438 = vunpack.c.l.b16 %v599
      %v2439 = vunpack.c.h.b16 %v599
      %v2440 = vunpack.c.l.b16 %v600
      %v2441 = vunpack.c.h.b16 %v600
      %v2442 = vunpack.c.l.b16 %v601
      %v2443 = vunpack.c.h.b16 %v601
      %v2444 = vunpack.c.l.b16 %v602
      %v2445 = vunpack.c.h.b16 %v602
      %v2446 = vunpack.c.l.b16 %v603
      %v2447 = vunpack.c.h.b16 %v603
      %v2448 = vunpack.c.l.b16 %v604
      %v2449 = vunpack.c.h.b16 %v604
      %v2450 = vunpack.c.l.b16 %v605
      %v2451 = vunpack.c.h.b16 %v605
      %v2452 = vunpack.c.l.b16 %v606
      %v2453 = vunpack.c.h.b16 %v606
      %v2454 = vunpack.c.l.b16 %v607
      %v2455 = vunpack.c.h.b16 %v607
      %v2456 = vunpack.c.l.b16 %v608
      %v2457 = vunpack.c.h.b16 %v608
      %v2458 = vunpack.c.l.b16 %v609
      %v2459 = vunpack.c.h.b16 %v609
      %v2460 = vunpack.c.l.b16 %v610
      %v2461 = vunpack.c.h.b16 %v610
      %v2462 = vunpack.c.l.b16 %v611
      %v2463 = vunpack.c.h.b16 %v611
      %v2464 = vunpack.c.l.b16 %v612
      %v2465 = vunpack.c.h.b16 %v612
      %v2466 = vunpack.c.l.b16 %v613
      %v2467 = vunpack.c.h.b16 %v613
      %v2468 = vunpack.c.l.b16 %v614
      %v2469 = vunpack.c.h.b16 %v614
      %v2470 = vunpack.c.l.b16 %v615
      %v2471 = vunpack.c.h.b16 %v615
      %v2472 = vunpack.c.l.b16 %v616
      %v2473 = vunpack.c.h.b16 %v616
      %v2474 = vunpack.c.l.b16 %v617
      %v2475 = vunpack.c.h.b16 %v617
      %v2476 = vunpack.c.l.b16 %v618
      %v2477 = vunpack.c.h.b16 %v618
      %v2478 = vunpack.c.l.b16 %v619
      %v2479 = vunpack.c.h.b16 %v619
      %v2480 = vunpack.c.l.b16 %v620
      %v2481 = vunpack.c.h.b16 %v620
      %v2482 = vunpack.c.l.b16 %v621
      %v2483 = vunpack.c.h.b16 %v621
      %v2484 = vunpack.c.l.b16 %v622
      %v2485 = vunpack.c.h.b16 %v622
      %v2486 = vunpack.c.l.b16 %v623
      %v2487 = vunpack.c.h.b16 %v623
      %v2488 = vunpack.c.l.b16 %v624
      %v2489 = vunpack.c.h.b16 %v624
      %v2490 = vunpack.c.l.b16 %v625
      %v2491 = vunpack.c.h.b16 %v625
      %v2492 = vunpack.c.l.b16 %v626
      %v2493 = vunpack.c.h.b16 %v626
      %v2494 = vunpack.c.l.b16 %v627
      %v2495 = vunpack.c.h.b16 %v627
      %v2496 = vunpack.c.l.b16 %v628
      %v2497 = vunpack.c.h.b16 %v628
      %v2498 = vunpack.c.l.b16 %v629
      %v2499 = vunpack.c.h.b16 %v629
      %v2500 = vunpack.c.l.b16 %v630
      %v2501 = vunpack.c.h.b16 %v630
      %v2502 = vunpack.c.l.b16 %v631
      %v2503 = vunpack.c.h.b16 %v631
      %v2504 = vunpack.c.l.b16 %v632
      %v2505 = vunpack.c.h.b16 %v632
      %v2506 = vunpack.c.l.b16 %v633
      %v2507 = vunpack.c.h.b16 %v633
      %v2508 = vunpack.c.l.b16 %v634
      %v2509 = vunpack.c.h.b16 %v634
      %v2510 = vunpack.c.l.b16 %v635
      %v2511 = vunpack.c.h.b16 %v635
      %v2512 = vunpack.c.l.b16 %v636
      %v2513 = vunpack.c.h.b16 %v636
      %v2514 = vunpack.c.l.b16 %v637
      %v2515 = vunpack.c.h.b16 %v637
      %v2516 = vunpack.c.l.b16 %v638
      %v2517 = vunpack.c.h.b16 %v638
      %v2518 = vunpack.c.l.b16 %v639
      %v2519 = vunpack.c.h.b16 %v639
      %v2520 = vunpack.c.l.b16 %v640
      %v2521 = vunpack.c.h.b16 %v640
      %v2522 = vunpack.c.l.b16 %v641
      %v2523 = vunpack.c.h.b16 %v641
      %v2524 = vunpack.c.l.b16 %v642
      %v2525 = vunpack.c.h.b16 %v642
      %v2526 = vunpack.c.l.b16 %v643
      %v2527 = vunpack.c.h.b16 %v643
      %v2528 = vunpack.c.l.b16 %v644
      %v2529 = vunpack.c.h.b16 %v644
      %v2530 = vunpack.c.l.b16 %v645
      %v2531 = vunpack.c.h.b16 %v645
      %v2532 = vunpack.c.l.b16 %v646
      %v2533 = vunpack.c.h.b16 %v646
      %v2534 = vunpack.c.l.b16 %v647
      %v2535 = vunpack.c.h.b16 %v647
      %v2536 = vunpack.c.l.b16 %v648
      %v2537 = vunpack.c.h.b16 %v648
      %v2538 = vunpack.c.l.b16 %v649
      %v2539 = vunpack.c.h.b16 %v649
      %v2540 = vunpack.c.l.b16 %v650
      %v2541 = vunpack.c.h.b16 %v650
      %v2542 = vunpack.c.l.b16 %v651
      %v2543 = vunpack.c.h.b16 %v651
      %v2544 = vunpack.c.l.b16 %v652
      %v2545 = vunpack.c.h.b16 %v652
      %v2546 = vunpack.c.l.b16 %v653
      %v2547 = vunpack.c.h.b16 %v653
      %v2548 = vunpack.c.l.b16 %v654
      %v2549 = vunpack.c.h.b16 %v654
      %v2550 = vunpack.c.l.b16 %v655
      %v2551 = vunpack.c.h.b16 %v655
      %v2552 = vunpack.c.l.b16 %v656
      %v2553 = vunpack.c.h.b16 %v656
      %v2554 = vunpack.c.l.b16 %v657
      %v2555 = vunpack.c.h.b16 %v657
      %v2556 = vunpack.c.l.b16 %v658
      %v2557 = vunpack.c.h.b16 %v658
      %v2558 = vunpack.c.l.b16 %v659
      %v2559 = vunpack.c.h.b16 %v659
      %v2560 = vunpack.c.l.b16 %v660
      %v2561 = vunpack.c.h.b16 %v660
      %v2562 = vunpack.c.l.b16 %v661
      %v2563 = vunpack.c.h.b16 %v661
      %v2564 = vunpack.c.l.b16 %v662
      %v2565 = vunpack.c.h.b16 %v662
      %v2566 = vunpack.c.l.b16 %v663
      %v2567 = vunpack.c.h.b16 %v663
      %v2568 = vunpack.c.l.b16 %v664
      %v2569 = vunpack.c.h.b16 %v664
      %v2570 = vunpack.c.l.b16 %v665
      %v2571 = vunpack.c.h.b16 %v665
      %v2572 = vunpack.c.l.b16 %v666
      %v2573 = vunpack.c.h.b16 %v666
      %v2574 = vunpack.c.l.b16 %v667
      %v2575 = vunpack.c.h.b16 %v667
      %v2576 = vunpack.c.l.b16 %v668
      %v2577 = vunpack.c.h.b16 %v668
      %v2578 = vunpack.c.l.b16 %v669
      %v2579 = vunpack.c.h.b16 %v669
      %v2580 = vunpack.c.l.b16 %v670
      %v2581 = vunpack.c.h.b16 %v670
      %v2582 = vunpack.c.l.b16 %v671
      %v2583 = vunpack.c.h.b16 %v671
      %v2584 = vunpack.c.l.b16 %v672
      %v2585 = vunpack.c.h.b16 %v672
      %v2586 = vunpack.c.l.b16 %v673
      %v2587 = vunpack.c.h.b16 %v673
      %v2588 = vunpack.c.l.b16 %v674
      %v2589 = vunpack.c.h.b16 %v674
      %v2590 = vunpack.c.l.b16 %v675
      %v2591 = vunpack.c.h.b16 %v675
      %v2592 = vunpack.c.l.b16 %v676
      %v2593 = vunpack.c.h.b16 %v676
      %v2594 = vunpack.c.l.b16 %v677
      %v2595 = vunpack.c.h.b16 %v677
      %v2596 = vunpack.c.l.b16 %v678
      %v2597 = vunpack.c.h.b16 %v678
      %v2598 = vunpack.c.l.b16 %v679
      %v2599 = vunpack.c.h.b16 %v679
      %v2600 = vunpack.c.l.b16 %v680
      %v2601 = vunpack.c.h.b16 %v680
      %v2602 = vunpack.c.l.b16 %v681
      %v2603 = vunpack.c.h.b16 %v681
      %v2604 = vunpack.c.l.b16 %v682
      %v2605 = vunpack.c.h.b16 %v682
      %v2606 = vunpack.c.l.b16 %v683
      %v2607 = vunpack.c.h.b16 %v683
      %v2608 = vunpack.c.l.b16 %v684
      %v2609 = vunpack.c.h.b16 %v684
      %v2610 = vunpack.c.l.b16 %v685
      %v2611 = vunpack.c.h.b16 %v685
      %v2612 = vunpack.c.l.b16 %v686
      %v2613 = vunpack.c.h.b16 %v686
      %v2614 = vunpack.c.l.b16 %v687
      %v2615 = vunpack.c.h.b16 %v687
      %v2616 = vunpack.c.l.b16 %v688
      %v2617 = vunpack.c.h.b16 %v688
      %v2618 = vunpack.c.l.b16 %v689
      %v2619 = vunpack.c.h.b16 %v689
      %v2620 = vunpack.c.l.b16 %v690
      %v2621 = vunpack.c.h.b16 %v690
      %v2622 = vunpack.c.l.b16 %v691
      %v2623 = vunpack.c.h.b16 %v691
      %v2624 = vunpack.c.l.b16 %v692
      %v2625 = vunpack.c.h.b16 %v692
      %v2626 = vunpack.c.l.b16 %v693
      %v2627 = vunpack.c.h.b16 %v693
      %v2628 = vunpack.c.l.b16 %v694
      %v2629 = vunpack.c.h.b16 %v694
      %v2630 = vunpack.c.l.b16 %v695
      %v2631 = vunpack.c.h.b16 %v695
      %v2632 = vunpack.c.l.b16 %v696
      %v2633 = vunpack.c.h.b16 %v696
      %v2634 = vunpack.c.l.b16 %v697
      %v2635 = vunpack.c.h.b16 %v697
      %v2636 = vunpack.c.l.b16 %v698
      %v2637 = vunpack.c.h.b16 %v698
      %v2638 = vunpack.c.l.b16 %v699
      %v2639 = vunpack.c.h.b16 %v699
      %v2640 = vunpack.c.l.b16 %v700
      %v2641 = vunpack.c.h.b16 %v700
      %v2642 = vunpack.c.l.b16 %v701
      %v2643 = vunpack.c.h.b16 %v701
      %v2644 = vunpack.c.l.b16 %v702
      %v2645 = vunpack.c.h.b16 %v702
      %v2646 = vunpack.c.l.b16 %v703
      %v2647 = vunpack.c.h.b16 %v703
      %v2648 = vunpack.c.l.b16 %v704
      %v2649 = vunpack.c.h.b16 %v704
      %v2650 = vunpack.c.l.b16 %v705
      %v2651 = vunpack.c.h.b16 %v705
      %v2652 = vunpack.c.l.b16 %v706
      %v2653 = vunpack.c.h.b16 %v706
      %v2654 = vunpack.c.l.b16 %v707
      %v2655 = vunpack.c.h.b16 %v707
      %v2656 = vunpack.c.l.b16 %v708
      %v2657 = vunpack.c.h.b16 %v708
      %v2658 = vunpack.c.l.b16 %v709
      %v2659 = vunpack.c.h.b16 %v709
      %v2660 = vunpack.c.l.b16 %v710
      %v2661 = vunpack.c.h.b16 %v710
      %v2662 = vunpack.c.l.b16 %v711
      %v2663 = vunpack.c.h.b16 %v711
      %v2664 = vunpack.c.l.b16 %v712
      %v2665 = vunpack.c.h.b16 %v712
      %v2666 = vunpack.c.l.b16 %v713
      %v2667 = vunpack.c.h.b16 %v713
      %v2668 = vpack.c.b16 %v2224, %v2220
      %v2669 = vpack.c.b16 %v2225, %v2221
      %v2670 = vpack.c.b16 %v2226, %v2222
      %v2671 = vpack.c.b16 %v2227, %v2223
      %v2672 = vpack.c.b16 %v2232, %v2228
      %v2673 = vpack.c.b16 %v2233, %v2229
      %v2674 = vpack.c.b16 %v2234, %v2230
      %v2675 = vpack.c.b16 %v2235, %v2231
      %v2676 = vpack.c.b16 %v2240, %v2236
      %v2677 = vpack.c.b16 %v2241, %v2237
      %v2678 = vpack.c.b16 %v2242, %v2238
      %v2679 = vpack.c.b16 %v2243, %v2239
      %v2680 = vpack.c.b16 %v2248, %v2244
      %v2681 = vpack.c.b16 %v2249, %v2245
      %v2682 = vpack.c.b16 %v2250, %v2246
      %v2683 = vpack.c.b16 %v2251, %v2247
      %v2684 = vpack.c.b16 %v2256, %v2252
      %v2685 = vpack.c.b16 %v2257, %v2253
      %v2686 = vpack.c.b16 %v2258, %v2254
      %v2687 = vpack.c.b16 %v2259, %v2255
      %v2688 = vpack.c.b16 %v2264, %v2260
      %v2689 = vpack.c.b16 %v2265, %v2261
      %v2690 = vpack.c.b16 %v2266, %v2262
      %v2691 = vpack.c.b16 %v2267, %v2263
      %v2692 = vpack.c.b16 %v2272, %v2268
      %v2693 = vpack.c.b16 %v2273, %v2269
      %v2694 = vpack.c.b16 %v2274, %v2270
      %v2695 = vpack.c.b16 %v2275, %v2271
      %v2696 = vpack.c.b16 %v2280, %v2276
      %v2697 = vpack.c.b16 %v2281, %v2277
      %v2698 = vpack.c.b16 %v2282, %v2278
      %v2699 = vpack.c.b16 %v2283, %v2279
      %v2700 = vpack.c.b16 %v2288, %v2284
      %v2701 = vpack.c.b16 %v2289, %v2285
      %v2702 = vpack.c.b16 %v2290, %v2286
      %v2703 = vpack.c.b16 %v2291, %v2287
      %v2704 = vpack.c.b16 %v2296, %v2292
      %v2705 = vpack.c.b16 %v2297, %v2293
      %v2706 = vpack.c.b16 %v2298, %v2294
      %v2707 = vpack.c.b16 %v2299, %v2295
      %v2708 = vpack.c.b16 %v2304, %v2300
      %v2709 = vpack.c.b16 %v2305, %v2301
      %v2710 = vpack.c.b16 %v2306, %v2302
      %v2711 = vpack.c.b16 %v2307, %v2303
      %v2712 = vpack.c.b16 %v2312, %v2308
      %v2713 = vpack.c.b16 %v2313, %v2309
      %v2714 = vpack.c.b16 %v2314, %v2310
      %v2715 = vpack.c.b16 %v2315, %v2311
      %v2716 = vpack.c.b16 %v2320, %v2316
      %v2717 = vpack.c.b16 %v2321, %v2317
      %v2718 = vpack.c.b16 %v2322, %v2318
      %v2719 = vpack.c.b16 %v2323, %v2319
      %v2720 = vpack.c.b16 %v2328, %v2324
      %v2721 = vpack.c.b16 %v2329, %v2325
      %v2722 = vpack.c.b16 %v2330, %v2326
      %v2723 = vpack.c.b16 %v2331, %v2327
      %v2724 = vpack.c.b16 %v2336, %v2332
      %v2725 = vpack.c.b16 %v2337, %v2333
      %v2726 = vpack.c.b16 %v2338, %v2334
      %v2727 = vpack.c.b16 %v2339, %v2335
      %v2728 = vpack.c.b16 %v2344, %v2340
      %v2729 = vpack.c.b16 %v2345, %v2341
      %v2730 = vpack.c.b16 %v2346, %v2342
      %v2731 = vpack.c.b16 %v2347, %v2343
      %v2732 = vpack.c.b16 %v2352, %v2348
      %v2733 = vpack.c.b16 %v2353, %v2349
      %v2734 = vpack.c.b16 %v2354, %v2350
      %v2735 = vpack.c.b16 %v2355, %v2351
      %v2736 = vpack.c.b16 %v2360, %v2356
      %v2737 = vpack.c.b16 %v2361, %v2357
      %v2738 = vpack.c.b16 %v2362, %v2358
      %v2739 = vpack.c.b16 %v2363, %v2359
      %v2740 = vpack.c.b16 %v2368, %v2364
      %v2741 = vpack.c.b16 %v2369, %v2365
      %v2742 = vpack.c.b16 %v2370, %v2366
      %v2743 = vpack.c.b16 %v2371, %v2367
      %v2744 = vpack.c.b16 %v2376, %v2372
      %v2745 = vpack.c.b16 %v2377, %v2373
      %v2746 = vpack.c.b16 %v2378, %v2374
      %v2747 = vpack.c.b16 %v2379, %v2375
      %v2748 = vpack.c.b16 %v2384, %v2380
      %v2749 = vpack.c.b16 %v2385, %v2381
      %v2750 = vpack.c.b16 %v2386, %v2382
      %v2751 = vpack.c.b16 %v2387, %v2383
      %v2752 = vpack.c.b16 %v2392, %v2388
      %v2753 = vpack.c.b16 %v2393, %v2389
      %v2754 = vpack.c.b16 %v2394, %v2390
      %v2755 = vpack.c.b16 %v2395, %v2391
      %v2756 = vpack.c.b16 %v2400, %v2396
      %v2757 = vpack.c.b16 %v2401, %v2397
      %v2758 = vpack.c.b16 %v2402, %v2398
      %v2759 = vpack.c.b16 %v2403, %v2399
      %v2760 = vpack.c.b16 %v2408, %v2404
      %v2761 = vpack.c.b16 %v2409, %v2405
      %v2762 = vpack.c.b16 %v2410, %v2406
      %v2763 = vpack.c.b16 %v2411, %v2407
      %v2764 = vpack.c.b16 %v2416, %v2412
      %v2765 = vpack.c.b16 %v2417, %v2413
      %v2766 = vpack.c.b16 %v2418, %v2414
      %v2767 = vpack.c.b16 %v2419, %v2415
      %v2768 = vpack.c.b16 %v2424, %v2420
      %v2769 = vpack.c.b16 %v2425, %v2421
      %v2770 = vpack.c.b16 %v2426, %v2422
      %v2771 = vpack.c.b16 %v2427, %v2423
      %v2772 = vpack.c.b16 %v2432, %v2428
      %v2773 = vpack.c.b16 %v2433, %v2429
      %v2774 = vpack.c.b16 %v2434, %v2430
      %v2775 = vpack.c.b16 %v2435, %v2431
      %v2776 = vpack.c.b16 %v2440, %v2436
      %v2777 = vpack.c.b16 %v2441, %v2437
      %v2778 = vpack.c.b16 %v2442, %v2438
      %v2779 = vpack.c.b16 %v2443, %v2439
      %v2780 = vpack.c.b16 %v2448, %v2444
      %v2781 = vpack.c.b16 %v2449, %v2445
      %v2782 = vpack.c.b16 %v2450, %v2446
      %v2783 = vpack.c.b16 %v2451, %v2447
      %v2784 = vpack.c.b16 %v2456, %v2452
      %v2785 = vpack.c.b16 %v2457, %v2453
      %v2786 = vpack.c.b16 %v2458, %v2454
      %v2787 = vpack.c.b16 %v2459, %v2455
      %v2788 = vpack.c.b16 %v2464, %v2460
      %v2789 = vpack.c.b16 %v2465, %v2461
      %v2790 = vpack.c.b16 %v2466, %v2462
      %v2791 = vpack.c.b16 %v2467, %v2463
      %v2792 = vpack.c.b16 %v2472, %v2468
      %v2793 = vpack.c.b16 %v2473, %v2469
      %v2794 = vpack.c.b16 %v2474, %v2470
      %v2795 = vpack.c.b16 %v2475, %v2471
      %v2796 = vpack.c.b16 %v2480, %v2476
      %v2797 = vpack.c.b16 %v2481, %v2477
      %v2798 = vpack.c.b16 %v2482, %v2478
      %v2799 = vpack.c.b16 %v2483, %v2479
      %v2800 = vpack.c.b16 %v2488, %v2484
      %v2801 = vpack.c.b16 %v2489, %v2485
      %v2802 = vpack.c.b16 %v2490, %v2486
      %v2803 = vpack.c.b16 %v2491, %v2487
      %v2804 = vpack.c.b16 %v2496, %v2492
      %v2805 = vpack.c.b16 %v2497, %v2493
      %v2806 = vpack.c.b16 %v2498, %v2494
      %v2807 = vpack.c.b16 %v2499, %v2495
      %v2808 = vpack.c.b16 %v2504, %v2500
      %v2809 = vpack.c.b16 %v2505, %v2501
      %v2810 = vpack.c.b16 %v2506, %v2502
      %v2811 = vpack.c.b16 %v2507, %v2503
      %v2812 = vpack.c.b16 %v2512, %v2508
      %v2813 = vpack.c.b16 %v2513, %v2509
      %v2814 = vpack.c.b16 %v2514, %v2510
      %v2815 = vpack.c.b16 %v2515, %v2511
      %v2816 = vpack.c.b16 %v2520, %v2516
      %v2817 = vpack.c.b16 %v2521, %v2517
      %v2818 = vpack.c.b16 %v2522, %v2518
      %v2819 = vpack.c.b16 %v2523, %v2519
      %v2820 = vpack.c.b16 %v2528, %v2524
      %v2821 = vpack.c.b16 %v2529, %v2525
      %v2822 = vpack.c.b16 %v2530, %v2526
      %v2823 = vpack.c.b16 %v2531, %v2527
      %v2824 = vpack.c.b16 %v2536, %v2532
      %v2825 = vpack.c.b16 %v2537, %v2533
      %v2826 = vpack.c.b16 %v2538, %v2534
      %v2827 = vpack.c.b16 %v2539, %v2535
      %v2828 = vpack.c.b16 %v2544, %v2540
      %v2829 = vpack.c.b16 %v2545, %v2541
      %v2830 = vpack.c.b16 %v2546, %v2542
      %v2831 = vpack.c.b16 %v2547, %v2543
      %v2832 = vpack.c.b16 %v2552, %v2548
      %v2833 = vpack.c.b16 %v2553, %v2549
      %v2834 = vpack.c.b16 %v2554, %v2550
      %v2835 = vpack.c.b16 %v2555, %v2551
      %v2836 = vpack.c.b16 %v2560, %v2556
      %v2837 = vpack.c.b16 %v2561, %v2557
      %v2838 = vpack.c.b16 %v2562, %v2558
      %v2839 = vpack.c.b16 %v2563, %v2559
      %v2840 = vpack.c.b16 %v2568, %v2564
      %v2841 = vpack.c.b16 %v2569, %v2565
      %v2842 = vpack.c.b16 %v2570, %v2566
      %v2843 = vpack.c.b16 %v2571, %v2567
      %v2844 = vpack.c.b16 %v2576, %v2572
      %v2845 = vpack.c.b16 %v2577, %v2573
      %v2846 = vpack.c.b16 %v2578, %v2574
      %v2847 = vpack.c.b16 %v2579, %v2575
      %v2848 = vpack.c.b16 %v2584, %v2580
      %v2849 = vpack.c.b16 %v2585, %v2581
      %v2850 = vpack.c.b16 %v2586, %v2582
      %v2851 = vpack.c.b16 %v2587, %v2583
      %v2852 = vpack.c.b16 %v2592, %v2588
      %v2853 = vpack.c.b16 %v2593, %v2589
      %v2854 = vpack.c.b16 %v2594, %v2590
      %v2855 = vpack.c.b16 %v2595, %v2591
      %v2856 = vpack.c.b16 %v2600, %v2596
      %v2857 = vpack.c.b16 %v2601, %v2597
      %v2858 = vpack.c.b16 %v2602, %v2598
      %v2859 = vpack.c.b16 %v2603, %v2599
      %v2860 = vpack.c.b16 %v2608, %v2604
      %v2861 = vpack.c.b16 %v2609, %v2605
      %v2862 = vpack.c.b16 %v2610, %v2606
      %v2863 = vpack.c.b16 %v2611, %v2607
      %v2864 = vpack.c.b16 %v2616, %v2612
      %v2865 = vpack.c.b16 %v2617, %v2613
      %v2866 = vpack.c.b16 %v2618, %v2614
      %v2867 = vpack.c.b16 %v2619, %v2615
      %v2868 = vpack.c.b16 %v2624, %v2620
      %v2869 = vpack.c.b16 %v2625, %v2621
      %v2870 = vpack.c.b16 %v2626, %v2622
      %v2871 = vpack.c.b16 %v2627, %v2623
      %v2872 = vpack.c.b16 %v2632, %v2628
      %v2873 = vpack.c.b16 %v2633, %v2629
      %v2874 = vpack.c.b16 %v2634, %v2630
      %v2875 = vpack.c.b16 %v2635, %v2631
      %v2876 = vpack.c.b16 %v2640, %v2636
      %v2877 = vpack.c.b16 %v2641, %v2637
      %v2878 = vpack.c.b16 %v2642, %v2638
      %v2879 = vpack.c.b16 %v2643, %v2639
      %v2880 = vpack.c.b16 %v2648, %v2644
      %v2881 = vpack.c.b16 %v2649, %v2645
      %v2882 = vpack.c.b16 %v2650, %v2646
      %v2883 = vpack.c.b16 %v2651, %v2647
      %v2884 = vpack.c.b16 %v2656, %v2652
      %v2885 = vpack.c.b16 %v2657, %v2653
      %v2886 = vpack.c.b16 %v2658, %v2654
      %v2887 = vpack.c.b16 %v2659, %v2655
      %v2888 = vpack.c.b16 %v2664, %v2660
      %v2889 = vpack.c.b16 %v2665, %v2661
      %v2890 = vpack.c.b16 %v2666, %v2662
      %v2891 = vpack.c.b16 %v2667, %v2663
      %3116 = vmatprep.subr.bf16.mxu0 %v2669
      %3117 = vmatpush1.bf16.msra.mxu0 %v2668
      %3118 = vmatprep.subr.bf16.mxu0 %v2673
      %3119 = vmatpush1.bf16.msra.mxu0 %v2672
      %3120 = vmatprep.subr.bf16.mxu0 %v2677
      %3121 = vmatpush1.bf16.msra.mxu0 %v2676
      %3122 = vmatprep.subr.bf16.mxu0 %v2681
      %3123 = vmatpush1.bf16.msra.mxu0 %v2680
      %3124 = vmatprep.subr.bf16.mxu0 %v2685
      %3125 = vmatpush1.bf16.msra.mxu0 %v2684
      %3126 = vmatprep.subr.bf16.mxu0 %v2689
      %3127 = vmatpush1.bf16.msra.mxu0 %v2688
      %3128 = vmatprep.subr.bf16.mxu0 %v2693
      %3129 = vmatpush1.bf16.msra.mxu0 %v2692
      %3130 = vmatprep.subr.bf16.mxu0 %v2697
      %3131 = vmatpush1.bf16.msra.mxu0 %v2696
      %3132 = vmatprep.subr.bf16.mxu0 %v2701
      %3133 = vmatpush1.bf16.msra.mxu0 %v2700
      %3134 = vmatprep.subr.bf16.mxu0 %v2705
      %3135 = vmatpush1.bf16.msra.mxu0 %v2704
      %3136 = vmatprep.subr.bf16.mxu0 %v2709
      %3137 = vmatpush1.bf16.msra.mxu0 %v2708
      %3138 = vmatprep.subr.bf16.mxu0 %v2713
      %3139 = vmatpush1.bf16.msra.mxu0 %v2712
      %3140 = vmatprep.subr.bf16.mxu0 %v2717
      %3141 = vmatpush1.bf16.msra.mxu0 %v2716
      %3142 = vmatprep.subr.bf16.mxu0 %v2721
      %3143 = vmatpush1.bf16.msra.mxu0 %v2720
      %3144 = vmatprep.subr.bf16.mxu0 %v2725
      %3145 = vmatpush1.bf16.msra.mxu0 %v2724
      %3146 = vmatprep.subr.bf16.mxu0 %v2729
      %3147 = vmatpush1.bf16.msra.mxu0 %v2728
      %3148 = vmatprep.mubr.bf16.mxu0 %v1773
      %3149 = vmatmul.mubr.bf16.gmra.mrb[0].mxu0 %v1772
      %v3150 = vpop.f32.mrb[0].mxu0
      %v3151 = vadd.f32 %v1069, %v3150
      %v3152 = vpop.f32.mrb[0].mxu0
      %v3153 = vadd.f32 %v1071, %v3152
      %v3154 = vpop.f32.mrb[0].mxu0
      %v3155 = vadd.f32 %v1073, %v3154
      %v3156 = vpop.f32.mrb[0].mxu0
      %v3157 = vadd.f32 %v1075, %v3156
      %3158 = vmatprep.mubr.bf16.mxu0 %v1780
      %3159 = vmatmul.mubr.bf16.gmra.mrb[0].mxu0 %v1779
      %v3160 = vpop.f32.mrb[0].mxu0
      %v3161 = vadd.f32 %v1079, %v3160
      %v3162 = vpop.f32.mrb[0].mxu0
      %v3163 = vadd.f32 %v1081, %v3162
      %v3164 = vpop.f32.mrb[0].mxu0
      %v3165 = vadd.f32 %v1083, %v3164
      %v3166 = vpop.f32.mrb[0].mxu0
      %v3167 = vadd.f32 %v1085, %v3166
      %3168 = vmatprep.mubr.bf16.mxu0 %v1787
      %3169 = vmatmul.mubr.bf16.gmra.mrb[0].mxu0 %v1786
      %v3170 = vpop.f32.mrb[0].mxu0
      %v3171 = vadd.f32 %v1089, %v3170
      %v3172 = vpop.f32.mrb[0].mxu0
      %v3173 = vadd.f32 %v1091, %v3172
      %v3174 = vpop.f32.mrb[0].mxu0
      %v3175 = vadd.f32 %v1093, %v3174
      %v3176 = vpop.f32.mrb[0].mxu0
      %v3177 = vadd.f32 %v1095, %v3176
      %3178 = vmatprep.mubr.bf16.mxu0 %v1794
      %3179 = vmatmul.mubr.bf16.gmra.mrb[0].mxu0 %v1793
      %v3180 = vpop.f32.mrb[0].mxu0
      %v3181 = vadd.f32 %v1099, %v3180
      %v3182 = vpop.f32.mrb[0].mxu0
      %v3183 = vadd.f32 %v1101, %v3182
      %v3184 = vpop.f32.mrb[0].mxu0
      %v3185 = vadd.f32 %v1103, %v3184
      %v3186 = vpop.f32.mrb[0].mxu0
      %v3187 = vadd.f32 %v1105, %v3186
      %3188 = vmatprep.mubr.bf16.mxu0 %v1801
      %3189 = vmatmul.mubr.bf16.gmra.mrb[0].mxu0 %v1800
      %v3190 = vpop.f32.mrb[0].mxu0
      %v3191 = vadd.f32 %v1109, %v3190
      %v3192 = vpop.f32.mrb[0].mxu0
      %v3193 = vadd.f32 %v1111, %v3192
      %v3194 = vpop.f32.mrb[0].mxu0
      %v3195 = vadd.f32 %v1113, %v3194
      %v3196 = vpop.f32.mrb[0].mxu0
      %v3197 = vadd.f32 %v1115, %v3196
      %3198 = vmatprep.mubr.bf16.mxu0 %v1808
      %3199 = vmatmul.mubr.bf16.gmra.mrb[0].mxu0 %v1807
      %v3200 = vpop.f32.mrb[0].mxu0
      %v3201 = vadd.f32 %v1119, %v3200
      %v3202 = vpop.f32.mrb[0].mxu0
      %v3203 = vadd.f32 %v1121, %v3202
      %v3204 = vpop.f32.mrb[0].mxu0
      %v3205 = vadd.f32 %v1123, %v3204
      %v3206 = vpop.f32.mrb[0].mxu0
      %v3207 = vadd.f32 %v1125, %v3206
      %3208 = vmatprep.mubr.bf16.mxu0 %v1815
      %3209 = vmatmul.mubr.bf16.gmra.mrb[0].mxu0 %v1814
      %v3210 = vpop.f32.mrb[0].mxu0
      %v3211 = vadd.f32 %v1129, %v3210
      %v3212 = vpop.f32.mrb[0].mxu0
      %v3213 = vadd.f32 %v1131, %v3212
      %v3214 = vpop.f32.mrb[0].mxu0
      %v3215 = vadd.f32 %v1133, %v3214
      %v3216 = vpop.f32.mrb[0].mxu0
      %v3217 = vadd.f32 %v1135, %v3216
      %3218 = vmatprep.mubr.bf16.mxu0 %v1822
      %3219 = vmatmul.mubr.bf16.gmra.mrb[0].mxu0 %v1821
      %v3220 = vpop.f32.mrb[0].mxu0
      %v3221 = vadd.f32 %v1139, %v3220
      %v3222 = vpop.f32.mrb[0].mxu0
      %v3223 = vadd.f32 %v1141, %v3222
      %v3224 = vpop.f32.mrb[0].mxu0
      %v3225 = vadd.f32 %v1143, %v3224
      %v3226 = vpop.f32.mrb[0].mxu0
      %v3227 = vadd.f32 %v1145, %v3226
      %3228 = vmatprep.mubr.bf16.mxu0 %v1829
      %3229 = vmatmul.mubr.bf16.gmra.mrb[0].mxu0 %v1828
      %v3230 = vpop.f32.mrb[0].mxu0
      %v3231 = vadd.f32 %v1149, %v3230
      %v3232 = vpop.f32.mrb[0].mxu0
      %v3233 = vadd.f32 %v1151, %v3232
      %v3234 = vpop.f32.mrb[0].mxu0
      %v3235 = vadd.f32 %v1153, %v3234
      %v3236 = vpop.f32.mrb[0].mxu0
      %v3237 = vadd.f32 %v1155, %v3236
      %3238 = vmatprep.mubr.bf16.mxu0 %v1836
      %3239 = vmatmul.mubr.bf16.gmra.mrb[0].mxu0 %v1835
      %v3240 = vpop.f32.mrb[0].mxu0
      %v3241 = vadd.f32 %v1159, %v3240
      %v3242 = vpop.f32.mrb[0].mxu0
      %v3243 = vadd.f32 %v1161, %v3242
      %v3244 = vpop.f32.mrb[0].mxu0
      %v3245 = vadd.f32 %v1163, %v3244
      %v3246 = vpop.f32.mrb[0].mxu0
      %v3247 = vadd.f32 %v1165, %v3246
      %3248 = vmatprep.mubr.bf16.mxu0 %v1843
      %3249 = vmatmul.mubr.bf16.gmra.mrb[0].mxu0 %v1842
      %v3250 = vpop.f32.mrb[0].mxu0
      %v3251 = vadd.f32 %v1169, %v3250
      %v3252 = vpop.f32.mrb[0].mxu0
      %v3253 = vadd.f32 %v1171, %v3252
      %v3254 = vpop.f32.mrb[0].mxu0
      %v3255 = vadd.f32 %v1173, %v3254
      %v3256 = vpop.f32.mrb[0].mxu0
      %v3257 = vadd.f32 %v1175, %v3256
      %3258 = vmatprep.mubr.bf16.mxu0 %v1850
      %3259 = vmatmul.mubr.bf16.gmra.mrb[0].mxu0 %v1849
      %v3260 = vpop.f32.mrb[0].mxu0
      %v3261 = vadd.f32 %v1179, %v3260
      %v3262 = vpop.f32.mrb[0].mxu0
      %v3263 = vadd.f32 %v1181, %v3262
      %v3264 = vpop.f32.mrb[0].mxu0
      %v3265 = vadd.f32 %v1183, %v3264
      %v3266 = vpop.f32.mrb[0].mxu0
      %v3267 = vadd.f32 %v1185, %v3266
      %3268 = vmatprep.mubr.bf16.mxu0 %v1857
      %3269 = vmatmul.mubr.bf16.gmra.mrb[0].mxu0 %v1856
      %v3270 = vpop.f32.mrb[0].mxu0
      %v3271 = vadd.f32 %v1189, %v3270
      %v3272 = vpop.f32.mrb[0].mxu0
      %v3273 = vadd.f32 %v1191, %v3272
      %v3274 = vpop.f32.mrb[0].mxu0
      %v3275 = vadd.f32 %v1193, %v3274
      %v3276 = vpop.f32.mrb[0].mxu0
      %v3277 = vadd.f32 %v1195, %v3276
      %3278 = vmatprep.mubr.bf16.mxu0 %v1864
      %3279 = vmatmul.mubr.bf16.gmra.mrb[0].mxu0 %v1863
      %v3280 = vpop.f32.mrb[0].mxu0
      %v3281 = vadd.f32 %v1199, %v3280
      %v3282 = vpop.f32.mrb[0].mxu0
      %v3283 = vadd.f32 %v1201, %v3282
      %v3284 = vpop.f32.mrb[0].mxu0
      %v3285 = vadd.f32 %v1203, %v3284
      %v3286 = vpop.f32.mrb[0].mxu0
      %v3287 = vadd.f32 %v1205, %v3286
      %3288 = vmatprep.mubr.bf16.mxu0 %v1871
      %3289 = vmatmul.mubr.bf16.gmra.mrb[0].mxu0 %v1870
      %v3290 = vpop.f32.mrb[0].mxu0
      %v3291 = vadd.f32 %v1209, %v3290
      %v3292 = vpop.f32.mrb[0].mxu0
      %v3293 = vadd.f32 %v1211, %v3292
      %v3294 = vpop.f32.mrb[0].mxu0
      %v3295 = vadd.f32 %v1213, %v3294
      %v3296 = vpop.f32.mrb[0].mxu0
      %v3297 = vadd.f32 %v1215, %v3296
      %3298 = vmatprep.mubr.bf16.mxu0 %v1878
      %3299 = vmatmul.mubr.bf16.gmra.mrb[0].mxu0 %v1877
      %v3300 = vpop.f32.mrb[0].mxu0
      %v3301 = vadd.f32 %v1219, %v3300
      %v3302 = vpop.f32.mrb[0].mxu0
      %v3303 = vadd.f32 %v1221, %v3302
      %v3304 = vpop.f32.mrb[0].mxu0
      %v3305 = vadd.f32 %v1223, %v3304
      %v3306 = vpop.f32.mrb[0].mxu0
      %v3307 = vadd.f32 %v1225, %v3306
      %3308 = vdwg.mxu0
      %3309 = vmatprep.subr.bf16.mxu0 %v2733
      %3310 = vmatpush1.bf16.msra.mxu0 %v2732
      %3311 = vmatprep.subr.bf16.mxu0 %v2737
      %3312 = vmatpush1.bf16.msra.mxu0 %v2736
      %3313 = vmatprep.subr.bf16.mxu0 %v2741
      %3314 = vmatpush1.bf16.msra.mxu0 %v2740
      %3315 = vmatprep.subr.bf16.mxu0 %v2745
      %3316 = vmatpush1.bf16.msra.mxu0 %v2744
      %3317 = vmatprep.subr.bf16.mxu0 %v2749
      %3318 = vmatpush1.bf16.msra.mxu0 %v2748
      %3319 = vmatprep.subr.bf16.mxu0 %v2753
      %3320 = vmatpush1.bf16.msra.mxu0 %v2752
      %3321 = vmatprep.subr.bf16.mxu0 %v2757
      %3322 = vmatpush1.bf16.msra.mxu0 %v2756
      %3323 = vmatprep.subr.bf16.mxu0 %v2761
      %3324 = vmatpush1.bf16.msra.mxu0 %v2760
      %3325 = vmatprep.subr.bf16.mxu0 %v2765
      %3326 = vmatpush1.bf16.msra.mxu0 %v2764
      %3327 = vmatprep.subr.bf16.mxu0 %v2769
      %3328 = vmatpush1.bf16.msra.mxu0 %v2768
      %3329 = vmatprep.subr.bf16.mxu0 %v2773
      %3330 = vmatpush1.bf16.msra.mxu0 %v2772
      %3331 = vmatprep.subr.bf16.mxu0 %v2777
      %3332 = vmatpush1.bf16.msra.mxu0 %v2776
      %3333 = vmatprep.subr.bf16.mxu0 %v2781
      %3334 = vmatpush1.bf16.msra.mxu0 %v2780
      %3335 = vmatprep.subr.bf16.mxu0 %v2785
      %3336 = vmatpush1.bf16.msra.mxu0 %v2784
      %3337 = vmatprep.subr.bf16.mxu0 %v2789
      %3338 = vmatpush1.bf16.msra.mxu0 %v2788
      %3339 = vmatprep.subr.bf16.mxu0 %v2793
      %3340 = vmatpush1.bf16.msra.mxu0 %v2792
      %3341 = vmatprep.mubr.bf16.mxu0 %v1775
      %3342 = vmatmul.mubr.bf16.gmra.mrb[0].mxu0 %v1774
      %v3343 = vpop.f32.mrb[0].mxu0
      %v3344 = vadd.f32 %v3151, %v3343
      %v3345 = vpop.f32.mrb[0].mxu0
      %v3346 = vadd.f32 %v3153, %v3345
      %v3347 = vpop.f32.mrb[0].mxu0
      %v3348 = vadd.f32 %v3155, %v3347
      %v3349 = vpop.f32.mrb[0].mxu0
      %v3350 = vadd.f32 %v3157, %v3349
      %3351 = vmatprep.mubr.bf16.mxu0 %v1782
      %3352 = vmatmul.mubr.bf16.gmra.mrb[0].mxu0 %v1781
      %v3353 = vpop.f32.mrb[0].mxu0
      %v3354 = vadd.f32 %v3161, %v3353
      %v3355 = vpop.f32.mrb[0].mxu0
      %v3356 = vadd.f32 %v3163, %v3355
      %v3357 = vpop.f32.mrb[0].mxu0
      %v3358 = vadd.f32 %v3165, %v3357
      %v3359 = vpop.f32.mrb[0].mxu0
      %v3360 = vadd.f32 %v3167, %v3359
      %3361 = vmatprep.mubr.bf16.mxu0 %v1789
      %3362 = vmatmul.mubr.bf16.gmra.mrb[0].mxu0 %v1788
      %v3363 = vpop.f32.mrb[0].mxu0
      %v3364 = vadd.f32 %v3171, %v3363
      %v3365 = vpop.f32.mrb[0].mxu0
      %v3366 = vadd.f32 %v3173, %v3365
      %v3367 = vpop.f32.mrb[0].mxu0
      %v3368 = vadd.f32 %v3175, %v3367
      %v3369 = vpop.f32.mrb[0].mxu0
      %v3370 = vadd.f32 %v3177, %v3369
      %3371 = vmatprep.mubr.bf16.mxu0 %v1796
      %3372 = vmatmul.mubr.bf16.gmra.mrb[0].mxu0 %v1795
      %v3373 = vpop.f32.mrb[0].mxu0
      %v3374 = vadd.f32 %v3181, %v3373
      %v3375 = vpop.f32.mrb[0].mxu0
      %v3376 = vadd.f32 %v3183, %v3375
      %v3377 = vpop.f32.mrb[0].mxu0
      %v3378 = vadd.f32 %v3185, %v3377
      %v3379 = vpop.f32.mrb[0].mxu0
      %v3380 = vadd.f32 %v3187, %v3379
      %3381 = vmatprep.mubr.bf16.mxu0 %v1803
      %3382 = vmatmul.mubr.bf16.gmra.mrb[0].mxu0 %v1802
      %v3383 = vpop.f32.mrb[0].mxu0
      %v3384 = vadd.f32 %v3191, %v3383
      %v3385 = vpop.f32.mrb[0].mxu0
      %v3386 = vadd.f32 %v3193, %v3385
      %v3387 = vpop.f32.mrb[0].mxu0
      %v3388 = vadd.f32 %v3195, %v3387
      %v3389 = vpop.f32.mrb[0].mxu0
      %v3390 = vadd.f32 %v3197, %v3389
      %3391 = vmatprep.mubr.bf16.mxu0 %v1810
      %3392 = vmatmul.mubr.bf16.gmra.mrb[0].mxu0 %v1809
      %v3393 = vpop.f32.mrb[0].mxu0
      %v3394 = vadd.f32 %v3201, %v3393
      %v3395 = vpop.f32.mrb[0].mxu0
      %v3396 = vadd.f32 %v3203, %v3395
      %v3397 = vpop.f32.mrb[0].mxu0
      %v3398 = vadd.f32 %v3205, %v3397
      %v3399 = vpop.f32.mrb[0].mxu0
      %v3400 = vadd.f32 %v3207, %v3399
      %3401 = vmatprep.mubr.bf16.mxu0 %v1817
      %3402 = vmatmul.mubr.bf16.gmra.mrb[0].mxu0 %v1816
      %v3403 = vpop.f32.mrb[0].mxu0
      %v3404 = vadd.f32 %v3211, %v3403
      %v3405 = vpop.f32.mrb[0].mxu0
      %v3406 = vadd.f32 %v3213, %v3405
      %v3407 = vpop.f32.mrb[0].mxu0
      %v3408 = vadd.f32 %v3215, %v3407
      %v3409 = vpop.f32.mrb[0].mxu0
      %v3410 = vadd.f32 %v3217, %v3409
      %3411 = vmatprep.mubr.bf16.mxu0 %v1824
      %3412 = vmatmul.mubr.bf16.gmra.mrb[0].mxu0 %v1823
      %v3413 = vpop.f32.mrb[0].mxu0
      %v3414 = vadd.f32 %v3221, %v3413
      %v3415 = vpop.f32.mrb[0].mxu0
      %v3416 = vadd.f32 %v3223, %v3415
      %v3417 = vpop.f32.mrb[0].mxu0
      %v3418 = vadd.f32 %v3225, %v3417
      %v3419 = vpop.f32.mrb[0].mxu0
      %v3420 = vadd.f32 %v3227, %v3419
      %3421 = vmatprep.mubr.bf16.mxu0 %v1831
      %3422 = vmatmul.mubr.bf16.gmra.mrb[0].mxu0 %v1830
      %v3423 = vpop.f32.mrb[0].mxu0
      %v3424 = vadd.f32 %v3231, %v3423
      %v3425 = vpop.f32.mrb[0].mxu0
      %v3426 = vadd.f32 %v3233, %v3425
      %v3427 = vpop.f32.mrb[0].mxu0
      %v3428 = vadd.f32 %v3235, %v3427
      %v3429 = vpop.f32.mrb[0].mxu0
      %v3430 = vadd.f32 %v3237, %v3429
      %3431 = vmatprep.mubr.bf16.mxu0 %v1838
      %3432 = vmatmul.mubr.bf16.gmra.mrb[0].mxu0 %v1837
      %v3433 = vpop.f32.mrb[0].mxu0
      %v3434 = vadd.f32 %v3241, %v3433
      %v3435 = vpop.f32.mrb[0].mxu0
      %v3436 = vadd.f32 %v3243, %v3435
      %v3437 = vpop.f32.mrb[0].mxu0
      %v3438 = vadd.f32 %v3245, %v3437
      %v3439 = vpop.f32.mrb[0].mxu0
      %v3440 = vadd.f32 %v3247, %v3439
      %3441 = vmatprep.mubr.bf16.mxu0 %v1845
      %3442 = vmatmul.mubr.bf16.gmra.mrb[0].mxu0 %v1844
      %v3443 = vpop.f32.mrb[0].mxu0
      %v3444 = vadd.f32 %v3251, %v3443
      %v3445 = vpop.f32.mrb[0].mxu0
      %v3446 = vadd.f32 %v3253, %v3445
      %v3447 = vpop.f32.mrb[0].mxu0
      %v3448 = vadd.f32 %v3255, %v3447
      %v3449 = vpop.f32.mrb[0].mxu0
      %v3450 = vadd.f32 %v3257, %v3449
      %3451 = vmatprep.mubr.bf16.mxu0 %v1852
      %3452 = vmatmul.mubr.bf16.gmra.mrb[0].mxu0 %v1851
      %v3453 = vpop.f32.mrb[0].mxu0
      %v3454 = vadd.f32 %v3261, %v3453
      %v3455 = vpop.f32.mrb[0].mxu0
      %v3456 = vadd.f32 %v3263, %v3455
      %v3457 = vpop.f32.mrb[0].mxu0
      %v3458 = vadd.f32 %v3265, %v3457
      %v3459 = vpop.f32.mrb[0].mxu0
      %v3460 = vadd.f32 %v3267, %v3459
      %3461 = vmatprep.mubr.bf16.mxu0 %v1859
      %3462 = vmatmul.mubr.bf16.gmra.mrb[0].mxu0 %v1858
      %v3463 = vpop.f32.mrb[0].mxu0
      %v3464 = vadd.f32 %v3271, %v3463
      %v3465 = vpop.f32.mrb[0].mxu0
      %v3466 = vadd.f32 %v3273, %v3465
      %v3467 = vpop.f32.mrb[0].mxu0
      %v3468 = vadd.f32 %v3275, %v3467
      %v3469 = vpop.f32.mrb[0].mxu0
      %v3470 = vadd.f32 %v3277, %v3469
      %3471 = vmatprep.mubr.bf16.mxu0 %v1866
      %3472 = vmatmul.mubr.bf16.gmra.mrb[0].mxu0 %v1865
      %v3473 = vpop.f32.mrb[0].mxu0
      %v3474 = vadd.f32 %v3281, %v3473
      %v3475 = vpop.f32.mrb[0].mxu0
      %v3476 = vadd.f32 %v3283, %v3475
      %v3477 = vpop.f32.mrb[0].mxu0
      %v3478 = vadd.f32 %v3285, %v3477
      %v3479 = vpop.f32.mrb[0].mxu0
      %v3480 = vadd.f32 %v3287, %v3479
      %3481 = vmatprep.mubr.bf16.mxu0 %v1873
      %3482 = vmatmul.mubr.bf16.gmra.mrb[0].mxu0 %v1872
      %v3483 = vpop.f32.mrb[0].mxu0
      %v3484 = vadd.f32 %v3291, %v3483
      %v3485 = vpop.f32.mrb[0].mxu0
      %v3486 = vadd.f32 %v3293, %v3485
      %v3487 = vpop.f32.mrb[0].mxu0
      %v3488 = vadd.f32 %v3295, %v3487
      %v3489 = vpop.f32.mrb[0].mxu0
      %v3490 = vadd.f32 %v3297, %v3489
      %3491 = vmatprep.mubr.bf16.mxu0 %v1880
      %3492 = vmatmul.mubr.bf16.gmra.mrb[0].mxu0 %v1879
      %v3493 = vpop.f32.mrb[0].mxu0
      %v3494 = vadd.f32 %v3301, %v3493
      %v3495 = vpop.f32.mrb[0].mxu0
      %v3496 = vadd.f32 %v3303, %v3495
      %v3497 = vpop.f32.mrb[0].mxu0
      %v3498 = vadd.f32 %v3305, %v3497
      %v3499 = vpop.f32.mrb[0].mxu0
      %v3500 = vadd.f32 %v3307, %v3499
      %3501 = vdwg.mxu0
      %3502 = vmatprep.subr.bf16.mxu0 %v2797
      %3503 = vmatpush1.bf16.msra.mxu0 %v2796
      %3504 = vmatprep.subr.bf16.mxu0 %v2801
      %3505 = vmatpush1.bf16.msra.mxu0 %v2800
      %3506 = vmatprep.subr.bf16.mxu0 %v2805
      %3507 = vmatpush1.bf16.msra.mxu0 %v2804
      %3508 = vmatprep.subr.bf16.mxu0 %v2809
      %3509 = vmatpush1.bf16.msra.mxu0 %v2808
      %3510 = vmatprep.subr.bf16.mxu0 %v2813
      %3511 = vmatpush1.bf16.msra.mxu0 %v2812
      %3512 = vmatprep.subr.bf16.mxu0 %v2817
      %3513 = vmatpush1.bf16.msra.mxu0 %v2816
      %3514 = vmatprep.subr.bf16.mxu0 %v2821
      %3515 = vmatpush1.bf16.msra.mxu0 %v2820
      %3516 = vmatprep.subr.bf16.mxu0 %v2825
      %3517 = vmatpush1.bf16.msra.mxu0 %v2824
      %3518 = vmatprep.subr.bf16.mxu0 %v2829
      %3519 = vmatpush1.bf16.msra.mxu0 %v2828
      %3520 = vmatprep.subr.bf16.mxu0 %v2833
      %3521 = vmatpush1.bf16.msra.mxu0 %v2832
      %3522 = vmatprep.subr.bf16.mxu0 %v2837
      %3523 = vmatpush1.bf16.msra.mxu0 %v2836
      %3524 = vmatprep.subr.bf16.mxu0 %v2841
      %3525 = vmatpush1.bf16.msra.mxu0 %v2840
      %3526 = vmatprep.subr.bf16.mxu0 %v2845
      %3527 = vmatpush1.bf16.msra.mxu0 %v2844
      %3528 = vmatprep.subr.bf16.mxu0 %v2849
      %3529 = vmatpush1.bf16.msra.mxu0 %v2848
      %3530 = vmatprep.subr.bf16.mxu0 %v2853
      %3531 = vmatpush1.bf16.msra.mxu0 %v2852
      %3532 = vmatprep.subr.bf16.mxu0 %v2857
      %3533 = vmatpush1.bf16.msra.mxu0 %v2856
      %3534 = vmatprep.mubr.bf16.mxu0 %v1777
      %3535 = vmatmul.mubr.bf16.gmra.mrb[0].mxu0 %v1776
      %v3536 = vpop.f32.mrb[0].mxu0
      %v3537 = vadd.f32 %v3344, %v3536
      %v3538 = vpop.f32.mrb[0].mxu0
      %v3539 = vadd.f32 %v3346, %v3538
      %v3540 = vpop.f32.mrb[0].mxu0
      %v3541 = vadd.f32 %v3348, %v3540
      %v3542 = vpop.f32.mrb[0].mxu0
      %v3543 = vadd.f32 %v3350, %v3542
      %3544 = vmatprep.mubr.bf16.mxu0 %v1784
      %3545 = vmatmul.mubr.bf16.gmra.mrb[0].mxu0 %v1783
      %v3546 = vpop.f32.mrb[0].mxu0
      %v3547 = vadd.f32 %v3354, %v3546
      %v3548 = vpop.f32.mrb[0].mxu0
      %v3549 = vadd.f32 %v3356, %v3548
      %v3550 = vpop.f32.mrb[0].mxu0
      %v3551 = vadd.f32 %v3358, %v3550
      %v3552 = vpop.f32.mrb[0].mxu0
      %v3553 = vadd.f32 %v3360, %v3552
      %3554 = vmatprep.mubr.bf16.mxu0 %v1791
      %3555 = vmatmul.mubr.bf16.gmra.mrb[0].mxu0 %v1790
      %v3556 = vpop.f32.mrb[0].mxu0
      %v3557 = vadd.f32 %v3364, %v3556
      %v3558 = vpop.f32.mrb[0].mxu0
      %v3559 = vadd.f32 %v3366, %v3558
      %v3560 = vpop.f32.mrb[0].mxu0
      %v3561 = vadd.f32 %v3368, %v3560
      %v3562 = vpop.f32.mrb[0].mxu0
      %v3563 = vadd.f32 %v3370, %v3562
      %3564 = vmatprep.mubr.bf16.mxu0 %v1798
      %3565 = vmatmul.mubr.bf16.gmra.mrb[0].mxu0 %v1797
      %v3566 = vpop.f32.mrb[0].mxu0
      %v3567 = vadd.f32 %v3374, %v3566
      %v3568 = vpop.f32.mrb[0].mxu0
      %v3569 = vadd.f32 %v3376, %v3568
      %v3570 = vpop.f32.mrb[0].mxu0
      %v3571 = vadd.f32 %v3378, %v3570
      %v3572 = vpop.f32.mrb[0].mxu0
      %v3573 = vadd.f32 %v3380, %v3572
      %3574 = vmatprep.mubr.bf16.mxu0 %v1805
      %3575 = vmatmul.mubr.bf16.gmra.mrb[0].mxu0 %v1804
      %v3576 = vpop.f32.mrb[0].mxu0
      %v3577 = vadd.f32 %v3384, %v3576
      %v3578 = vpop.f32.mrb[0].mxu0
      %v3579 = vadd.f32 %v3386, %v3578
      %v3580 = vpop.f32.mrb[0].mxu0
      %v3581 = vadd.f32 %v3388, %v3580
      %v3582 = vpop.f32.mrb[0].mxu0
      %v3583 = vadd.f32 %v3390, %v3582
      %3584 = vmatprep.mubr.bf16.mxu0 %v1812
      %3585 = vmatmul.mubr.bf16.gmra.mrb[0].mxu0 %v1811
      %v3586 = vpop.f32.mrb[0].mxu0
      %v3587 = vadd.f32 %v3394, %v3586
      %v3588 = vpop.f32.mrb[0].mxu0
      %v3589 = vadd.f32 %v3396, %v3588
      %v3590 = vpop.f32.mrb[0].mxu0
      %v3591 = vadd.f32 %v3398, %v3590
      %v3592 = vpop.f32.mrb[0].mxu0
      %v3593 = vadd.f32 %v3400, %v3592
      %3594 = vmatprep.mubr.bf16.mxu0 %v1819
      %3595 = vmatmul.mubr.bf16.gmra.mrb[0].mxu0 %v1818
      %v3596 = vpop.f32.mrb[0].mxu0
      %v3597 = vadd.f32 %v3404, %v3596
      %v3598 = vpop.f32.mrb[0].mxu0
      %v3599 = vadd.f32 %v3406, %v3598
      %v3600 = vpop.f32.mrb[0].mxu0
      %v3601 = vadd.f32 %v3408, %v3600
      %v3602 = vpop.f32.mrb[0].mxu0
      %v3603 = vadd.f32 %v3410, %v3602
      %3604 = vmatprep.mubr.bf16.mxu0 %v1826
      %3605 = vmatmul.mubr.bf16.gmra.mrb[0].mxu0 %v1825
      %v3606 = vpop.f32.mrb[0].mxu0
      %v3607 = vadd.f32 %v3414, %v3606
      %v3608 = vpop.f32.mrb[0].mxu0
      %v3609 = vadd.f32 %v3416, %v3608
      %v3610 = vpop.f32.mrb[0].mxu0
      %v3611 = vadd.f32 %v3418, %v3610
      %v3612 = vpop.f32.mrb[0].mxu0
      %v3613 = vadd.f32 %v3420, %v3612
      %3614 = vmatprep.mubr.bf16.mxu0 %v1833
      %3615 = vmatmul.mubr.bf16.gmra.mrb[0].mxu0 %v1832
      %v3616 = vpop.f32.mrb[0].mxu0
      %v3617 = vadd.f32 %v3424, %v3616
      %v3618 = vpop.f32.mrb[0].mxu0
      %v3619 = vadd.f32 %v3426, %v3618
      %v3620 = vpop.f32.mrb[0].mxu0
      %v3621 = vadd.f32 %v3428, %v3620
      %v3622 = vpop.f32.mrb[0].mxu0
      %v3623 = vadd.f32 %v3430, %v3622
      %3624 = vmatprep.mubr.bf16.mxu0 %v1840
      %3625 = vmatmul.mubr.bf16.gmra.mrb[0].mxu0 %v1839
      %v3626 = vpop.f32.mrb[0].mxu0
      %v3627 = vadd.f32 %v3434, %v3626
      %v3628 = vpop.f32.mrb[0].mxu0
      %v3629 = vadd.f32 %v3436, %v3628
      %v3630 = vpop.f32.mrb[0].mxu0
      %v3631 = vadd.f32 %v3438, %v3630
      %v3632 = vpop.f32.mrb[0].mxu0
      %v3633 = vadd.f32 %v3440, %v3632
      %3634 = vmatprep.mubr.bf16.mxu0 %v1847
      %3635 = vmatmul.mubr.bf16.gmra.mrb[0].mxu0 %v1846
      %v3636 = vpop.f32.mrb[0].mxu0
      %v3637 = vadd.f32 %v3444, %v3636
      %v3638 = vpop.f32.mrb[0].mxu0
      %v3639 = vadd.f32 %v3446, %v3638
      %v3640 = vpop.f32.mrb[0].mxu0
      %v3641 = vadd.f32 %v3448, %v3640
      %v3642 = vpop.f32.mrb[0].mxu0
      %v3643 = vadd.f32 %v3450, %v3642
      %3644 = vmatprep.mubr.bf16.mxu0 %v1854
      %3645 = vmatmul.mubr.bf16.gmra.mrb[0].mxu0 %v1853
      %v3646 = vpop.f32.mrb[0].mxu0
      %v3647 = vadd.f32 %v3454, %v3646
      %v3648 = vpop.f32.mrb[0].mxu0
      %v3649 = vadd.f32 %v3456, %v3648
      %v3650 = vpop.f32.mrb[0].mxu0
      %v3651 = vadd.f32 %v3458, %v3650
      %v3652 = vpop.f32.mrb[0].mxu0
      %v3653 = vadd.f32 %v3460, %v3652
      %3654 = vmatprep.mubr.bf16.mxu0 %v1861
      %3655 = vmatmul.mubr.bf16.gmra.mrb[0].mxu0 %v1860
      %v3656 = vpop.f32.mrb[0].mxu0
      %v3657 = vadd.f32 %v3464, %v3656
      %v3658 = vpop.f32.mrb[0].mxu0
      %v3659 = vadd.f32 %v3466, %v3658
      %v3660 = vpop.f32.mrb[0].mxu0
      %v3661 = vadd.f32 %v3468, %v3660
      %v3662 = vpop.f32.mrb[0].mxu0
      %v3663 = vadd.f32 %v3470, %v3662
      %3664 = vmatprep.mubr.bf16.mxu0 %v1868
      %3665 = vmatmul.mubr.bf16.gmra.mrb[0].mxu0 %v1867
      %v3666 = vpop.f32.mrb[0].mxu0
      %v3667 = vadd.f32 %v3474, %v3666
      %v3668 = vpop.f32.mrb[0].mxu0
      %v3669 = vadd.f32 %v3476, %v3668
      %v3670 = vpop.f32.mrb[0].mxu0
      %v3671 = vadd.f32 %v3478, %v3670
      %v3672 = vpop.f32.mrb[0].mxu0
      %v3673 = vadd.f32 %v3480, %v3672
      %3674 = vmatprep.mubr.bf16.mxu0 %v1875
      %3675 = vmatmul.mubr.bf16.gmra.mrb[0].mxu0 %v1874
      %v3676 = vpop.f32.mrb[0].mxu0
      %v3677 = vadd.f32 %v3484, %v3676
      %v3678 = vpop.f32.mrb[0].mxu0
      %v3679 = vadd.f32 %v3486, %v3678
      %v3680 = vpop.f32.mrb[0].mxu0
      %v3681 = vadd.f32 %v3488, %v3680
      %v3682 = vpop.f32.mrb[0].mxu0
      %v3683 = vadd.f32 %v3490, %v3682
      %3684 = vmatprep.mubr.bf16.mxu0 %v1882
      %3685 = vmatmul.mubr.bf16.gmra.mrb[0].mxu0 %v1881
      %v3686 = vpop.f32.mrb[0].mxu0
      %v3687 = vadd.f32 %v3494, %v3686
      %v3688 = vpop.f32.mrb[0].mxu0
      %v3689 = vadd.f32 %v3496, %v3688
      %v3690 = vpop.f32.mrb[0].mxu0
      %v3691 = vadd.f32 %v3498, %v3690
      %v3692 = vpop.f32.mrb[0].mxu0
      %v3693 = vadd.f32 %v3500, %v3692
      %3694 = vdwg.mxu0
      %3695 = vmatprep.subr.bf16.mxu0 %v2861
      %3696 = vmatpush1.bf16.msra.mxu0 %v2860
      %3697 = vmatprep.subr.bf16.mxu0 %v2865
      %3698 = vmatpush1.bf16.msra.mxu0 %v2864
      %3699 = vmatprep.subr.bf16.mxu0 %v2869
      %3700 = vmatpush1.bf16.msra.mxu0 %v2868
      %3701 = vmatprep.subr.bf16.mxu0 %v2873
      %3702 = vmatpush1.bf16.msra.mxu0 %v2872
      %3703 = vmatprep.subr.bf16.mxu0 %v2877
      %3704 = vmatpush1.bf16.msra.mxu0 %v2876
      %3705 = vmatprep.subr.bf16.mxu0 %v2881
      %3706 = vmatpush1.bf16.msra.mxu0 %v2880
      %3707 = vmatprep.subr.bf16.mxu0 %v2885
      %3708 = vmatpush1.bf16.msra.mxu0 %v2884
      %3709 = vmatprep.subr.bf16.mxu0 %v2889
      %3710 = vmatpush1.bf16.msra.mxu0 %v2888
      %3711 = vmatprep.subr.bf16.mxu0 0
      %3712 = vmatpush1.bf16.msra.mxu0 0
      %3713 = vmatprep.subr.bf16.mxu0 0
      %3714 = vmatpush1.bf16.msra.mxu0 0
      %3715 = vmatprep.subr.bf16.mxu0 0
      %3716 = vmatpush1.bf16.msra.mxu0 0
      %3717 = vmatprep.subr.bf16.mxu0 0
      %3718 = vmatpush1.bf16.msra.mxu0 0
      %3719 = vmatprep.subr.bf16.mxu0 0
      %3720 = vmatpush1.bf16.msra.mxu0 0
      %3721 = vmatprep.subr.bf16.mxu0 0
      %3722 = vmatpush1.bf16.msra.mxu0 0
      %3723 = vmatprep.subr.bf16.mxu0 0
      %3724 = vmatpush1.bf16.msra.mxu0 0
      %3725 = vmatprep.subr.bf16.mxu0 0
      %3726 = vmatpush1.bf16.msra.mxu0 0
      %3727 = vmatprep.mubr.bf16.mxu0 0
      %3728 = vmatmul.mubr.bf16.gmra.mrb[0].mxu0 %v1778
      %v3729 = vpop.f32.mrb[0].mxu0
      %v3730 = vadd.f32 %v3537, %v3729
      %v3731 = vpop.f32.mrb[0].mxu0
      %v3732 = vadd.f32 %v3539, %v3731
      %v3733 = vpop.f32.mrb[0].mxu0
      %v3734 = vadd.f32 %v3541, %v3733
      %v3735 = vpop.f32.mrb[0].mxu0
      %v3736 = vadd.f32 %v3543, %v3735
      %3737 = vmatprep.mubr.bf16.mxu0 0
      %3738 = vmatmul.mubr.bf16.gmra.mrb[0].mxu0 %v1785
      %v3739 = vpop.f32.mrb[0].mxu0
      %v3740 = vadd.f32 %v3547, %v3739
      %v3741 = vpop.f32.mrb[0].mxu0
      %v3742 = vadd.f32 %v3549, %v3741
      %v3743 = vpop.f32.mrb[0].mxu0
      %v3744 = vadd.f32 %v3551, %v3743
      %v3745 = vpop.f32.mrb[0].mxu0
      %v3746 = vadd.f32 %v3553, %v3745
      %3747 = vmatprep.mubr.bf16.mxu0 0
      %3748 = vmatmul.mubr.bf16.gmra.mrb[0].mxu0 %v1792
      %v3749 = vpop.f32.mrb[0].mxu0
      %v3750 = vadd.f32 %v3557, %v3749
      %v3751 = vpop.f32.mrb[0].mxu0
      %v3752 = vadd.f32 %v3559, %v3751
      %v3753 = vpop.f32.mrb[0].mxu0
      %v3754 = vadd.f32 %v3561, %v3753
      %v3755 = vpop.f32.mrb[0].mxu0
      %v3756 = vadd.f32 %v3563, %v3755
      %3757 = vmatprep.mubr.bf16.mxu0 0
      %3758 = vmatmul.mubr.bf16.gmra.mrb[0].mxu0 %v1799
      %v3759 = vpop.f32.mrb[0].mxu0
      %v3760 = vadd.f32 %v3567, %v3759
      %v3761 = vpop.f32.mrb[0].mxu0
      %v3762 = vadd.f32 %v3569, %v3761
      %v3763 = vpop.f32.mrb[0].mxu0
      %v3764 = vadd.f32 %v3571, %v3763
      %v3765 = vpop.f32.mrb[0].mxu0
      %v3766 = vadd.f32 %v3573, %v3765
      %3767 = vmatprep.mubr.bf16.mxu0 0
      %3768 = vmatmul.mubr.bf16.gmra.mrb[0].mxu0 %v1806
      %v3769 = vpop.f32.mrb[0].mxu0
      %v3770 = vadd.f32 %v3577, %v3769
      %v3771 = vpop.f32.mrb[0].mxu0
      %v3772 = vadd.f32 %v3579, %v3771
      %v3773 = vpop.f32.mrb[0].mxu0
      %v3774 = vadd.f32 %v3581, %v3773
      %v3775 = vpop.f32.mrb[0].mxu0
      %v3776 = vadd.f32 %v3583, %v3775
      %3777 = vmatprep.mubr.bf16.mxu0 0
      %3778 = vmatmul.mubr.bf16.gmra.mrb[0].mxu0 %v1813
      %v3779 = vpop.f32.mrb[0].mxu0
      %v3780 = vadd.f32 %v3587, %v3779
      %v3781 = vpop.f32.mrb[0].mxu0
      %v3782 = vadd.f32 %v3589, %v3781
      %v3783 = vpop.f32.mrb[0].mxu0
      %v3784 = vadd.f32 %v3591, %v3783
      %v3785 = vpop.f32.mrb[0].mxu0
      %v3786 = vadd.f32 %v3593, %v3785
      %3787 = vmatprep.mubr.bf16.mxu0 0
      %3788 = vmatmul.mubr.bf16.gmra.mrb[0].mxu0 %v1820
      %v3789 = vpop.f32.mrb[0].mxu0
      %v3790 = vadd.f32 %v3597, %v3789
      %v3791 = vpop.f32.mrb[0].mxu0
      %v3792 = vadd.f32 %v3599, %v3791
      %v3793 = vpop.f32.mrb[0].mxu0
      %v3794 = vadd.f32 %v3601, %v3793
      %v3795 = vpop.f32.mrb[0].mxu0
      %v3796 = vadd.f32 %v3603, %v3795
      %3797 = vmatprep.mubr.bf16.mxu0 0
      %3798 = vmatmul.mubr.bf16.gmra.mrb[0].mxu0 %v1827
      %v3799 = vpop.f32.mrb[0].mxu0
      %v3800 = vadd.f32 %v3607, %v3799
      %v3801 = vpop.f32.mrb[0].mxu0
      %v3802 = vadd.f32 %v3609, %v3801
      %v3803 = vpop.f32.mrb[0].mxu0
      %v3804 = vadd.f32 %v3611, %v3803
      %v3805 = vpop.f32.mrb[0].mxu0
      %v3806 = vadd.f32 %v3613, %v3805
      %3807 = vmatprep.mubr.bf16.mxu0 0
      %3808 = vmatmul.mubr.bf16.gmra.mrb[0].mxu0 %v1834
      %v3809 = vpop.f32.mrb[0].mxu0
      %v3810 = vadd.f32 %v3617, %v3809
      %v3811 = vpop.f32.mrb[0].mxu0
      %v3812 = vadd.f32 %v3619, %v3811
      %v3813 = vpop.f32.mrb[0].mxu0
      %v3814 = vadd.f32 %v3621, %v3813
      %v3815 = vpop.f32.mrb[0].mxu0
      %v3816 = vadd.f32 %v3623, %v3815
      %3817 = vmatprep.mubr.bf16.mxu0 0
      %3818 = vmatmul.mubr.bf16.gmra.mrb[0].mxu0 %v1841
      %v3819 = vpop.f32.mrb[0].mxu0
      %v3820 = vadd.f32 %v3627, %v3819
      %v3821 = vpop.f32.mrb[0].mxu0
      %v3822 = vadd.f32 %v3629, %v3821
      %v3823 = vpop.f32.mrb[0].mxu0
      %v3824 = vadd.f32 %v3631, %v3823
      %v3825 = vpop.f32.mrb[0].mxu0
      %v3826 = vadd.f32 %v3633, %v3825
      %3827 = vmatprep.mubr.bf16.mxu0 0
      %3828 = vmatmul.mubr.bf16.gmra.mrb[0].mxu0 %v1848
      %v3829 = vpop.f32.mrb[0].mxu0
      %v3830 = vadd.f32 %v3637, %v3829
      %v3831 = vpop.f32.mrb[0].mxu0
      %v3832 = vadd.f32 %v3639, %v3831
      %v3833 = vpop.f32.mrb[0].mxu0
      %v3834 = vadd.f32 %v3641, %v3833
      %v3835 = vpop.f32.mrb[0].mxu0
      %v3836 = vadd.f32 %v3643, %v3835
      %3837 = vmatprep.mubr.bf16.mxu0 0
      %3838 = vmatmul.mubr.bf16.gmra.mrb[0].mxu0 %v1855
      %v3839 = vpop.f32.mrb[0].mxu0
      %v3840 = vadd.f32 %v3647, %v3839
      %v3841 = vpop.f32.mrb[0].mxu0
      %v3842 = vadd.f32 %v3649, %v3841
      %v3843 = vpop.f32.mrb[0].mxu0
      %v3844 = vadd.f32 %v3651, %v3843
      %v3845 = vpop.f32.mrb[0].mxu0
      %v3846 = vadd.f32 %v3653, %v3845
      %3847 = vmatprep.mubr.bf16.mxu0 0
      %3848 = vmatmul.mubr.bf16.gmra.mrb[0].mxu0 %v1862
      %v3849 = vpop.f32.mrb[0].mxu0
      %v3850 = vadd.f32 %v3657, %v3849
      %v3851 = vpop.f32.mrb[0].mxu0
      %v3852 = vadd.f32 %v3659, %v3851
      %v3853 = vpop.f32.mrb[0].mxu0
      %v3854 = vadd.f32 %v3661, %v3853
      %v3855 = vpop.f32.mrb[0].mxu0
      %v3856 = vadd.f32 %v3663, %v3855
      %3857 = vmatprep.mubr.bf16.mxu0 0
      %3858 = vmatmul.mubr.bf16.gmra.mrb[0].mxu0 %v1869
      %v3859 = vpop.f32.mrb[0].mxu0
      %v3860 = vadd.f32 %v3667, %v3859
      %v3861 = vpop.f32.mrb[0].mxu0
      %v3862 = vadd.f32 %v3669, %v3861
      %v3863 = vpop.f32.mrb[0].mxu0
      %v3864 = vadd.f32 %v3671, %v3863
      %v3865 = vpop.f32.mrb[0].mxu0
      %v3866 = vadd.f32 %v3673, %v3865
      %3867 = vmatprep.mubr.bf16.mxu0 0
      %3868 = vmatmul.mubr.bf16.gmra.mrb[0].mxu0 %v1876
      %v3869 = vpop.f32.mrb[0].mxu0
      %v3870 = vadd.f32 %v3677, %v3869
      %v3871 = vpop.f32.mrb[0].mxu0
      %v3872 = vadd.f32 %v3679, %v3871
      %v3873 = vpop.f32.mrb[0].mxu0
      %v3874 = vadd.f32 %v3681, %v3873
      %v3875 = vpop.f32.mrb[0].mxu0
      %v3876 = vadd.f32 %v3683, %v3875
      %3877 = vmatprep.mubr.bf16.mxu0 0
      %3878 = vmatmul.mubr.bf16.gmra.mrb[0].mxu0 %v1883
      %v3879 = vpop.f32.mrb[0].mxu0
      %v3880 = vadd.f32 %v3687, %v3879
      %v3881 = vpop.f32.mrb[0].mxu0
      %v3882 = vadd.f32 %v3689, %v3881
      %v3883 = vpop.f32.mrb[0].mxu0
      %v3884 = vadd.f32 %v3691, %v3883
      %v3885 = vpop.f32.mrb[0].mxu0
      %v3886 = vadd.f32 %v3693, %v3885
      %3887 = vdwg.mxu0
      %3888 = vmatprep.subr.bf16.mxu0 %v2671
      %3889 = vmatpush1.bf16.msra.mxu0 %v2670
      %3890 = vmatprep.subr.bf16.mxu0 %v2675
      %3891 = vmatpush1.bf16.msra.mxu0 %v2674
      %3892 = vmatprep.subr.bf16.mxu0 %v2679
      %3893 = vmatpush1.bf16.msra.mxu0 %v2678
      %3894 = vmatprep.subr.bf16.mxu0 %v2683
      %3895 = vmatpush1.bf16.msra.mxu0 %v2682
      %3896 = vmatprep.subr.bf16.mxu0 %v2687
      %3897 = vmatpush1.bf16.msra.mxu0 %v2686
      %3898 = vmatprep.subr.bf16.mxu0 %v2691
      %3899 = vmatpush1.bf16.msra.mxu0 %v2690
      %3900 = vmatprep.subr.bf16.mxu0 %v2695
      %3901 = vmatpush1.bf16.msra.mxu0 %v2694
      %3902 = vmatprep.subr.bf16.mxu0 %v2699
      %3903 = vmatpush1.bf16.msra.mxu0 %v2698
      %3904 = vmatprep.subr.bf16.mxu0 %v2703
      %3905 = vmatpush1.bf16.msra.mxu0 %v2702
      %3906 = vmatprep.subr.bf16.mxu0 %v2707
      %3907 = vmatpush1.bf16.msra.mxu0 %v2706
      %3908 = vmatprep.subr.bf16.mxu0 %v2711
      %3909 = vmatpush1.bf16.msra.mxu0 %v2710
      %3910 = vmatprep.subr.bf16.mxu0 %v2715
      %3911 = vmatpush1.bf16.msra.mxu0 %v2714
      %3912 = vmatprep.subr.bf16.mxu0 %v2719
      %3913 = vmatpush1.bf16.msra.mxu0 %v2718
      %3914 = vmatprep.subr.bf16.mxu0 %v2723
      %3915 = vmatpush1.bf16.msra.mxu0 %v2722
      %3916 = vmatprep.subr.bf16.mxu0 %v2727
      %3917 = vmatpush1.bf16.msra.mxu0 %v2726
      %3918 = vmatprep.subr.bf16.mxu0 %v2731
      %3919 = vmatpush1.bf16.msra.mxu0 %v2730
      %3920 = vmatprep.mubr.bf16.mxu0 %v1773
      %3921 = vmatmul.mubr.bf16.gmra.mrb[0].mxu0 %v1772
      %v3922 = vpop.f32.mrb[0].mxu0
      %v3923 = vadd.f32 %v1262, %v3922
      %v3924 = vpop.f32.mrb[0].mxu0
      %v3925 = vadd.f32 %v1264, %v3924
      %v3926 = vpop.f32.mrb[0].mxu0
      %v3927 = vadd.f32 %v1266, %v3926
      %v3928 = vpop.f32.mrb[0].mxu0
      %v3929 = vadd.f32 %v1268, %v3928
      %3930 = vmatprep.mubr.bf16.mxu0 %v1780
      %3931 = vmatmul.mubr.bf16.gmra.mrb[0].mxu0 %v1779
      %v3932 = vpop.f32.mrb[0].mxu0
      %v3933 = vadd.f32 %v1272, %v3932
      %v3934 = vpop.f32.mrb[0].mxu0
      %v3935 = vadd.f32 %v1274, %v3934
      %v3936 = vpop.f32.mrb[0].mxu0
      %v3937 = vadd.f32 %v1276, %v3936
      %v3938 = vpop.f32.mrb[0].mxu0
      %v3939 = vadd.f32 %v1278, %v3938
      %3940 = vmatprep.mubr.bf16.mxu0 %v1787
      %3941 = vmatmul.mubr.bf16.gmra.mrb[0].mxu0 %v1786
      %v3942 = vpop.f32.mrb[0].mxu0
      %v3943 = vadd.f32 %v1282, %v3942
      %v3944 = vpop.f32.mrb[0].mxu0
      %v3945 = vadd.f32 %v1284, %v3944
      %v3946 = vpop.f32.mrb[0].mxu0
      %v3947 = vadd.f32 %v1286, %v3946
      %v3948 = vpop.f32.mrb[0].mxu0
      %v3949 = vadd.f32 %v1288, %v3948
      %3950 = vmatprep.mubr.bf16.mxu0 %v1794
      %3951 = vmatmul.mubr.bf16.gmra.mrb[0].mxu0 %v1793
      %v3952 = vpop.f32.mrb[0].mxu0
      %v3953 = vadd.f32 %v1292, %v3952
      %v3954 = vpop.f32.mrb[0].mxu0
      %v3955 = vadd.f32 %v1294, %v3954
      %v3956 = vpop.f32.mrb[0].mxu0
      %v3957 = vadd.f32 %v1296, %v3956
      %v3958 = vpop.f32.mrb[0].mxu0
      %v3959 = vadd.f32 %v1298, %v3958
      %3960 = vmatprep.mubr.bf16.mxu0 %v1801
      %3961 = vmatmul.mubr.bf16.gmra.mrb[0].mxu0 %v1800
      %v3962 = vpop.f32.mrb[0].mxu0
      %v3963 = vadd.f32 %v1302, %v3962
      %v3964 = vpop.f32.mrb[0].mxu0
      %v3965 = vadd.f32 %v1304, %v3964
      %v3966 = vpop.f32.mrb[0].mxu0
      %v3967 = vadd.f32 %v1306, %v3966
      %v3968 = vpop.f32.mrb[0].mxu0
      %v3969 = vadd.f32 %v1308, %v3968
      %3970 = vmatprep.mubr.bf16.mxu0 %v1808
      %3971 = vmatmul.mubr.bf16.gmra.mrb[0].mxu0 %v1807
      %v3972 = vpop.f32.mrb[0].mxu0
      %v3973 = vadd.f32 %v1312, %v3972
      %v3974 = vpop.f32.mrb[0].mxu0
      %v3975 = vadd.f32 %v1314, %v3974
      %v3976 = vpop.f32.mrb[0].mxu0
      %v3977 = vadd.f32 %v1316, %v3976
      %v3978 = vpop.f32.mrb[0].mxu0
      %v3979 = vadd.f32 %v1318, %v3978
      %3980 = vmatprep.mubr.bf16.mxu0 %v1815
      %3981 = vmatmul.mubr.bf16.gmra.mrb[0].mxu0 %v1814
      %v3982 = vpop.f32.mrb[0].mxu0
      %v3983 = vadd.f32 %v1322, %v3982
      %v3984 = vpop.f32.mrb[0].mxu0
      %v3985 = vadd.f32 %v1324, %v3984
      %v3986 = vpop.f32.mrb[0].mxu0
      %v3987 = vadd.f32 %v1326, %v3986
      %v3988 = vpop.f32.mrb[0].mxu0
      %v3989 = vadd.f32 %v1328, %v3988
      %3990 = vmatprep.mubr.bf16.mxu0 %v1822
      %3991 = vmatmul.mubr.bf16.gmra.mrb[0].mxu0 %v1821
      %v3992 = vpop.f32.mrb[0].mxu0
      %v3993 = vadd.f32 %v1332, %v3992
      %v3994 = vpop.f32.mrb[0].mxu0
      %v3995 = vadd.f32 %v1334, %v3994
      %v3996 = vpop.f32.mrb[0].mxu0
      %v3997 = vadd.f32 %v1336, %v3996
      %v3998 = vpop.f32.mrb[0].mxu0
      %v3999 = vadd.f32 %v1338, %v3998
      %4000 = vmatprep.mubr.bf16.mxu0 %v1829
      %4001 = vmatmul.mubr.bf16.gmra.mrb[0].mxu0 %v1828
      %v4002 = vpop.f32.mrb[0].mxu0
      %v4003 = vadd.f32 %v1342, %v4002
      %v4004 = vpop.f32.mrb[0].mxu0
      %v4005 = vadd.f32 %v1344, %v4004
      %v4006 = vpop.f32.mrb[0].mxu0
      %v4007 = vadd.f32 %v1346, %v4006
      %v4008 = vpop.f32.mrb[0].mxu0
      %v4009 = vadd.f32 %v1348, %v4008
      %4010 = vmatprep.mubr.bf16.mxu0 %v1836
      %4011 = vmatmul.mubr.bf16.gmra.mrb[0].mxu0 %v1835
      %v4012 = vpop.f32.mrb[0].mxu0
      %v4013 = vadd.f32 %v1352, %v4012
      %v4014 = vpop.f32.mrb[0].mxu0
      %v4015 = vadd.f32 %v1354, %v4014
      %v4016 = vpop.f32.mrb[0].mxu0
      %v4017 = vadd.f32 %v1356, %v4016
      %v4018 = vpop.f32.mrb[0].mxu0
      %v4019 = vadd.f32 %v1358, %v4018
      %4020 = vmatprep.mubr.bf16.mxu0 %v1843
      %4021 = vmatmul.mubr.bf16.gmra.mrb[0].mxu0 %v1842
      %v4022 = vpop.f32.mrb[0].mxu0
      %v4023 = vadd.f32 %v1362, %v4022
      %v4024 = vpop.f32.mrb[0].mxu0
      %v4025 = vadd.f32 %v1364, %v4024
      %v4026 = vpop.f32.mrb[0].mxu0
      %v4027 = vadd.f32 %v1366, %v4026
      %v4028 = vpop.f32.mrb[0].mxu0
      %v4029 = vadd.f32 %v1368, %v4028
      %4030 = vmatprep.mubr.bf16.mxu0 %v1850
      %4031 = vmatmul.mubr.bf16.gmra.mrb[0].mxu0 %v1849
      %v4032 = vpop.f32.mrb[0].mxu0
      %v4033 = vadd.f32 %v1372, %v4032
      %v4034 = vpop.f32.mrb[0].mxu0
      %v4035 = vadd.f32 %v1374, %v4034
      %v4036 = vpop.f32.mrb[0].mxu0
      %v4037 = vadd.f32 %v1376, %v4036
      %v4038 = vpop.f32.mrb[0].mxu0
      %v4039 = vadd.f32 %v1378, %v4038
      %4040 = vmatprep.mubr.bf16.mxu0 %v1857
      %4041 = vmatmul.mubr.bf16.gmra.mrb[0].mxu0 %v1856
      %v4042 = vpop.f32.mrb[0].mxu0
      %v4043 = vadd.f32 %v1382, %v4042
      %v4044 = vpop.f32.mrb[0].mxu0
      %v4045 = vadd.f32 %v1384, %v4044
      %v4046 = vpop.f32.mrb[0].mxu0
      %v4047 = vadd.f32 %v1386, %v4046
      %v4048 = vpop.f32.mrb[0].mxu0
      %v4049 = vadd.f32 %v1388, %v4048
      %4050 = vmatprep.mubr.bf16.mxu0 %v1864
      %4051 = vmatmul.mubr.bf16.gmra.mrb[0].mxu0 %v1863
      %v4052 = vpop.f32.mrb[0].mxu0
      %v4053 = vadd.f32 %v1392, %v4052
      %v4054 = vpop.f32.mrb[0].mxu0
      %v4055 = vadd.f32 %v1394, %v4054
      %v4056 = vpop.f32.mrb[0].mxu0
      %v4057 = vadd.f32 %v1396, %v4056
      %v4058 = vpop.f32.mrb[0].mxu0
      %v4059 = vadd.f32 %v1398, %v4058
      %4060 = vmatprep.mubr.bf16.mxu0 %v1871
      %4061 = vmatmul.mubr.bf16.gmra.mrb[0].mxu0 %v1870
      %v4062 = vpop.f32.mrb[0].mxu0
      %v4063 = vadd.f32 %v1402, %v4062
      %v4064 = vpop.f32.mrb[0].mxu0
      %v4065 = vadd.f32 %v1404, %v4064
      %v4066 = vpop.f32.mrb[0].mxu0
      %v4067 = vadd.f32 %v1406, %v4066
      %v4068 = vpop.f32.mrb[0].mxu0
      %v4069 = vadd.f32 %v1408, %v4068
      %4070 = vmatprep.mubr.bf16.mxu0 %v1878
      %4071 = vmatmul.mubr.bf16.gmra.mrb[0].mxu0 %v1877
      %v4072 = vpop.f32.mrb[0].mxu0
      %v4073 = vadd.f32 %v1412, %v4072
      %v4074 = vpop.f32.mrb[0].mxu0
      %v4075 = vadd.f32 %v1414, %v4074
      %v4076 = vpop.f32.mrb[0].mxu0
      %v4077 = vadd.f32 %v1416, %v4076
      %v4078 = vpop.f32.mrb[0].mxu0
      %v4079 = vadd.f32 %v1418, %v4078
      %4080 = vdwg.mxu0
      %4081 = vmatprep.subr.bf16.mxu0 %v2735
      %4082 = vmatpush1.bf16.msra.mxu0 %v2734
      %4083 = vmatprep.subr.bf16.mxu0 %v2739
      %4084 = vmatpush1.bf16.msra.mxu0 %v2738
      %4085 = vmatprep.subr.bf16.mxu0 %v2743
      %4086 = vmatpush1.bf16.msra.mxu0 %v2742
      %4087 = vmatprep.subr.bf16.mxu0 %v2747
      %4088 = vmatpush1.bf16.msra.mxu0 %v2746
      %4089 = vmatprep.subr.bf16.mxu0 %v2751
      %4090 = vmatpush1.bf16.msra.mxu0 %v2750
      %4091 = vmatprep.subr.bf16.mxu0 %v2755
      %4092 = vmatpush1.bf16.msra.mxu0 %v2754
      %4093 = vmatprep.subr.bf16.mxu0 %v2759
      %4094 = vmatpush1.bf16.msra.mxu0 %v2758
      %4095 = vmatprep.subr.bf16.mxu0 %v2763
      %4096 = vmatpush1.bf16.msra.mxu0 %v2762
      %4097 = vmatprep.subr.bf16.mxu0 %v2767
      %4098 = vmatpush1.bf16.msra.mxu0 %v2766
      %4099 = vmatprep.subr.bf16.mxu0 %v2771
      %4100 = vmatpush1.bf16.msra.mxu0 %v2770
      %4101 = vmatprep.subr.bf16.mxu0 %v2775
      %4102 = vmatpush1.bf16.msra.mxu0 %v2774
      %4103 = vmatprep.subr.bf16.mxu0 %v2779
      %4104 = vmatpush1.bf16.msra.mxu0 %v2778
      %4105 = vmatprep.subr.bf16.mxu0 %v2783
      %4106 = vmatpush1.bf16.msra.mxu0 %v2782
      %4107 = vmatprep.subr.bf16.mxu0 %v2787
      %4108 = vmatpush1.bf16.msra.mxu0 %v2786
      %4109 = vmatprep.subr.bf16.mxu0 %v2791
      %4110 = vmatpush1.bf16.msra.mxu0 %v2790
      %4111 = vmatprep.subr.bf16.mxu0 %v2795
      %4112 = vmatpush1.bf16.msra.mxu0 %v2794
      %4113 = vmatprep.mubr.bf16.mxu0 %v1775
      %4114 = vmatmul.mubr.bf16.gmra.mrb[0].mxu0 %v1774
      %v4115 = vpop.f32.mrb[0].mxu0
      %v4116 = vadd.f32 %v3923, %v4115
      %v4117 = vpop.f32.mrb[0].mxu0
      %v4118 = vadd.f32 %v3925, %v4117
      %v4119 = vpop.f32.mrb[0].mxu0
      %v4120 = vadd.f32 %v3927, %v4119
      %v4121 = vpop.f32.mrb[0].mxu0
      %v4122 = vadd.f32 %v3929, %v4121
      %4123 = vmatprep.mubr.bf16.mxu0 %v1782
      %4124 = vmatmul.mubr.bf16.gmra.mrb[0].mxu0 %v1781
      %v4125 = vpop.f32.mrb[0].mxu0
      %v4126 = vadd.f32 %v3933, %v4125
      %v4127 = vpop.f32.mrb[0].mxu0
      %v4128 = vadd.f32 %v3935, %v4127
      %v4129 = vpop.f32.mrb[0].mxu0
      %v4130 = vadd.f32 %v3937, %v4129
      %v4131 = vpop.f32.mrb[0].mxu0
      %v4132 = vadd.f32 %v3939, %v4131
      %4133 = vmatprep.mubr.bf16.mxu0 %v1789
      %4134 = vmatmul.mubr.bf16.gmra.mrb[0].mxu0 %v1788
      %v4135 = vpop.f32.mrb[0].mxu0
      %v4136 = vadd.f32 %v3943, %v4135
      %v4137 = vpop.f32.mrb[0].mxu0
      %v4138 = vadd.f32 %v3945, %v4137
      %v4139 = vpop.f32.mrb[0].mxu0
      %v4140 = vadd.f32 %v3947, %v4139
      %v4141 = vpop.f32.mrb[0].mxu0
      %v4142 = vadd.f32 %v3949, %v4141
      %4143 = vmatprep.mubr.bf16.mxu0 %v1796
      %4144 = vmatmul.mubr.bf16.gmra.mrb[0].mxu0 %v1795
      %v4145 = vpop.f32.mrb[0].mxu0
      %v4146 = vadd.f32 %v3953, %v4145
      %v4147 = vpop.f32.mrb[0].mxu0
      %v4148 = vadd.f32 %v3955, %v4147
      %v4149 = vpop.f32.mrb[0].mxu0
      %v4150 = vadd.f32 %v3957, %v4149
      %v4151 = vpop.f32.mrb[0].mxu0
      %v4152 = vadd.f32 %v3959, %v4151
      %4153 = vmatprep.mubr.bf16.mxu0 %v1803
      %4154 = vmatmul.mubr.bf16.gmra.mrb[0].mxu0 %v1802
      %v4155 = vpop.f32.mrb[0].mxu0
      %v4156 = vadd.f32 %v3963, %v4155
      %v4157 = vpop.f32.mrb[0].mxu0
      %v4158 = vadd.f32 %v3965, %v4157
      %v4159 = vpop.f32.mrb[0].mxu0
      %v4160 = vadd.f32 %v3967, %v4159
      %v4161 = vpop.f32.mrb[0].mxu0
      %v4162 = vadd.f32 %v3969, %v4161
      %4163 = vmatprep.mubr.bf16.mxu0 %v1810
      %4164 = vmatmul.mubr.bf16.gmra.mrb[0].mxu0 %v1809
      %v4165 = vpop.f32.mrb[0].mxu0
      %v4166 = vadd.f32 %v3973, %v4165
      %v4167 = vpop.f32.mrb[0].mxu0
      %v4168 = vadd.f32 %v3975, %v4167
      %v4169 = vpop.f32.mrb[0].mxu0
      %v4170 = vadd.f32 %v3977, %v4169
      %v4171 = vpop.f32.mrb[0].mxu0
      %v4172 = vadd.f32 %v3979, %v4171
      %4173 = vmatprep.mubr.bf16.mxu0 %v1817
      %4174 = vmatmul.mubr.bf16.gmra.mrb[0].mxu0 %v1816
      %v4175 = vpop.f32.mrb[0].mxu0
      %v4176 = vadd.f32 %v3983, %v4175
      %v4177 = vpop.f32.mrb[0].mxu0
      %v4178 = vadd.f32 %v3985, %v4177
      %v4179 = vpop.f32.mrb[0].mxu0
      %v4180 = vadd.f32 %v3987, %v4179
      %v4181 = vpop.f32.mrb[0].mxu0
      %v4182 = vadd.f32 %v3989, %v4181
      %4183 = vmatprep.mubr.bf16.mxu0 %v1824
      %4184 = vmatmul.mubr.bf16.gmra.mrb[0].mxu0 %v1823
      %v4185 = vpop.f32.mrb[0].mxu0
      %v4186 = vadd.f32 %v3993, %v4185
      %v4187 = vpop.f32.mrb[0].mxu0
      %v4188 = vadd.f32 %v3995, %v4187
      %v4189 = vpop.f32.mrb[0].mxu0
      %v4190 = vadd.f32 %v3997, %v4189
      %v4191 = vpop.f32.mrb[0].mxu0
      %v4192 = vadd.f32 %v3999, %v4191
      %4193 = vmatprep.mubr.bf16.mxu0 %v1831
      %4194 = vmatmul.mubr.bf16.gmra.mrb[0].mxu0 %v1830
      %v4195 = vpop.f32.mrb[0].mxu0
      %v4196 = vadd.f32 %v4003, %v4195
      %v4197 = vpop.f32.mrb[0].mxu0
      %v4198 = vadd.f32 %v4005, %v4197
      %v4199 = vpop.f32.mrb[0].mxu0
      %v4200 = vadd.f32 %v4007, %v4199
      %v4201 = vpop.f32.mrb[0].mxu0
      %v4202 = vadd.f32 %v4009, %v4201
      %4203 = vmatprep.mubr.bf16.mxu0 %v1838
      %4204 = vmatmul.mubr.bf16.gmra.mrb[0].mxu0 %v1837
      %v4205 = vpop.f32.mrb[0].mxu0
      %v4206 = vadd.f32 %v4013, %v4205
      %v4207 = vpop.f32.mrb[0].mxu0
      %v4208 = vadd.f32 %v4015, %v4207
      %v4209 = vpop.f32.mrb[0].mxu0
      %v4210 = vadd.f32 %v4017, %v4209
      %v4211 = vpop.f32.mrb[0].mxu0
      %v4212 = vadd.f32 %v4019, %v4211
      %4213 = vmatprep.mubr.bf16.mxu0 %v1845
      %4214 = vmatmul.mubr.bf16.gmra.mrb[0].mxu0 %v1844
      %v4215 = vpop.f32.mrb[0].mxu0
      %v4216 = vadd.f32 %v4023, %v4215
      %v4217 = vpop.f32.mrb[0].mxu0
      %v4218 = vadd.f32 %v4025, %v4217
      %v4219 = vpop.f32.mrb[0].mxu0
      %v4220 = vadd.f32 %v4027, %v4219
      %v4221 = vpop.f32.mrb[0].mxu0
      %v4222 = vadd.f32 %v4029, %v4221
      %4223 = vmatprep.mubr.bf16.mxu0 %v1852
      %4224 = vmatmul.mubr.bf16.gmra.mrb[0].mxu0 %v1851
      %v4225 = vpop.f32.mrb[0].mxu0
      %v4226 = vadd.f32 %v4033, %v4225
      %v4227 = vpop.f32.mrb[0].mxu0
      %v4228 = vadd.f32 %v4035, %v4227
      %v4229 = vpop.f32.mrb[0].mxu0
      %v4230 = vadd.f32 %v4037, %v4229
      %v4231 = vpop.f32.mrb[0].mxu0
      %v4232 = vadd.f32 %v4039, %v4231
      %4233 = vmatprep.mubr.bf16.mxu0 %v1859
      %4234 = vmatmul.mubr.bf16.gmra.mrb[0].mxu0 %v1858
      %v4235 = vpop.f32.mrb[0].mxu0
      %v4236 = vadd.f32 %v4043, %v4235
      %v4237 = vpop.f32.mrb[0].mxu0
      %v4238 = vadd.f32 %v4045, %v4237
      %v4239 = vpop.f32.mrb[0].mxu0
      %v4240 = vadd.f32 %v4047, %v4239
      %v4241 = vpop.f32.mrb[0].mxu0
      %v4242 = vadd.f32 %v4049, %v4241
      %4243 = vmatprep.mubr.bf16.mxu0 %v1866
      %4244 = vmatmul.mubr.bf16.gmra.mrb[0].mxu0 %v1865
      %v4245 = vpop.f32.mrb[0].mxu0
      %v4246 = vadd.f32 %v4053, %v4245
      %v4247 = vpop.f32.mrb[0].mxu0
      %v4248 = vadd.f32 %v4055, %v4247
      %v4249 = vpop.f32.mrb[0].mxu0
      %v4250 = vadd.f32 %v4057, %v4249
      %v4251 = vpop.f32.mrb[0].mxu0
      %v4252 = vadd.f32 %v4059, %v4251
      %4253 = vmatprep.mubr.bf16.mxu0 %v1873
      %4254 = vmatmul.mubr.bf16.gmra.mrb[0].mxu0 %v1872
      %v4255 = vpop.f32.mrb[0].mxu0
      %v4256 = vadd.f32 %v4063, %v4255
      %v4257 = vpop.f32.mrb[0].mxu0
      %v4258 = vadd.f32 %v4065, %v4257
      %v4259 = vpop.f32.mrb[0].mxu0
      %v4260 = vadd.f32 %v4067, %v4259
      %v4261 = vpop.f32.mrb[0].mxu0
      %v4262 = vadd.f32 %v4069, %v4261
      %4263 = vmatprep.mubr.bf16.mxu0 %v1880
      %4264 = vmatmul.mubr.bf16.gmra.mrb[0].mxu0 %v1879
      %v4265 = vpop.f32.mrb[0].mxu0
      %v4266 = vadd.f32 %v4073, %v4265
      %v4267 = vpop.f32.mrb[0].mxu0
      %v4268 = vadd.f32 %v4075, %v4267
      %v4269 = vpop.f32.mrb[0].mxu0
      %v4270 = vadd.f32 %v4077, %v4269
      %v4271 = vpop.f32.mrb[0].mxu0
      %v4272 = vadd.f32 %v4079, %v4271
      %4273 = vdwg.mxu0
      %4274 = vmatprep.subr.bf16.mxu0 %v2799
      %4275 = vmatpush1.bf16.msra.mxu0 %v2798
      %4276 = vmatprep.subr.bf16.mxu0 %v2803
      %4277 = vmatpush1.bf16.msra.mxu0 %v2802
      %4278 = vmatprep.subr.bf16.mxu0 %v2807
      %4279 = vmatpush1.bf16.msra.mxu0 %v2806
      %4280 = vmatprep.subr.bf16.mxu0 %v2811
      %4281 = vmatpush1.bf16.msra.mxu0 %v2810
      %4282 = vmatprep.subr.bf16.mxu0 %v2815
      %4283 = vmatpush1.bf16.msra.mxu0 %v2814
      %4284 = vmatprep.subr.bf16.mxu0 %v2819
      %4285 = vmatpush1.bf16.msra.mxu0 %v2818
      %4286 = vmatprep.subr.bf16.mxu0 %v2823
      %4287 = vmatpush1.bf16.msra.mxu0 %v2822
      %4288 = vmatprep.subr.bf16.mxu0 %v2827
      %4289 = vmatpush1.bf16.msra.mxu0 %v2826
      %4290 = vmatprep.subr.bf16.mxu0 %v2831
      %4291 = vmatpush1.bf16.msra.mxu0 %v2830
      %4292 = vmatprep.subr.bf16.mxu0 %v2835
      %4293 = vmatpush1.bf16.msra.mxu0 %v2834
      %4294 = vmatprep.subr.bf16.mxu0 %v2839
      %4295 = vmatpush1.bf16.msra.mxu0 %v2838
      %4296 = vmatprep.subr.bf16.mxu0 %v2843
      %4297 = vmatpush1.bf16.msra.mxu0 %v2842
      %4298 = vmatprep.subr.bf16.mxu0 %v2847
      %4299 = vmatpush1.bf16.msra.mxu0 %v2846
      %4300 = vmatprep.subr.bf16.mxu0 %v2851
      %4301 = vmatpush1.bf16.msra.mxu0 %v2850
      %4302 = vmatprep.subr.bf16.mxu0 %v2855
      %4303 = vmatpush1.bf16.msra.mxu0 %v2854
      %4304 = vmatprep.subr.bf16.mxu0 %v2859
      %4305 = vmatpush1.bf16.msra.mxu0 %v2858
      %4306 = vmatprep.mubr.bf16.mxu0 %v1777
      %4307 = vmatmul.mubr.bf16.gmra.mrb[0].mxu0 %v1776
      %v4308 = vpop.f32.mrb[0].mxu0
      %v4309 = vadd.f32 %v4116, %v4308
      %v4310 = vpop.f32.mrb[0].mxu0
      %v4311 = vadd.f32 %v4118, %v4310
      %v4312 = vpop.f32.mrb[0].mxu0
      %v4313 = vadd.f32 %v4120, %v4312
      %v4314 = vpop.f32.mrb[0].mxu0
      %v4315 = vadd.f32 %v4122, %v4314
      %4316 = vmatprep.mubr.bf16.mxu0 %v1784
      %4317 = vmatmul.mubr.bf16.gmra.mrb[0].mxu0 %v1783
      %v4318 = vpop.f32.mrb[0].mxu0
      %v4319 = vadd.f32 %v4126, %v4318
      %v4320 = vpop.f32.mrb[0].mxu0
      %v4321 = vadd.f32 %v4128, %v4320
      %v4322 = vpop.f32.mrb[0].mxu0
      %v4323 = vadd.f32 %v4130, %v4322
      %v4324 = vpop.f32.mrb[0].mxu0
      %v4325 = vadd.f32 %v4132, %v4324
      %4326 = vmatprep.mubr.bf16.mxu0 %v1791
      %4327 = vmatmul.mubr.bf16.gmra.mrb[0].mxu0 %v1790
      %v4328 = vpop.f32.mrb[0].mxu0
      %v4329 = vadd.f32 %v4136, %v4328
      %v4330 = vpop.f32.mrb[0].mxu0
      %v4331 = vadd.f32 %v4138, %v4330
      %v4332 = vpop.f32.mrb[0].mxu0
      %v4333 = vadd.f32 %v4140, %v4332
      %v4334 = vpop.f32.mrb[0].mxu0
      %v4335 = vadd.f32 %v4142, %v4334
      %4336 = vmatprep.mubr.bf16.mxu0 %v1798
      %4337 = vmatmul.mubr.bf16.gmra.mrb[0].mxu0 %v1797
      %v4338 = vpop.f32.mrb[0].mxu0
      %v4339 = vadd.f32 %v4146, %v4338
      %v4340 = vpop.f32.mrb[0].mxu0
      %v4341 = vadd.f32 %v4148, %v4340
      %v4342 = vpop.f32.mrb[0].mxu0
      %v4343 = vadd.f32 %v4150, %v4342
      %v4344 = vpop.f32.mrb[0].mxu0
      %v4345 = vadd.f32 %v4152, %v4344
      %4346 = vmatprep.mubr.bf16.mxu0 %v1805
      %4347 = vmatmul.mubr.bf16.gmra.mrb[0].mxu0 %v1804
      %v4348 = vpop.f32.mrb[0].mxu0
      %v4349 = vadd.f32 %v4156, %v4348
      %v4350 = vpop.f32.mrb[0].mxu0
      %v4351 = vadd.f32 %v4158, %v4350
      %v4352 = vpop.f32.mrb[0].mxu0
      %v4353 = vadd.f32 %v4160, %v4352
      %v4354 = vpop.f32.mrb[0].mxu0
      %v4355 = vadd.f32 %v4162, %v4354
      %4356 = vmatprep.mubr.bf16.mxu0 %v1812
      %4357 = vmatmul.mubr.bf16.gmra.mrb[0].mxu0 %v1811
      %v4358 = vpop.f32.mrb[0].mxu0
      %v4359 = vadd.f32 %v4166, %v4358
      %v4360 = vpop.f32.mrb[0].mxu0
      %v4361 = vadd.f32 %v4168, %v4360
      %v4362 = vpop.f32.mrb[0].mxu0
      %v4363 = vadd.f32 %v4170, %v4362
      %v4364 = vpop.f32.mrb[0].mxu0
      %v4365 = vadd.f32 %v4172, %v4364
      %4366 = vmatprep.mubr.bf16.mxu0 %v1819
      %4367 = vmatmul.mubr.bf16.gmra.mrb[0].mxu0 %v1818
      %v4368 = vpop.f32.mrb[0].mxu0
      %v4369 = vadd.f32 %v4176, %v4368
      %v4370 = vpop.f32.mrb[0].mxu0
      %v4371 = vadd.f32 %v4178, %v4370
      %v4372 = vpop.f32.mrb[0].mxu0
      %v4373 = vadd.f32 %v4180, %v4372
      %v4374 = vpop.f32.mrb[0].mxu0
      %v4375 = vadd.f32 %v4182, %v4374
      %4376 = vmatprep.mubr.bf16.mxu0 %v1826
      %4377 = vmatmul.mubr.bf16.gmra.mrb[0].mxu0 %v1825
      %v4378 = vpop.f32.mrb[0].mxu0
      %v4379 = vadd.f32 %v4186, %v4378
      %v4380 = vpop.f32.mrb[0].mxu0
      %v4381 = vadd.f32 %v4188, %v4380
      %v4382 = vpop.f32.mrb[0].mxu0
      %v4383 = vadd.f32 %v4190, %v4382
      %v4384 = vpop.f32.mrb[0].mxu0
      %v4385 = vadd.f32 %v4192, %v4384
      %4386 = vmatprep.mubr.bf16.mxu0 %v1833
      %4387 = vmatmul.mubr.bf16.gmra.mrb[0].mxu0 %v1832
      %v4388 = vpop.f32.mrb[0].mxu0
      %v4389 = vadd.f32 %v4196, %v4388
      %v4390 = vpop.f32.mrb[0].mxu0
      %v4391 = vadd.f32 %v4198, %v4390
      %v4392 = vpop.f32.mrb[0].mxu0
      %v4393 = vadd.f32 %v4200, %v4392
      %v4394 = vpop.f32.mrb[0].mxu0
      %v4395 = vadd.f32 %v4202, %v4394
      %4396 = vmatprep.mubr.bf16.mxu0 %v1840
      %4397 = vmatmul.mubr.bf16.gmra.mrb[0].mxu0 %v1839
      %v4398 = vpop.f32.mrb[0].mxu0
      %v4399 = vadd.f32 %v4206, %v4398
      %v4400 = vpop.f32.mrb[0].mxu0
      %v4401 = vadd.f32 %v4208, %v4400
      %v4402 = vpop.f32.mrb[0].mxu0
      %v4403 = vadd.f32 %v4210, %v4402
      %v4404 = vpop.f32.mrb[0].mxu0
      %v4405 = vadd.f32 %v4212, %v4404
      %4406 = vmatprep.mubr.bf16.mxu0 %v1847
      %4407 = vmatmul.mubr.bf16.gmra.mrb[0].mxu0 %v1846
      %v4408 = vpop.f32.mrb[0].mxu0
      %v4409 = vadd.f32 %v4216, %v4408
      %v4410 = vpop.f32.mrb[0].mxu0
      %v4411 = vadd.f32 %v4218, %v4410
      %v4412 = vpop.f32.mrb[0].mxu0
      %v4413 = vadd.f32 %v4220, %v4412
      %v4414 = vpop.f32.mrb[0].mxu0
      %v4415 = vadd.f32 %v4222, %v4414
      %4416 = vmatprep.mubr.bf16.mxu0 %v1854
      %4417 = vmatmul.mubr.bf16.gmra.mrb[0].mxu0 %v1853
      %v4418 = vpop.f32.mrb[0].mxu0
      %v4419 = vadd.f32 %v4226, %v4418
      %v4420 = vpop.f32.mrb[0].mxu0
      %v4421 = vadd.f32 %v4228, %v4420
      %v4422 = vpop.f32.mrb[0].mxu0
      %v4423 = vadd.f32 %v4230, %v4422
      %v4424 = vpop.f32.mrb[0].mxu0
      %v4425 = vadd.f32 %v4232, %v4424
      %4426 = vmatprep.mubr.bf16.mxu0 %v1861
      %4427 = vmatmul.mubr.bf16.gmra.mrb[0].mxu0 %v1860
      %v4428 = vpop.f32.mrb[0].mxu0
      %v4429 = vadd.f32 %v4236, %v4428
      %v4430 = vpop.f32.mrb[0].mxu0
      %v4431 = vadd.f32 %v4238, %v4430
      %v4432 = vpop.f32.mrb[0].mxu0
      %v4433 = vadd.f32 %v4240, %v4432
      %v4434 = vpop.f32.mrb[0].mxu0
      %v4435 = vadd.f32 %v4242, %v4434
      %4436 = vmatprep.mubr.bf16.mxu0 %v1868
      %4437 = vmatmul.mubr.bf16.gmra.mrb[0].mxu0 %v1867
      %v4438 = vpop.f32.mrb[0].mxu0
      %v4439 = vadd.f32 %v4246, %v4438
      %v4440 = vpop.f32.mrb[0].mxu0
      %v4441 = vadd.f32 %v4248, %v4440
      %v4442 = vpop.f32.mrb[0].mxu0
      %v4443 = vadd.f32 %v4250, %v4442
      %v4444 = vpop.f32.mrb[0].mxu0
      %v4445 = vadd.f32 %v4252, %v4444
      %4446 = vmatprep.mubr.bf16.mxu0 %v1875
      %4447 = vmatmul.mubr.bf16.gmra.mrb[0].mxu0 %v1874
      %v4448 = vpop.f32.mrb[0].mxu0
      %v4449 = vadd.f32 %v4256, %v4448
      %v4450 = vpop.f32.mrb[0].mxu0
      %v4451 = vadd.f32 %v4258, %v4450
      %v4452 = vpop.f32.mrb[0].mxu0
      %v4453 = vadd.f32 %v4260, %v4452
      %v4454 = vpop.f32.mrb[0].mxu0
      %v4455 = vadd.f32 %v4262, %v4454
      %4456 = vmatprep.mubr.bf16.mxu0 %v1882
      %4457 = vmatmul.mubr.bf16.gmra.mrb[0].mxu0 %v1881
      %v4458 = vpop.f32.mrb[0].mxu0
      %v4459 = vadd.f32 %v4266, %v4458
      %v4460 = vpop.f32.mrb[0].mxu0
      %v4461 = vadd.f32 %v4268, %v4460
      %v4462 = vpop.f32.mrb[0].mxu0
      %v4463 = vadd.f32 %v4270, %v4462
      %v4464 = vpop.f32.mrb[0].mxu0
      %v4465 = vadd.f32 %v4272, %v4464
      %4466 = vdwg.mxu0
      %4467 = vmatprep.subr.bf16.mxu0 %v2863
      %4468 = vmatpush1.bf16.msra.mxu0 %v2862
      %4469 = vmatprep.subr.bf16.mxu0 %v2867
      %4470 = vmatpush1.bf16.msra.mxu0 %v2866
      %4471 = vmatprep.subr.bf16.mxu0 %v2871
      %4472 = vmatpush1.bf16.msra.mxu0 %v2870
      %4473 = vmatprep.subr.bf16.mxu0 %v2875
      %4474 = vmatpush1.bf16.msra.mxu0 %v2874
      %4475 = vmatprep.subr.bf16.mxu0 %v2879
      %4476 = vmatpush1.bf16.msra.mxu0 %v2878
      %4477 = vmatprep.subr.bf16.mxu0 %v2883
      %4478 = vmatpush1.bf16.msra.mxu0 %v2882
      %4479 = vmatprep.subr.bf16.mxu0 %v2887
      %4480 = vmatpush1.bf16.msra.mxu0 %v2886
      %4481 = vmatprep.subr.bf16.mxu0 %v2891
      %4482 = vmatpush1.bf16.msra.mxu0 %v2890
      %4483 = vmatprep.subr.bf16.mxu0 0
      %4484 = vmatpush1.bf16.msra.mxu0 0
      %4485 = vmatprep.subr.bf16.mxu0 0
      %4486 = vmatpush1.bf16.msra.mxu0 0
      %4487 = vmatprep.subr.bf16.mxu0 0
      %4488 = vmatpush1.bf16.msra.mxu0 0
      %4489 = vmatprep.subr.bf16.mxu0 0
      %4490 = vmatpush1.bf16.msra.mxu0 0
      %4491 = vmatprep.subr.bf16.mxu0 0
      %4492 = vmatpush1.bf16.msra.mxu0 0
      %4493 = vmatprep.subr.bf16.mxu0 0
      %4494 = vmatpush1.bf16.msra.mxu0 0
      %4495 = vmatprep.subr.bf16.mxu0 0
      %4496 = vmatpush1.bf16.msra.mxu0 0
      %4497 = vmatprep.subr.bf16.mxu0 0
      %4498 = vmatpush1.bf16.msra.mxu0 0
      %4499 = vmatprep.mubr.bf16.mxu0 0
      %4500 = vmatmul.mubr.bf16.gmra.mrb[0].mxu0 %v1778
      %v4501 = vpop.f32.mrb[0].mxu0
      %v4502 = vadd.f32 %v4309, %v4501
      %v4503 = vpop.f32.mrb[0].mxu0
      %v4504 = vadd.f32 %v4311, %v4503
      %v4505 = vpop.f32.mrb[0].mxu0
      %v4506 = vadd.f32 %v4313, %v4505
      %v4507 = vpop.f32.mrb[0].mxu0
      %v4508 = vadd.f32 %v4315, %v4507
      %4509 = vmatprep.mubr.bf16.mxu0 0
      %4510 = vmatmul.mubr.bf16.gmra.mrb[0].mxu0 %v1785
      %v4511 = vpop.f32.mrb[0].mxu0
      %v4512 = vadd.f32 %v4319, %v4511
      %v4513 = vpop.f32.mrb[0].mxu0
      %v4514 = vadd.f32 %v4321, %v4513
      %v4515 = vpop.f32.mrb[0].mxu0
      %v4516 = vadd.f32 %v4323, %v4515
      %v4517 = vpop.f32.mrb[0].mxu0
      %v4518 = vadd.f32 %v4325, %v4517
      %4519 = vmatprep.mubr.bf16.mxu0 0
      %4520 = vmatmul.mubr.bf16.gmra.mrb[0].mxu0 %v1792
      %v4521 = vpop.f32.mrb[0].mxu0
      %v4522 = vadd.f32 %v4329, %v4521
      %v4523 = vpop.f32.mrb[0].mxu0
      %v4524 = vadd.f32 %v4331, %v4523
      %v4525 = vpop.f32.mrb[0].mxu0
      %v4526 = vadd.f32 %v4333, %v4525
      %v4527 = vpop.f32.mrb[0].mxu0
      %v4528 = vadd.f32 %v4335, %v4527
      %4529 = vmatprep.mubr.bf16.mxu0 0
      %4530 = vmatmul.mubr.bf16.gmra.mrb[0].mxu0 %v1799
      %v4531 = vpop.f32.mrb[0].mxu0
      %v4532 = vadd.f32 %v4339, %v4531
      %v4533 = vpop.f32.mrb[0].mxu0
      %v4534 = vadd.f32 %v4341, %v4533
      %v4535 = vpop.f32.mrb[0].mxu0
      %v4536 = vadd.f32 %v4343, %v4535
      %v4537 = vpop.f32.mrb[0].mxu0
      %v4538 = vadd.f32 %v4345, %v4537
      %4539 = vmatprep.mubr.bf16.mxu0 0
      %4540 = vmatmul.mubr.bf16.gmra.mrb[0].mxu0 %v1806
      %v4541 = vpop.f32.mrb[0].mxu0
      %v4542 = vadd.f32 %v4349, %v4541
      %v4543 = vpop.f32.mrb[0].mxu0
      %v4544 = vadd.f32 %v4351, %v4543
      %v4545 = vpop.f32.mrb[0].mxu0
      %v4546 = vadd.f32 %v4353, %v4545
      %v4547 = vpop.f32.mrb[0].mxu0
      %v4548 = vadd.f32 %v4355, %v4547
      %4549 = vmatprep.mubr.bf16.mxu0 0
      %4550 = vmatmul.mubr.bf16.gmra.mrb[0].mxu0 %v1813
      %v4551 = vpop.f32.mrb[0].mxu0
      %v4552 = vadd.f32 %v4359, %v4551
      %v4553 = vpop.f32.mrb[0].mxu0
      %v4554 = vadd.f32 %v4361, %v4553
      %v4555 = vpop.f32.mrb[0].mxu0
      %v4556 = vadd.f32 %v4363, %v4555
      %v4557 = vpop.f32.mrb[0].mxu0
      %v4558 = vadd.f32 %v4365, %v4557
      %4559 = vmatprep.mubr.bf16.mxu0 0
      %4560 = vmatmul.mubr.bf16.gmra.mrb[0].mxu0 %v1820
      %v4561 = vpop.f32.mrb[0].mxu0
      %v4562 = vadd.f32 %v4369, %v4561
      %v4563 = vpop.f32.mrb[0].mxu0
      %v4564 = vadd.f32 %v4371, %v4563
      %v4565 = vpop.f32.mrb[0].mxu0
      %v4566 = vadd.f32 %v4373, %v4565
      %v4567 = vpop.f32.mrb[0].mxu0
      %v4568 = vadd.f32 %v4375, %v4567
      %4569 = vmatprep.mubr.bf16.mxu0 0
      %4570 = vmatmul.mubr.bf16.gmra.mrb[0].mxu0 %v1827
      %v4571 = vpop.f32.mrb[0].mxu0
      %v4572 = vadd.f32 %v4379, %v4571
      %v4573 = vpop.f32.mrb[0].mxu0
      %v4574 = vadd.f32 %v4381, %v4573
      %v4575 = vpop.f32.mrb[0].mxu0
      %v4576 = vadd.f32 %v4383, %v4575
      %v4577 = vpop.f32.mrb[0].mxu0
      %v4578 = vadd.f32 %v4385, %v4577
      %4579 = vmatprep.mubr.bf16.mxu0 0
      %4580 = vmatmul.mubr.bf16.gmra.mrb[0].mxu0 %v1834
      %v4581 = vpop.f32.mrb[0].mxu0
      %v4582 = vadd.f32 %v4389, %v4581
      %v4583 = vpop.f32.mrb[0].mxu0
      %v4584 = vadd.f32 %v4391, %v4583
      %v4585 = vpop.f32.mrb[0].mxu0
      %v4586 = vadd.f32 %v4393, %v4585
      %v4587 = vpop.f32.mrb[0].mxu0
      %v4588 = vadd.f32 %v4395, %v4587
      %4589 = vmatprep.mubr.bf16.mxu0 0
      %4590 = vmatmul.mubr.bf16.gmra.mrb[0].mxu0 %v1841
      %v4591 = vpop.f32.mrb[0].mxu0
      %v4592 = vadd.f32 %v4399, %v4591
      %v4593 = vpop.f32.mrb[0].mxu0
      %v4594 = vadd.f32 %v4401, %v4593
      %v4595 = vpop.f32.mrb[0].mxu0
      %v4596 = vadd.f32 %v4403, %v4595
      %v4597 = vpop.f32.mrb[0].mxu0
      %v4598 = vadd.f32 %v4405, %v4597
      %4599 = vmatprep.mubr.bf16.mxu0 0
      %4600 = vmatmul.mubr.bf16.gmra.mrb[0].mxu0 %v1848
      %v4601 = vpop.f32.mrb[0].mxu0
      %v4602 = vadd.f32 %v4409, %v4601
      %v4603 = vpop.f32.mrb[0].mxu0
      %v4604 = vadd.f32 %v4411, %v4603
      %v4605 = vpop.f32.mrb[0].mxu0
      %v4606 = vadd.f32 %v4413, %v4605
      %v4607 = vpop.f32.mrb[0].mxu0
      %v4608 = vadd.f32 %v4415, %v4607
      %4609 = vmatprep.mubr.bf16.mxu0 0
      %4610 = vmatmul.mubr.bf16.gmra.mrb[0].mxu0 %v1855
      %v4611 = vpop.f32.mrb[0].mxu0
      %v4612 = vadd.f32 %v4419, %v4611
      %v4613 = vpop.f32.mrb[0].mxu0
      %v4614 = vadd.f32 %v4421, %v4613
      %v4615 = vpop.f32.mrb[0].mxu0
      %v4616 = vadd.f32 %v4423, %v4615
      %v4617 = vpop.f32.mrb[0].mxu0
      %v4618 = vadd.f32 %v4425, %v4617
      %4619 = vmatprep.mubr.bf16.mxu0 0
      %4620 = vmatmul.mubr.bf16.gmra.mrb[0].mxu0 %v1862
      %v4621 = vpop.f32.mrb[0].mxu0
      %v4622 = vadd.f32 %v4429, %v4621
      %v4623 = vpop.f32.mrb[0].mxu0
      %v4624 = vadd.f32 %v4431, %v4623
      %v4625 = vpop.f32.mrb[0].mxu0
      %v4626 = vadd.f32 %v4433, %v4625
      %v4627 = vpop.f32.mrb[0].mxu0
      %v4628 = vadd.f32 %v4435, %v4627
      %4629 = vmatprep.mubr.bf16.mxu0 0
      %4630 = vmatmul.mubr.bf16.gmra.mrb[0].mxu0 %v1869
      %v4631 = vpop.f32.mrb[0].mxu0
      %v4632 = vadd.f32 %v4439, %v4631
      %v4633 = vpop.f32.mrb[0].mxu0
      %v4634 = vadd.f32 %v4441, %v4633
      %v4635 = vpop.f32.mrb[0].mxu0
      %v4636 = vadd.f32 %v4443, %v4635
      %v4637 = vpop.f32.mrb[0].mxu0
      %v4638 = vadd.f32 %v4445, %v4637
      %4639 = vmatprep.mubr.bf16.mxu0 0
      %4640 = vmatmul.mubr.bf16.gmra.mrb[0].mxu0 %v1876
      %v4641 = vpop.f32.mrb[0].mxu0
      %v4642 = vadd.f32 %v4449, %v4641
      %v4643 = vpop.f32.mrb[0].mxu0
      %v4644 = vadd.f32 %v4451, %v4643
      %v4645 = vpop.f32.mrb[0].mxu0
      %v4646 = vadd.f32 %v4453, %v4645
      %v4647 = vpop.f32.mrb[0].mxu0
      %v4648 = vadd.f32 %v4455, %v4647
      %4649 = vmatprep.mubr.bf16.mxu0 0
      %4650 = vmatmul.mubr.bf16.gmra.mrb[0].mxu0 %v1883
      %v4651 = vpop.f32.mrb[0].mxu0
      %v4652 = vadd.f32 %v4459, %v4651
      %v4653 = vpop.f32.mrb[0].mxu0
      %v4654 = vadd.f32 %v4461, %v4653
      %v4655 = vpop.f32.mrb[0].mxu0
      %v4656 = vadd.f32 %v4463, %v4655
      %v4657 = vpop.f32.mrb[0].mxu0
      %v4658 = vadd.f32 %v4465, %v4657
      %4659 = vdwg.mxu0
      %v4660 = vld [vmem:[%s4] sm:$0xf]
      %v4662 = vlaneseq
      %v4663 = vshrl.u32 %v4662, 7
      %v4664 = vsub.s32 0, %v4663
      %v4665 = vrot.slane %v4660, %v4664
      %v4666 = vlaneseq
      %v4667 = vshrl.u32 %v4666, 7
      %v4668 = vsub.s32 1, %v4667
      %v4669 = vrot.slane %v4660, %v4668
      %v4670 = vlaneseq
      %v4671 = vshrl.u32 %v4670, 7
      %v4672 = vsub.s32 2, %v4671
      %v4673 = vrot.slane %v4660, %v4672
      %v4674 = vlaneseq
      %v4675 = vshrl.u32 %v4674, 7
      %v4676 = vsub.s32 3, %v4675
      %v4677 = vrot.slane %v4660, %v4676
      %v4682 = vadd.f32 %v3730, %v4665
      %v4683 = vadd.f32 %v3732, %v4669
      %v4684 = vadd.f32 %v4502, %v4673
      %v4685 = vadd.f32 %v4504, %v4677
      %v4686 = vadd.f32 %v3734, %v4665
      %v4687 = vadd.f32 %v3736, %v4669
      %v4688 = vadd.f32 %v4506, %v4673
      %v4689 = vadd.f32 %v4508, %v4677
      %v4690 = vadd.f32 %v3740, %v4665
      %v4691 = vadd.f32 %v3742, %v4669
      %v4692 = vadd.f32 %v4512, %v4673
      %v4693 = vadd.f32 %v4514, %v4677
      %v4694 = vadd.f32 %v3744, %v4665
      %v4695 = vadd.f32 %v3746, %v4669
      %v4696 = vadd.f32 %v4516, %v4673
      %v4697 = vadd.f32 %v4518, %v4677
      %v4698 = vadd.f32 %v3750, %v4665
      %v4699 = vadd.f32 %v3752, %v4669
      %v4700 = vadd.f32 %v4522, %v4673
      %v4701 = vadd.f32 %v4524, %v4677
      %v4702 = vadd.f32 %v3754, %v4665
      %v4703 = vadd.f32 %v3756, %v4669
      %v4704 = vadd.f32 %v4526, %v4673
      %v4705 = vadd.f32 %v4528, %v4677
      %v4706 = vadd.f32 %v3760, %v4665
      %v4707 = vadd.f32 %v3762, %v4669
      %v4708 = vadd.f32 %v4532, %v4673
      %v4709 = vadd.f32 %v4534, %v4677
      %v4710 = vadd.f32 %v3764, %v4665
      %v4711 = vadd.f32 %v3766, %v4669
      %v4712 = vadd.f32 %v4536, %v4673
      %v4713 = vadd.f32 %v4538, %v4677
      %v4714 = vadd.f32 %v3770, %v4665
      %v4715 = vadd.f32 %v3772, %v4669
      %v4716 = vadd.f32 %v4542, %v4673
      %v4717 = vadd.f32 %v4544, %v4677
      %v4718 = vadd.f32 %v3774, %v4665
      %v4719 = vadd.f32 %v3776, %v4669
      %v4720 = vadd.f32 %v4546, %v4673
      %v4721 = vadd.f32 %v4548, %v4677
      %v4722 = vadd.f32 %v3780, %v4665
      %v4723 = vadd.f32 %v3782, %v4669
      %v4724 = vadd.f32 %v4552, %v4673
      %v4725 = vadd.f32 %v4554, %v4677
      %v4726 = vadd.f32 %v3784, %v4665
      %v4727 = vadd.f32 %v3786, %v4669
      %v4728 = vadd.f32 %v4556, %v4673
      %v4729 = vadd.f32 %v4558, %v4677
      %v4730 = vadd.f32 %v3790, %v4665
      %v4731 = vadd.f32 %v3792, %v4669
      %v4732 = vadd.f32 %v4562, %v4673
      %v4733 = vadd.f32 %v4564, %v4677
      %v4734 = vadd.f32 %v3794, %v4665
      %v4735 = vadd.f32 %v3796, %v4669
      %v4736 = vadd.f32 %v4566, %v4673
      %v4737 = vadd.f32 %v4568, %v4677
      %v4738 = vadd.f32 %v3800, %v4665
      %v4739 = vadd.f32 %v3802, %v4669
      %v4740 = vadd.f32 %v4572, %v4673
      %v4741 = vadd.f32 %v4574, %v4677
      %v4742 = vadd.f32 %v3804, %v4665
      %v4743 = vadd.f32 %v3806, %v4669
      %v4744 = vadd.f32 %v4576, %v4673
      %v4745 = vadd.f32 %v4578, %v4677
      %v4746 = vadd.f32 %v3810, %v4665
      %v4747 = vadd.f32 %v3812, %v4669
      %v4748 = vadd.f32 %v4582, %v4673
      %v4749 = vadd.f32 %v4584, %v4677
      %v4750 = vadd.f32 %v3814, %v4665
      %v4751 = vadd.f32 %v3816, %v4669
      %v4752 = vadd.f32 %v4586, %v4673
      %v4753 = vadd.f32 %v4588, %v4677
      %v4754 = vadd.f32 %v3820, %v4665
      %v4755 = vadd.f32 %v3822, %v4669
      %v4756 = vadd.f32 %v4592, %v4673
      %v4757 = vadd.f32 %v4594, %v4677
      %v4758 = vadd.f32 %v3824, %v4665
      %v4759 = vadd.f32 %v3826, %v4669
      %v4760 = vadd.f32 %v4596, %v4673
      %v4761 = vadd.f32 %v4598, %v4677
      %v4762 = vadd.f32 %v3830, %v4665
      %v4763 = vadd.f32 %v3832, %v4669
      %v4764 = vadd.f32 %v4602, %v4673
      %v4765 = vadd.f32 %v4604, %v4677
      %v4766 = vadd.f32 %v3834, %v4665
      %v4767 = vadd.f32 %v3836, %v4669
      %v4768 = vadd.f32 %v4606, %v4673
      %v4769 = vadd.f32 %v4608, %v4677
      %v4770 = vadd.f32 %v3840, %v4665
      %v4771 = vadd.f32 %v3842, %v4669
      %v4772 = vadd.f32 %v4612, %v4673
      %v4773 = vadd.f32 %v4614, %v4677
      %v4774 = vadd.f32 %v3844, %v4665
      %v4775 = vadd.f32 %v3846, %v4669
      %v4776 = vadd.f32 %v4616, %v4673
      %v4777 = vadd.f32 %v4618, %v4677
      %v4778 = vadd.f32 %v3850, %v4665
      %v4779 = vadd.f32 %v3852, %v4669
      %v4780 = vadd.f32 %v4622, %v4673
      %v4781 = vadd.f32 %v4624, %v4677
      %v4782 = vadd.f32 %v3854, %v4665
      %v4783 = vadd.f32 %v3856, %v4669
      %v4784 = vadd.f32 %v4626, %v4673
      %v4785 = vadd.f32 %v4628, %v4677
      %v4786 = vadd.f32 %v3860, %v4665
      %v4787 = vadd.f32 %v3862, %v4669
      %v4788 = vadd.f32 %v4632, %v4673
      %v4789 = vadd.f32 %v4634, %v4677
      %v4790 = vadd.f32 %v3864, %v4665
      %v4791 = vadd.f32 %v3866, %v4669
      %v4792 = vadd.f32 %v4636, %v4673
      %v4793 = vadd.f32 %v4638, %v4677
      %v4794 = vadd.f32 %v3870, %v4665
      %v4795 = vadd.f32 %v3872, %v4669
      %v4796 = vadd.f32 %v4642, %v4673
      %v4797 = vadd.f32 %v4644, %v4677
      %v4798 = vadd.f32 %v3874, %v4665
      %v4799 = vadd.f32 %v3876, %v4669
      %v4800 = vadd.f32 %v4646, %v4673
      %v4801 = vadd.f32 %v4648, %v4677
      %v4802 = vadd.f32 %v3880, %v4665
      %v4803 = vadd.f32 %v3882, %v4669
      %v4804 = vadd.f32 %v4652, %v4673
      %v4805 = vadd.f32 %v4654, %v4677
      %v4806 = vadd.f32 %v3884, %v4665
      %v4807 = vadd.f32 %v3886, %v4669
      %v4808 = vadd.f32 %v4656, %v4673
      %v4809 = vadd.f32 %v4658, %v4677
      %v4810 = vmax.f32 %v4682, 0.0
      %v4811 = vmax.f32 %v4683, 0.0
      %v4812 = vmax.f32 %v4684, 0.0
      %v4813 = vmax.f32 %v4685, 0.0
      %v4814 = vmax.f32 %v4686, 0.0
      %v4815 = vmax.f32 %v4687, 0.0
      %v4816 = vmax.f32 %v4688, 0.0
      %v4817 = vmax.f32 %v4689, 0.0
      %v4818 = vmax.f32 %v4690, 0.0
      %v4819 = vmax.f32 %v4691, 0.0
      %v4820 = vmax.f32 %v4692, 0.0
      %v4821 = vmax.f32 %v4693, 0.0
      %v4822 = vmax.f32 %v4694, 0.0
      %v4823 = vmax.f32 %v4695, 0.0
      %v4824 = vmax.f32 %v4696, 0.0
      %v4825 = vmax.f32 %v4697, 0.0
      %v4826 = vmax.f32 %v4698, 0.0
      %v4827 = vmax.f32 %v4699, 0.0
      %v4828 = vmax.f32 %v4700, 0.0
      %v4829 = vmax.f32 %v4701, 0.0
      %v4830 = vmax.f32 %v4702, 0.0
      %v4831 = vmax.f32 %v4703, 0.0
      %v4832 = vmax.f32 %v4704, 0.0
      %v4833 = vmax.f32 %v4705, 0.0
      %v4834 = vmax.f32 %v4706, 0.0
      %v4835 = vmax.f32 %v4707, 0.0
      %v4836 = vmax.f32 %v4708, 0.0
      %v4837 = vmax.f32 %v4709, 0.0
      %v4838 = vmax.f32 %v4710, 0.0
      %v4839 = vmax.f32 %v4711, 0.0
      %v4840 = vmax.f32 %v4712, 0.0
      %v4841 = vmax.f32 %v4713, 0.0
      %v4842 = vmax.f32 %v4714, 0.0
      %v4843 = vmax.f32 %v4715, 0.0
      %v4844 = vmax.f32 %v4716, 0.0
      %v4845 = vmax.f32 %v4717, 0.0
      %v4846 = vmax.f32 %v4718, 0.0
      %v4847 = vmax.f32 %v4719, 0.0
      %v4848 = vmax.f32 %v4720, 0.0
      %v4849 = vmax.f32 %v4721, 0.0
      %v4850 = vmax.f32 %v4722, 0.0
      %v4851 = vmax.f32 %v4723, 0.0
      %v4852 = vmax.f32 %v4724, 0.0
      %v4853 = vmax.f32 %v4725, 0.0
      %v4854 = vmax.f32 %v4726, 0.0
      %v4855 = vmax.f32 %v4727, 0.0
      %v4856 = vmax.f32 %v4728, 0.0
      %v4857 = vmax.f32 %v4729, 0.0
      %v4858 = vmax.f32 %v4730, 0.0
      %v4859 = vmax.f32 %v4731, 0.0
      %v4860 = vmax.f32 %v4732, 0.0
      %v4861 = vmax.f32 %v4733, 0.0
      %v4862 = vmax.f32 %v4734, 0.0
      %v4863 = vmax.f32 %v4735, 0.0
      %v4864 = vmax.f32 %v4736, 0.0
      %v4865 = vmax.f32 %v4737, 0.0
      %v4866 = vmax.f32 %v4738, 0.0
      %v4867 = vmax.f32 %v4739, 0.0
      %v4868 = vmax.f32 %v4740, 0.0
      %v4869 = vmax.f32 %v4741, 0.0
      %v4870 = vmax.f32 %v4742, 0.0
      %v4871 = vmax.f32 %v4743, 0.0
      %v4872 = vmax.f32 %v4744, 0.0
      %v4873 = vmax.f32 %v4745, 0.0
      %v4874 = vmax.f32 %v4746, 0.0
      %v4875 = vmax.f32 %v4747, 0.0
      %v4876 = vmax.f32 %v4748, 0.0
      %v4877 = vmax.f32 %v4749, 0.0
      %v4878 = vmax.f32 %v4750, 0.0
      %v4879 = vmax.f32 %v4751, 0.0
      %v4880 = vmax.f32 %v4752, 0.0
      %v4881 = vmax.f32 %v4753, 0.0
      %v4882 = vmax.f32 %v4754, 0.0
      %v4883 = vmax.f32 %v4755, 0.0
      %v4884 = vmax.f32 %v4756, 0.0
      %v4885 = vmax.f32 %v4757, 0.0
      %v4886 = vmax.f32 %v4758, 0.0
      %v4887 = vmax.f32 %v4759, 0.0
      %v4888 = vmax.f32 %v4760, 0.0
      %v4889 = vmax.f32 %v4761, 0.0
      %v4890 = vmax.f32 %v4762, 0.0
      %v4891 = vmax.f32 %v4763, 0.0
      %v4892 = vmax.f32 %v4764, 0.0
      %v4893 = vmax.f32 %v4765, 0.0
      %v4894 = vmax.f32 %v4766, 0.0
      %v4895 = vmax.f32 %v4767, 0.0
      %v4896 = vmax.f32 %v4768, 0.0
      %v4897 = vmax.f32 %v4769, 0.0
      %v4898 = vmax.f32 %v4770, 0.0
      %v4899 = vmax.f32 %v4771, 0.0
      %v4900 = vmax.f32 %v4772, 0.0
      %v4901 = vmax.f32 %v4773, 0.0
      %v4902 = vmax.f32 %v4774, 0.0
      %v4903 = vmax.f32 %v4775, 0.0
      %v4904 = vmax.f32 %v4776, 0.0
      %v4905 = vmax.f32 %v4777, 0.0
      %v4906 = vmax.f32 %v4778, 0.0
      %v4907 = vmax.f32 %v4779, 0.0
      %v4908 = vmax.f32 %v4780, 0.0
      %v4909 = vmax.f32 %v4781, 0.0
      %v4910 = vmax.f32 %v4782, 0.0
      %v4911 = vmax.f32 %v4783, 0.0
      %v4912 = vmax.f32 %v4784, 0.0
      %v4913 = vmax.f32 %v4785, 0.0
      %v4914 = vmax.f32 %v4786, 0.0
      %v4915 = vmax.f32 %v4787, 0.0
      %v4916 = vmax.f32 %v4788, 0.0
      %v4917 = vmax.f32 %v4789, 0.0
      %v4918 = vmax.f32 %v4790, 0.0
      %v4919 = vmax.f32 %v4791, 0.0
      %v4920 = vmax.f32 %v4792, 0.0
      %v4921 = vmax.f32 %v4793, 0.0
      %v4922 = vmax.f32 %v4794, 0.0
      %v4923 = vmax.f32 %v4795, 0.0
      %v4924 = vmax.f32 %v4796, 0.0
      %v4925 = vmax.f32 %v4797, 0.0
      %v4926 = vmax.f32 %v4798, 0.0
      %v4927 = vmax.f32 %v4799, 0.0
      %v4928 = vmax.f32 %v4800, 0.0
      %v4929 = vmax.f32 %v4801, 0.0
      %v4930 = vmax.f32 %v4802, 0.0
      %v4931 = vmax.f32 %v4803, 0.0
      %v4932 = vmax.f32 %v4804, 0.0
      %v4933 = vmax.f32 %v4805, 0.0
      %v4934 = vmax.f32 %v4806, 0.0
      %v4935 = vmax.f32 %v4807, 0.0
      %v4936 = vmax.f32 %v4808, 0.0
      %v4937 = vmax.f32 %v4809, 0.0
      %v4938 = vpack.c.bf16 %v4814, %v4810
      %v4939 = vpack.c.bf16 %v4815, %v4811
      %v4940 = vpack.c.bf16 %v4816, %v4812
      %v4941 = vpack.c.bf16 %v4817, %v4813
      %v4942 = vpack.c.bf16 %v4822, %v4818
      %v4943 = vpack.c.bf16 %v4823, %v4819
      %v4944 = vpack.c.bf16 %v4824, %v4820
      %v4945 = vpack.c.bf16 %v4825, %v4821
      %v4946 = vpack.c.bf16 %v4830, %v4826
      %v4947 = vpack.c.bf16 %v4831, %v4827
      %v4948 = vpack.c.bf16 %v4832, %v4828
      %v4949 = vpack.c.bf16 %v4833, %v4829
      %v4950 = vpack.c.bf16 %v4838, %v4834
      %v4951 = vpack.c.bf16 %v4839, %v4835
      %v4952 = vpack.c.bf16 %v4840, %v4836
      %v4953 = vpack.c.bf16 %v4841, %v4837
      %v4954 = vpack.c.bf16 %v4846, %v4842
      %v4955 = vpack.c.bf16 %v4847, %v4843
      %v4956 = vpack.c.bf16 %v4848, %v4844
      %v4957 = vpack.c.bf16 %v4849, %v4845
      %v4958 = vpack.c.bf16 %v4854, %v4850
      %v4959 = vpack.c.bf16 %v4855, %v4851
      %v4960 = vpack.c.bf16 %v4856, %v4852
      %v4961 = vpack.c.bf16 %v4857, %v4853
      %v4962 = vpack.c.bf16 %v4862, %v4858
      %v4963 = vpack.c.bf16 %v4863, %v4859
      %v4964 = vpack.c.bf16 %v4864, %v4860
      %v4965 = vpack.c.bf16 %v4865, %v4861
      %v4966 = vpack.c.bf16 %v4870, %v4866
      %v4967 = vpack.c.bf16 %v4871, %v4867
      %v4968 = vpack.c.bf16 %v4872, %v4868
      %v4969 = vpack.c.bf16 %v4873, %v4869
      %v4970 = vpack.c.bf16 %v4878, %v4874
      %v4971 = vpack.c.bf16 %v4879, %v4875
      %v4972 = vpack.c.bf16 %v4880, %v4876
      %v4973 = vpack.c.bf16 %v4881, %v4877
      %v4974 = vpack.c.bf16 %v4886, %v4882
      %v4975 = vpack.c.bf16 %v4887, %v4883
      %v4976 = vpack.c.bf16 %v4888, %v4884
      %v4977 = vpack.c.bf16 %v4889, %v4885
      %v4978 = vpack.c.bf16 %v4894, %v4890
      %v4979 = vpack.c.bf16 %v4895, %v4891
      %v4980 = vpack.c.bf16 %v4896, %v4892
      %v4981 = vpack.c.bf16 %v4897, %v4893
      %v4982 = vpack.c.bf16 %v4902, %v4898
      %v4983 = vpack.c.bf16 %v4903, %v4899
      %v4984 = vpack.c.bf16 %v4904, %v4900
      %v4985 = vpack.c.bf16 %v4905, %v4901
      %v4986 = vpack.c.bf16 %v4910, %v4906
      %v4987 = vpack.c.bf16 %v4911, %v4907
      %v4988 = vpack.c.bf16 %v4912, %v4908
      %v4989 = vpack.c.bf16 %v4913, %v4909
      %v4990 = vpack.c.bf16 %v4918, %v4914
      %v4991 = vpack.c.bf16 %v4919, %v4915
      %v4992 = vpack.c.bf16 %v4920, %v4916
      %v4993 = vpack.c.bf16 %v4921, %v4917
      %v4994 = vpack.c.bf16 %v4926, %v4922
      %v4995 = vpack.c.bf16 %v4927, %v4923
      %v4996 = vpack.c.bf16 %v4928, %v4924
      %v4997 = vpack.c.bf16 %v4929, %v4925
      %v4998 = vpack.c.bf16 %v4934, %v4930
      %v4999 = vpack.c.bf16 %v4935, %v4931
      %v5000 = vpack.c.bf16 %v4936, %v4932
      %v5001 = vpack.c.bf16 %v4937, %v4933
      %v5002 = vld [vmem:[%s5] sm:$0xf]
      %v5003 = vld [vmem:[%s5 + $0x4] sm:$0xf]
      %v5004 = vld [vmem:[%s5 + $0x8] sm:$0xf]
      %v5005 = vld [vmem:[%s5 + $0xc] sm:$0xf]
      %v5006 = vld [vmem:[%s5 + $0x10] sm:$0xf]
      %v5007 = vld [vmem:[%s5 + $0x14] sm:$0xf]
      %v5008 = vld [vmem:[%s5 + $0x18] sm:$0xf]
      %v5009 = vld [vmem:[%s5 + $0x1c] sm:$0xf]
      %v5010 = vld [vmem:[%s5 + $0x20] sm:$0xf]
      %v5011 = vld [vmem:[%s5 + $0x24] sm:$0xf]
      %v5012 = vld [vmem:[%s5 + $0x28] sm:$0xf]
      %v5013 = vld [vmem:[%s5 + $0x2c] sm:$0xf]
      %v5014 = vld [vmem:[%s5 + $0x30] sm:$0xf]
      %v5015 = vld [vmem:[%s5 + $0x34] sm:$0xf]
      %v5016 = vld [vmem:[%s5 + $0x38] sm:$0xf]
      %v5017 = vld [vmem:[%s5 + $0x3c] sm:$0xf]
      %v5018 = vld [vmem:[%s5 + $0x40] sm:$0xf]
      %v5019 = vld [vmem:[%s5 + $0x44] sm:$0xf]
      %v5020 = vld [vmem:[%s5 + $0x48] sm:$0xf]
      %v5021 = vld [vmem:[%s5 + $0x4c] sm:$0xf]
      %v5022 = vld [vmem:[%s5 + $0x50] sm:$0xf]
      %v5023 = vld [vmem:[%s5 + $0x54] sm:$0xf]
      %v5024 = vld [vmem:[%s5 + $0x58] sm:$0xf]
      %v5025 = vld [vmem:[%s5 + $0x5c] sm:$0xf]
      %v5026 = vld [vmem:[%s5 + $0x60] sm:$0xf]
      %v5027 = vld [vmem:[%s5 + $0x64] sm:$0xf]
      %v5028 = vld [vmem:[%s5 + $0x68] sm:$0xf]
      %v5029 = vld [vmem:[%s5 + $0x6c] sm:$0xf]
      %v5030 = vld [vmem:[%s5 + $0x70] sm:$0xf]
      %v5031 = vld [vmem:[%s5 + $0x74] sm:$0xf]
      %v5032 = vld [vmem:[%s5 + $0x78] sm:$0xf]
      %v5033 = vld [vmem:[%s5 + $0x7c] sm:$0xf]
      %v5034 = vld [vmem:[%s5 + $0x80] sm:$0xf]
      %v5035 = vld [vmem:[%s5 + $0x84] sm:$0xf]
      %v5036 = vld [vmem:[%s5 + $0x88] sm:$0xf]
      %v5037 = vld [vmem:[%s5 + $0x8c] sm:$0xf]
      %v5038 = vld [vmem:[%s5 + $0x90] sm:$0xf]
      %v5039 = vld [vmem:[%s5 + $0x94] sm:$0xf]
      %v5040 = vld [vmem:[%s5 + $0x98] sm:$0xf]
      %v5041 = vld [vmem:[%s5 + $0x9c] sm:$0xf]
      %v5042 = vld [vmem:[%s5 + $0xa0] sm:$0xf]
      %v5043 = vld [vmem:[%s5 + $0xa4] sm:$0xf]
      %v5044 = vld [vmem:[%s5 + $0xa8] sm:$0xf]
      %v5045 = vld [vmem:[%s5 + $0xac] sm:$0xf]
      %v5046 = vld [vmem:[%s5 + $0xb0] sm:$0xf]
      %v5047 = vld [vmem:[%s5 + $0xb4] sm:$0xf]
      %v5048 = vld [vmem:[%s5 + $0xb8] sm:$0xf]
      %v5049 = vld [vmem:[%s5 + $0xbc] sm:$0xf]
      %v5050 = vld [vmem:[%s5 + $0xc0] sm:$0xf]
      %v5051 = vld [vmem:[%s5 + $0xc4] sm:$0xf]
      %v5052 = vld [vmem:[%s5 + $0xc8] sm:$0xf]
      %v5053 = vld [vmem:[%s5 + $0xcc] sm:$0xf]
      %v5054 = vld [vmem:[%s5 + $0xd0] sm:$0xf]
      %v5055 = vld [vmem:[%s5 + $0xd4] sm:$0xf]
      %v5056 = vld [vmem:[%s5 + $0xd8] sm:$0xf]
      %v5057 = vld [vmem:[%s5 + $0xdc] sm:$0xf]
      %v5058 = vld [vmem:[%s5 + $0xe0] sm:$0xf]
      %v5059 = vld [vmem:[%s5 + $0xe4] sm:$0xf]
      %v5060 = vld [vmem:[%s5 + $0xe8] sm:$0xf]
      %v5061 = vld [vmem:[%s5 + $0xec] sm:$0xf]
      %v5062 = vld [vmem:[%s5 + $0xf0] sm:$0xf]
      %v5063 = vld [vmem:[%s5 + $0xf4] sm:$0xf]
      %v5064 = vld [vmem:[%s5 + $0xf8] sm:$0xf]
      %v5065 = vld [vmem:[%s5 + $0xfc] sm:$0xf]
      %v5066 = vld [vmem:[%s6] sm:$0x1]
      %v5068 = vlaneseq
      %v5069 = vshrl.u32 %v5068, 7
      %v5070 = vsub.s32 0, %v5069
      %v5071 = vrot.slane %v5066, %v5070
      %v5137 = vunpack.c.l.b16 %v5002
      %v5138 = vunpack.c.l.b16 %v5003
      %v5139 = vunpack.c.l.b16 %v5004
      %v5140 = vunpack.c.l.b16 %v5005
      %v5141 = vunpack.c.l.b16 %v5006
      %v5142 = vunpack.c.l.b16 %v5007
      %v5143 = vunpack.c.l.b16 %v5008
      %v5144 = vunpack.c.l.b16 %v5009
      %v5145 = vunpack.c.l.b16 %v5010
      %v5146 = vunpack.c.l.b16 %v5011
      %v5147 = vunpack.c.l.b16 %v5012
      %v5148 = vunpack.c.l.b16 %v5013
      %v5149 = vunpack.c.l.b16 %v5014
      %v5150 = vunpack.c.l.b16 %v5015
      %v5151 = vunpack.c.l.b16 %v5016
      %v5152 = vunpack.c.l.b16 %v5017
      %v5153 = vunpack.c.l.b16 %v5018
      %v5154 = vunpack.c.l.b16 %v5019
      %v5155 = vunpack.c.l.b16 %v5020
      %v5156 = vunpack.c.l.b16 %v5021
      %v5157 = vunpack.c.l.b16 %v5022
      %v5158 = vunpack.c.l.b16 %v5023
      %v5159 = vunpack.c.l.b16 %v5024
      %v5160 = vunpack.c.l.b16 %v5025
      %v5161 = vunpack.c.l.b16 %v5026
      %v5162 = vunpack.c.l.b16 %v5027
      %v5163 = vunpack.c.l.b16 %v5028
      %v5164 = vunpack.c.l.b16 %v5029
      %v5165 = vunpack.c.l.b16 %v5030
      %v5166 = vunpack.c.l.b16 %v5031
      %v5167 = vunpack.c.l.b16 %v5032
      %v5168 = vunpack.c.l.b16 %v5033
      %v5169 = vunpack.c.l.b16 %v5034
      %v5170 = vunpack.c.l.b16 %v5035
      %v5171 = vunpack.c.l.b16 %v5036
      %v5172 = vunpack.c.l.b16 %v5037
      %v5173 = vunpack.c.l.b16 %v5038
      %v5174 = vunpack.c.l.b16 %v5039
      %v5175 = vunpack.c.l.b16 %v5040
      %v5176 = vunpack.c.l.b16 %v5041
      %v5177 = vunpack.c.l.b16 %v5042
      %v5178 = vunpack.c.l.b16 %v5043
      %v5179 = vunpack.c.l.b16 %v5044
      %v5180 = vunpack.c.l.b16 %v5045
      %v5181 = vunpack.c.l.b16 %v5046
      %v5182 = vunpack.c.l.b16 %v5047
      %v5183 = vunpack.c.l.b16 %v5048
      %v5184 = vunpack.c.l.b16 %v5049
      %v5185 = vunpack.c.l.b16 %v5050
      %v5186 = vunpack.c.l.b16 %v5051
      %v5187 = vunpack.c.l.b16 %v5052
      %v5188 = vunpack.c.l.b16 %v5053
      %v5189 = vunpack.c.l.b16 %v5054
      %v5190 = vunpack.c.l.b16 %v5055
      %v5191 = vunpack.c.l.b16 %v5056
      %v5192 = vunpack.c.l.b16 %v5057
      %v5193 = vunpack.c.l.b16 %v5058
      %v5194 = vunpack.c.l.b16 %v5059
      %v5195 = vunpack.c.l.b16 %v5060
      %v5196 = vunpack.c.l.b16 %v5061
      %v5197 = vunpack.c.l.b16 %v5062
      %v5198 = vunpack.c.l.b16 %v5063
      %v5199 = vunpack.c.l.b16 %v5064
      %v5200 = vunpack.c.l.b16 %v5065
      %v5201 = vpack.c.b16 %v5138, %v5137
      %v5202 = vpack.c.b16 %v5140, %v5139
      %v5203 = vpack.c.b16 %v5142, %v5141
      %v5204 = vpack.c.b16 %v5144, %v5143
      %v5205 = vpack.c.b16 %v5146, %v5145
      %v5206 = vpack.c.b16 %v5148, %v5147
      %v5207 = vpack.c.b16 %v5150, %v5149
      %v5208 = vpack.c.b16 %v5152, %v5151
      %v5209 = vpack.c.b16 %v5154, %v5153
      %v5210 = vpack.c.b16 %v5156, %v5155
      %v5211 = vpack.c.b16 %v5158, %v5157
      %v5212 = vpack.c.b16 %v5160, %v5159
      %v5213 = vpack.c.b16 %v5162, %v5161
      %v5214 = vpack.c.b16 %v5164, %v5163
      %v5215 = vpack.c.b16 %v5166, %v5165
      %v5216 = vpack.c.b16 %v5168, %v5167
      %v5217 = vpack.c.b16 %v5170, %v5169
      %v5218 = vpack.c.b16 %v5172, %v5171
      %v5219 = vpack.c.b16 %v5174, %v5173
      %v5220 = vpack.c.b16 %v5176, %v5175
      %v5221 = vpack.c.b16 %v5178, %v5177
      %v5222 = vpack.c.b16 %v5180, %v5179
      %v5223 = vpack.c.b16 %v5182, %v5181
      %v5224 = vpack.c.b16 %v5184, %v5183
      %v5225 = vpack.c.b16 %v5186, %v5185
      %v5226 = vpack.c.b16 %v5188, %v5187
      %v5227 = vpack.c.b16 %v5190, %v5189
      %v5228 = vpack.c.b16 %v5192, %v5191
      %v5229 = vpack.c.b16 %v5194, %v5193
      %v5230 = vpack.c.b16 %v5196, %v5195
      %v5231 = vpack.c.b16 %v5198, %v5197
      %v5232 = vpack.c.b16 %v5200, %v5199
      %5265 = vmatprep.subr.bf16.mxu0 0
      %5266 = vmatpush1.bf16.msra.mxu0 %v5201
      %5267 = vmatprep.subr.bf16.mxu0 0
      %5268 = vmatpush1.bf16.msra.mxu0 %v5202
      %5269 = vmatprep.subr.bf16.mxu0 0
      %5270 = vmatpush1.bf16.msra.mxu0 %v5203
      %5271 = vmatprep.subr.bf16.mxu0 0
      %5272 = vmatpush1.bf16.msra.mxu0 %v5204
      %5273 = vmatprep.subr.bf16.mxu0 0
      %5274 = vmatpush1.bf16.msra.mxu0 %v5205
      %5275 = vmatprep.subr.bf16.mxu0 0
      %5276 = vmatpush1.bf16.msra.mxu0 %v5206
      %5277 = vmatprep.subr.bf16.mxu0 0
      %5278 = vmatpush1.bf16.msra.mxu0 %v5207
      %5279 = vmatprep.subr.bf16.mxu0 0
      %5280 = vmatpush1.bf16.msra.mxu0 %v5208
      %5281 = vmatprep.subr.bf16.mxu0 0
      %5282 = vmatpush1.bf16.msra.mxu0 %v5209
      %5283 = vmatprep.subr.bf16.mxu0 0
      %5284 = vmatpush1.bf16.msra.mxu0 %v5210
      %5285 = vmatprep.subr.bf16.mxu0 0
      %5286 = vmatpush1.bf16.msra.mxu0 %v5211
      %5287 = vmatprep.subr.bf16.mxu0 0
      %5288 = vmatpush1.bf16.msra.mxu0 %v5212
      %5289 = vmatprep.subr.bf16.mxu0 0
      %5290 = vmatpush1.bf16.msra.mxu0 %v5213
      %5291 = vmatprep.subr.bf16.mxu0 0
      %5292 = vmatpush1.bf16.msra.mxu0 %v5214
      %5293 = vmatprep.subr.bf16.mxu0 0
      %5294 = vmatpush1.bf16.msra.mxu0 %v5215
      %5295 = vmatprep.subr.bf16.mxu0 0
      %5296 = vmatpush1.bf16.msra.mxu0 %v5216
      %5297 = vmatprep.mubr.bf16.mxu0 %v4939
      %5298 = vmatmul.mubr.bf16.gmra.mrb[0].mxu0 %v4938
      %v5299 = vpop.f32.mrb[0].mxu0
      %v5300 = vadd.f32 %v5071, %v5299
      %v5301 = vpop.f32.mrb[0].mxu0
      %v5302 = vpop.f32.mrb[0].mxu0
      %v5303 = vadd.f32 %v5071, %v5302
      %v5304 = vpop.f32.mrb[0].mxu0
      %5305 = vmatprep.mubr.bf16.mxu0 %v4943
      %5306 = vmatmul.mubr.bf16.gmra.mrb[0].mxu0 %v4942
      %v5307 = vpop.f32.mrb[0].mxu0
      %v5308 = vadd.f32 %v5071, %v5307
      %v5309 = vpop.f32.mrb[0].mxu0
      %v5310 = vpop.f32.mrb[0].mxu0
      %v5311 = vadd.f32 %v5071, %v5310
      %v5312 = vpop.f32.mrb[0].mxu0
      %5313 = vmatprep.mubr.bf16.mxu0 %v4947
      %5314 = vmatmul.mubr.bf16.gmra.mrb[0].mxu0 %v4946
      %v5315 = vpop.f32.mrb[0].mxu0
      %v5316 = vadd.f32 %v5071, %v5315
      %v5317 = vpop.f32.mrb[0].mxu0
      %v5318 = vpop.f32.mrb[0].mxu0
      %v5319 = vadd.f32 %v5071, %v5318
      %v5320 = vpop.f32.mrb[0].mxu0
      %5321 = vmatprep.mubr.bf16.mxu0 %v4951
      %5322 = vmatmul.mubr.bf16.gmra.mrb[0].mxu0 %v4950
      %v5323 = vpop.f32.mrb[0].mxu0
      %v5324 = vadd.f32 %v5071, %v5323
      %v5325 = vpop.f32.mrb[0].mxu0
      %v5326 = vpop.f32.mrb[0].mxu0
      %v5327 = vadd.f32 %v5071, %v5326
      %v5328 = vpop.f32.mrb[0].mxu0
      %5329 = vmatprep.mubr.bf16.mxu0 %v4955
      %5330 = vmatmul.mubr.bf16.gmra.mrb[0].mxu0 %v4954
      %v5331 = vpop.f32.mrb[0].mxu0
      %v5332 = vadd.f32 %v5071, %v5331
      %v5333 = vpop.f32.mrb[0].mxu0
      %v5334 = vpop.f32.mrb[0].mxu0
      %v5335 = vadd.f32 %v5071, %v5334
      %v5336 = vpop.f32.mrb[0].mxu0
      %5337 = vmatprep.mubr.bf16.mxu0 %v4959
      %5338 = vmatmul.mubr.bf16.gmra.mrb[0].mxu0 %v4958
      %v5339 = vpop.f32.mrb[0].mxu0
      %v5340 = vadd.f32 %v5071, %v5339
      %v5341 = vpop.f32.mrb[0].mxu0
      %v5342 = vpop.f32.mrb[0].mxu0
      %v5343 = vadd.f32 %v5071, %v5342
      %v5344 = vpop.f32.mrb[0].mxu0
      %5345 = vmatprep.mubr.bf16.mxu0 %v4963
      %5346 = vmatmul.mubr.bf16.gmra.mrb[0].mxu0 %v4962
      %v5347 = vpop.f32.mrb[0].mxu0
      %v5348 = vadd.f32 %v5071, %v5347
      %v5349 = vpop.f32.mrb[0].mxu0
      %v5350 = vpop.f32.mrb[0].mxu0
      %v5351 = vadd.f32 %v5071, %v5350
      %v5352 = vpop.f32.mrb[0].mxu0
      %5353 = vmatprep.mubr.bf16.mxu0 %v4967
      %5354 = vmatmul.mubr.bf16.gmra.mrb[0].mxu0 %v4966
      %v5355 = vpop.f32.mrb[0].mxu0
      %v5356 = vadd.f32 %v5071, %v5355
      %v5357 = vpop.f32.mrb[0].mxu0
      %v5358 = vpop.f32.mrb[0].mxu0
      %v5359 = vadd.f32 %v5071, %v5358
      %v5360 = vpop.f32.mrb[0].mxu0
      %5361 = vmatprep.mubr.bf16.mxu0 %v4971
      %5362 = vmatmul.mubr.bf16.gmra.mrb[0].mxu0 %v4970
      %v5363 = vpop.f32.mrb[0].mxu0
      %v5364 = vadd.f32 %v5071, %v5363
      %v5365 = vpop.f32.mrb[0].mxu0
      %v5366 = vpop.f32.mrb[0].mxu0
      %v5367 = vadd.f32 %v5071, %v5366
      %v5368 = vpop.f32.mrb[0].mxu0
      %5369 = vmatprep.mubr.bf16.mxu0 %v4975
      %5370 = vmatmul.mubr.bf16.gmra.mrb[0].mxu0 %v4974
      %v5371 = vpop.f32.mrb[0].mxu0
      %v5372 = vadd.f32 %v5071, %v5371
      %v5373 = vpop.f32.mrb[0].mxu0
      %v5374 = vpop.f32.mrb[0].mxu0
      %v5375 = vadd.f32 %v5071, %v5374
      %v5376 = vpop.f32.mrb[0].mxu0
      %5377 = vmatprep.mubr.bf16.mxu0 %v4979
      %5378 = vmatmul.mubr.bf16.gmra.mrb[0].mxu0 %v4978
      %v5379 = vpop.f32.mrb[0].mxu0
      %v5380 = vadd.f32 %v5071, %v5379
      %v5381 = vpop.f32.mrb[0].mxu0
      %v5382 = vpop.f32.mrb[0].mxu0
      %v5383 = vadd.f32 %v5071, %v5382
      %v5384 = vpop.f32.mrb[0].mxu0
      %5385 = vmatprep.mubr.bf16.mxu0 %v4983
      %5386 = vmatmul.mubr.bf16.gmra.mrb[0].mxu0 %v4982
      %v5387 = vpop.f32.mrb[0].mxu0
      %v5388 = vadd.f32 %v5071, %v5387
      %v5389 = vpop.f32.mrb[0].mxu0
      %v5390 = vpop.f32.mrb[0].mxu0
      %v5391 = vadd.f32 %v5071, %v5390
      %v5392 = vpop.f32.mrb[0].mxu0
      %5393 = vmatprep.mubr.bf16.mxu0 %v4987
      %5394 = vmatmul.mubr.bf16.gmra.mrb[0].mxu0 %v4986
      %v5395 = vpop.f32.mrb[0].mxu0
      %v5396 = vadd.f32 %v5071, %v5395
      %v5397 = vpop.f32.mrb[0].mxu0
      %v5398 = vpop.f32.mrb[0].mxu0
      %v5399 = vadd.f32 %v5071, %v5398
      %v5400 = vpop.f32.mrb[0].mxu0
      %5401 = vmatprep.mubr.bf16.mxu0 %v4991
      %5402 = vmatmul.mubr.bf16.gmra.mrb[0].mxu0 %v4990
      %v5403 = vpop.f32.mrb[0].mxu0
      %v5404 = vadd.f32 %v5071, %v5403
      %v5405 = vpop.f32.mrb[0].mxu0
      %v5406 = vpop.f32.mrb[0].mxu0
      %v5407 = vadd.f32 %v5071, %v5406
      %v5408 = vpop.f32.mrb[0].mxu0
      %5409 = vmatprep.mubr.bf16.mxu0 %v4995
      %5410 = vmatmul.mubr.bf16.gmra.mrb[0].mxu0 %v4994
      %v5411 = vpop.f32.mrb[0].mxu0
      %v5412 = vadd.f32 %v5071, %v5411
      %v5413 = vpop.f32.mrb[0].mxu0
      %v5414 = vpop.f32.mrb[0].mxu0
      %v5415 = vadd.f32 %v5071, %v5414
      %v5416 = vpop.f32.mrb[0].mxu0
      %5417 = vmatprep.mubr.bf16.mxu0 %v4999
      %5418 = vmatmul.mubr.bf16.gmra.mrb[0].mxu0 %v4998
      %v5419 = vpop.f32.mrb[0].mxu0
      %v5420 = vadd.f32 %v5071, %v5419
      %v5421 = vpop.f32.mrb[0].mxu0
      %v5422 = vpop.f32.mrb[0].mxu0
      %v5423 = vadd.f32 %v5071, %v5422
      %v5424 = vpop.f32.mrb[0].mxu0
      %5425 = vdwg.mxu0
      %5426 = vmatprep.subr.bf16.mxu0 0
      %5427 = vmatpush1.bf16.msra.mxu0 %v5217
      %5428 = vmatprep.subr.bf16.mxu0 0
      %5429 = vmatpush1.bf16.msra.mxu0 %v5218
      %5430 = vmatprep.subr.bf16.mxu0 0
      %5431 = vmatpush1.bf16.msra.mxu0 %v5219
      %5432 = vmatprep.subr.bf16.mxu0 0
      %5433 = vmatpush1.bf16.msra.mxu0 %v5220
      %5434 = vmatprep.subr.bf16.mxu0 0
      %5435 = vmatpush1.bf16.msra.mxu0 %v5221
      %5436 = vmatprep.subr.bf16.mxu0 0
      %5437 = vmatpush1.bf16.msra.mxu0 %v5222
      %5438 = vmatprep.subr.bf16.mxu0 0
      %5439 = vmatpush1.bf16.msra.mxu0 %v5223
      %5440 = vmatprep.subr.bf16.mxu0 0
      %5441 = vmatpush1.bf16.msra.mxu0 %v5224
      %5442 = vmatprep.subr.bf16.mxu0 0
      %5443 = vmatpush1.bf16.msra.mxu0 %v5225
      %5444 = vmatprep.subr.bf16.mxu0 0
      %5445 = vmatpush1.bf16.msra.mxu0 %v5226
      %5446 = vmatprep.subr.bf16.mxu0 0
      %5447 = vmatpush1.bf16.msra.mxu0 %v5227
      %5448 = vmatprep.subr.bf16.mxu0 0
      %5449 = vmatpush1.bf16.msra.mxu0 %v5228
      %5450 = vmatprep.subr.bf16.mxu0 0
      %5451 = vmatpush1.bf16.msra.mxu0 %v5229
      %5452 = vmatprep.subr.bf16.mxu0 0
      %5453 = vmatpush1.bf16.msra.mxu0 %v5230
      %5454 = vmatprep.subr.bf16.mxu0 0
      %5455 = vmatpush1.bf16.msra.mxu0 %v5231
      %5456 = vmatprep.subr.bf16.mxu0 0
      %5457 = vmatpush1.bf16.msra.mxu0 %v5232
      %5458 = vmatprep.mubr.bf16.mxu0 %v4941
      %5459 = vmatmul.mubr.bf16.gmra.mrb[0].mxu0 %v4940
      %v5460 = vpop.f32.mrb[0].mxu0
      %v5461 = vadd.f32 %v5300, %v5460
      %v5462 = vpop.f32.mrb[0].mxu0
      %v5463 = vpop.f32.mrb[0].mxu0
      %v5464 = vadd.f32 %v5303, %v5463
      %v5465 = vpop.f32.mrb[0].mxu0
      %5466 = vmatprep.mubr.bf16.mxu0 %v4945
      %5467 = vmatmul.mubr.bf16.gmra.mrb[0].mxu0 %v4944
      %v5468 = vpop.f32.mrb[0].mxu0
      %v5469 = vadd.f32 %v5308, %v5468
      %v5470 = vpop.f32.mrb[0].mxu0
      %v5471 = vpop.f32.mrb[0].mxu0
      %v5472 = vadd.f32 %v5311, %v5471
      %v5473 = vpop.f32.mrb[0].mxu0
      %5474 = vmatprep.mubr.bf16.mxu0 %v4949
      %5475 = vmatmul.mubr.bf16.gmra.mrb[0].mxu0 %v4948
      %v5476 = vpop.f32.mrb[0].mxu0
      %v5477 = vadd.f32 %v5316, %v5476
      %v5478 = vpop.f32.mrb[0].mxu0
      %v5479 = vpop.f32.mrb[0].mxu0
      %v5480 = vadd.f32 %v5319, %v5479
      %v5481 = vpop.f32.mrb[0].mxu0
      %5482 = vmatprep.mubr.bf16.mxu0 %v4953
      %5483 = vmatmul.mubr.bf16.gmra.mrb[0].mxu0 %v4952
      %v5484 = vpop.f32.mrb[0].mxu0
      %v5485 = vadd.f32 %v5324, %v5484
      %v5486 = vpop.f32.mrb[0].mxu0
      %v5487 = vpop.f32.mrb[0].mxu0
      %v5488 = vadd.f32 %v5327, %v5487
      %v5489 = vpop.f32.mrb[0].mxu0
      %5490 = vmatprep.mubr.bf16.mxu0 %v4957
      %5491 = vmatmul.mubr.bf16.gmra.mrb[0].mxu0 %v4956
      %v5492 = vpop.f32.mrb[0].mxu0
      %v5493 = vadd.f32 %v5332, %v5492
      %v5494 = vpop.f32.mrb[0].mxu0
      %v5495 = vpop.f32.mrb[0].mxu0
      %v5496 = vadd.f32 %v5335, %v5495
      %v5497 = vpop.f32.mrb[0].mxu0
      %5498 = vmatprep.mubr.bf16.mxu0 %v4961
      %5499 = vmatmul.mubr.bf16.gmra.mrb[0].mxu0 %v4960
      %v5500 = vpop.f32.mrb[0].mxu0
      %v5501 = vadd.f32 %v5340, %v5500
      %v5502 = vpop.f32.mrb[0].mxu0
      %v5503 = vpop.f32.mrb[0].mxu0
      %v5504 = vadd.f32 %v5343, %v5503
      %v5505 = vpop.f32.mrb[0].mxu0
      %5506 = vmatprep.mubr.bf16.mxu0 %v4965
      %5507 = vmatmul.mubr.bf16.gmra.mrb[0].mxu0 %v4964
      %v5508 = vpop.f32.mrb[0].mxu0
      %v5509 = vadd.f32 %v5348, %v5508
      %v5510 = vpop.f32.mrb[0].mxu0
      %v5511 = vpop.f32.mrb[0].mxu0
      %v5512 = vadd.f32 %v5351, %v5511
      %v5513 = vpop.f32.mrb[0].mxu0
      %5514 = vmatprep.mubr.bf16.mxu0 %v4969
      %5515 = vmatmul.mubr.bf16.gmra.mrb[0].mxu0 %v4968
      %v5516 = vpop.f32.mrb[0].mxu0
      %v5517 = vadd.f32 %v5356, %v5516
      %v5518 = vpop.f32.mrb[0].mxu0
      %v5519 = vpop.f32.mrb[0].mxu0
      %v5520 = vadd.f32 %v5359, %v5519
      %v5521 = vpop.f32.mrb[0].mxu0
      %5522 = vmatprep.mubr.bf16.mxu0 %v4973
      %5523 = vmatmul.mubr.bf16.gmra.mrb[0].mxu0 %v4972
      %v5524 = vpop.f32.mrb[0].mxu0
      %v5525 = vadd.f32 %v5364, %v5524
      %v5526 = vpop.f32.mrb[0].mxu0
      %v5527 = vpop.f32.mrb[0].mxu0
      %v5528 = vadd.f32 %v5367, %v5527
      %v5529 = vpop.f32.mrb[0].mxu0
      %5530 = vmatprep.mubr.bf16.mxu0 %v4977
      %5531 = vmatmul.mubr.bf16.gmra.mrb[0].mxu0 %v4976
      %v5532 = vpop.f32.mrb[0].mxu0
      %v5533 = vadd.f32 %v5372, %v5532
      %v5534 = vpop.f32.mrb[0].mxu0
      %v5535 = vpop.f32.mrb[0].mxu0
      %v5536 = vadd.f32 %v5375, %v5535
      %v5537 = vpop.f32.mrb[0].mxu0
      %5538 = vmatprep.mubr.bf16.mxu0 %v4981
      %5539 = vmatmul.mubr.bf16.gmra.mrb[0].mxu0 %v4980
      %v5540 = vpop.f32.mrb[0].mxu0
      %v5541 = vadd.f32 %v5380, %v5540
      %v5542 = vpop.f32.mrb[0].mxu0
      %v5543 = vpop.f32.mrb[0].mxu0
      %v5544 = vadd.f32 %v5383, %v5543
      %v5545 = vpop.f32.mrb[0].mxu0
      %5546 = vmatprep.mubr.bf16.mxu0 %v4985
      %5547 = vmatmul.mubr.bf16.gmra.mrb[0].mxu0 %v4984
      %v5548 = vpop.f32.mrb[0].mxu0
      %v5549 = vadd.f32 %v5388, %v5548
      %v5550 = vpop.f32.mrb[0].mxu0
      %v5551 = vpop.f32.mrb[0].mxu0
      %v5552 = vadd.f32 %v5391, %v5551
      %v5553 = vpop.f32.mrb[0].mxu0
      %5554 = vmatprep.mubr.bf16.mxu0 %v4989
      %5555 = vmatmul.mubr.bf16.gmra.mrb[0].mxu0 %v4988
      %v5556 = vpop.f32.mrb[0].mxu0
      %v5557 = vadd.f32 %v5396, %v5556
      %v5558 = vpop.f32.mrb[0].mxu0
      %v5559 = vpop.f32.mrb[0].mxu0
      %v5560 = vadd.f32 %v5399, %v5559
      %v5561 = vpop.f32.mrb[0].mxu0
      %5562 = vmatprep.mubr.bf16.mxu0 %v4993
      %5563 = vmatmul.mubr.bf16.gmra.mrb[0].mxu0 %v4992
      %v5564 = vpop.f32.mrb[0].mxu0
      %v5565 = vadd.f32 %v5404, %v5564
      %v5566 = vpop.f32.mrb[0].mxu0
      %v5567 = vpop.f32.mrb[0].mxu0
      %v5568 = vadd.f32 %v5407, %v5567
      %v5569 = vpop.f32.mrb[0].mxu0
      %5570 = vmatprep.mubr.bf16.mxu0 %v4997
      %5571 = vmatmul.mubr.bf16.gmra.mrb[0].mxu0 %v4996
      %v5572 = vpop.f32.mrb[0].mxu0
      %v5573 = vadd.f32 %v5412, %v5572
      %v5574 = vpop.f32.mrb[0].mxu0
      %v5575 = vpop.f32.mrb[0].mxu0
      %v5576 = vadd.f32 %v5415, %v5575
      %v5577 = vpop.f32.mrb[0].mxu0
      %5578 = vmatprep.mubr.bf16.mxu0 %v5001
      %5579 = vmatmul.mubr.bf16.gmra.mrb[0].mxu0 %v5000
      %v5580 = vpop.f32.mrb[0].mxu0
      %v5581 = vadd.f32 %v5420, %v5580
      %v5582 = vpop.f32.mrb[0].mxu0
      %v5583 = vpop.f32.mrb[0].mxu0
      %v5584 = vadd.f32 %v5423, %v5583
      %v5585 = vpop.f32.mrb[0].mxu0
      %5586 = vdwg.mxu0
      %v5587 = vmax.f32 %v5461, 0.0
      %v5588 = vmax.f32 %v5464, 0.0
      %v5589 = vmax.f32 %v5469, 0.0
      %v5590 = vmax.f32 %v5472, 0.0
      %v5591 = vmax.f32 %v5477, 0.0
      %v5592 = vmax.f32 %v5480, 0.0
      %v5593 = vmax.f32 %v5485, 0.0
      %v5594 = vmax.f32 %v5488, 0.0
      %v5595 = vmax.f32 %v5493, 0.0
      %v5596 = vmax.f32 %v5496, 0.0
      %v5597 = vmax.f32 %v5501, 0.0
      %v5598 = vmax.f32 %v5504, 0.0
      %v5599 = vmax.f32 %v5509, 0.0
      %v5600 = vmax.f32 %v5512, 0.0
      %v5601 = vmax.f32 %v5517, 0.0
      %v5602 = vmax.f32 %v5520, 0.0
      %v5603 = vmax.f32 %v5525, 0.0
      %v5604 = vmax.f32 %v5528, 0.0
      %v5605 = vmax.f32 %v5533, 0.0
      %v5606 = vmax.f32 %v5536, 0.0
      %v5607 = vmax.f32 %v5541, 0.0
      %v5608 = vmax.f32 %v5544, 0.0
      %v5609 = vmax.f32 %v5549, 0.0
      %v5610 = vmax.f32 %v5552, 0.0
      %v5611 = vmax.f32 %v5557, 0.0
      %v5612 = vmax.f32 %v5560, 0.0
      %v5613 = vmax.f32 %v5565, 0.0
      %v5614 = vmax.f32 %v5568, 0.0
      %v5615 = vmax.f32 %v5573, 0.0
      %v5616 = vmax.f32 %v5576, 0.0
      %v5617 = vmax.f32 %v5581, 0.0
      %v5618 = vmax.f32 %v5584, 0.0
      %v5619 = vpack.c.bf16 %v5588, %v5587
      %v5620 = vpack.c.bf16 %v5590, %v5589
      %v5621 = vpack.c.bf16 %v5592, %v5591
      %v5622 = vpack.c.bf16 %v5594, %v5593
      %v5623 = vpack.c.bf16 %v5596, %v5595
      %v5624 = vpack.c.bf16 %v5598, %v5597
      %v5625 = vpack.c.bf16 %v5600, %v5599
      %v5626 = vpack.c.bf16 %v5602, %v5601
      %v5627 = vpack.c.bf16 %v5604, %v5603
      %v5628 = vpack.c.bf16 %v5606, %v5605
      %v5629 = vpack.c.bf16 %v5608, %v5607
      %v5630 = vpack.c.bf16 %v5610, %v5609
      %v5631 = vpack.c.bf16 %v5612, %v5611
      %v5632 = vpack.c.bf16 %v5614, %v5613
      %v5633 = vpack.c.bf16 %v5616, %v5615
      %v5634 = vpack.c.bf16 %v5618, %v5617
      %v5635 = vld [vmem:[%s7] sm:$0xf]
      %v5636 = vld [vmem:[%s7 + $0x4] sm:$0xf]
      %v5637 = vld [vmem:[%s7 + $0x8] sm:$0xf]
      %v5638 = vld [vmem:[%s7 + $0xc] sm:$0xf]
      %v5639 = vld [vmem:[%s7 + $0x10] sm:$0xf]
      %v5640 = vld [vmem:[%s7 + $0x14] sm:$0xf]
      %v5641 = vld [vmem:[%s7 + $0x18] sm:$0xf]
      %v5642 = vld [vmem:[%s7 + $0x1c] sm:$0xf]
      %v5643 = vld [vmem:[%s7 + $0x20] sm:$0xf]
      %v5644 = vld [vmem:[%s7 + $0x24] sm:$0xf]
      %v5645 = vld [vmem:[%s7 + $0x28] sm:$0xf]
      %v5646 = vld [vmem:[%s7 + $0x2c] sm:$0xf]
      %v5647 = vld [vmem:[%s7 + $0x30] sm:$0xf]
      %v5648 = vld [vmem:[%s7 + $0x34] sm:$0xf]
      %v5649 = vld [vmem:[%s7 + $0x38] sm:$0xf]
      %v5650 = vld [vmem:[%s7 + $0x3c] sm:$0xf]
      %v5651 = vld [vmem:[%s8] sm:$0x1]
      %v5653 = vlaneseq
      %v5654 = vshrl.u32 %v5653, 7
      %v5655 = vsub.s32 0, %v5654
      %v5656 = vrot.slane %v5651, %v5655
      %v5674 = vunpack.c.l.b16 %v5635
      %v5675 = vunpack.c.l.b16 %v5636
      %v5676 = vunpack.c.l.b16 %v5637
      %v5677 = vunpack.c.l.b16 %v5638
      %v5678 = vunpack.c.l.b16 %v5639
      %v5679 = vunpack.c.l.b16 %v5640
      %v5680 = vunpack.c.l.b16 %v5641
      %v5681 = vunpack.c.l.b16 %v5642
      %v5682 = vunpack.c.l.b16 %v5643
      %v5683 = vunpack.c.l.b16 %v5644
      %v5684 = vunpack.c.l.b16 %v5645
      %v5685 = vunpack.c.l.b16 %v5646
      %v5686 = vunpack.c.l.b16 %v5647
      %v5687 = vunpack.c.l.b16 %v5648
      %v5688 = vunpack.c.l.b16 %v5649
      %v5689 = vunpack.c.l.b16 %v5650
      %v5690 = vpack.c.b16 %v5675, %v5674
      %v5691 = vpack.c.b16 %v5677, %v5676
      %v5692 = vpack.c.b16 %v5679, %v5678
      %v5693 = vpack.c.b16 %v5681, %v5680
      %v5694 = vpack.c.b16 %v5683, %v5682
      %v5695 = vpack.c.b16 %v5685, %v5684
      %v5696 = vpack.c.b16 %v5687, %v5686
      %v5697 = vpack.c.b16 %v5689, %v5688
      %5706 = vmatprep.subr.bf16.mxu0 0
      %5707 = vmatpush1.bf16.msra.mxu0 %v5690
      %5708 = vmatprep.subr.bf16.mxu0 0
      %5709 = vmatpush1.bf16.msra.mxu0 %v5691
      %5710 = vmatprep.subr.bf16.mxu0 0
      %5711 = vmatpush1.bf16.msra.mxu0 %v5692
      %5712 = vmatprep.subr.bf16.mxu0 0
      %5713 = vmatpush1.bf16.msra.mxu0 %v5693
      %5714 = vmatprep.subr.bf16.mxu0 0
      %5715 = vmatpush1.bf16.msra.mxu0 %v5694
      %5716 = vmatprep.subr.bf16.mxu0 0
      %5717 = vmatpush1.bf16.msra.mxu0 %v5695
      %5718 = vmatprep.subr.bf16.mxu0 0
      %5719 = vmatpush1.bf16.msra.mxu0 %v5696
      %5720 = vmatprep.subr.bf16.mxu0 0
      %5721 = vmatpush1.bf16.msra.mxu0 %v5697
      %5722 = vmatprep.subr.bf16.mxu0 0
      %5723 = vmatpush1.bf16.msra.mxu0 0
      %5724 = vmatprep.subr.bf16.mxu0 0
      %5725 = vmatpush1.bf16.msra.mxu0 0
      %5726 = vmatprep.subr.bf16.mxu0 0
      %5727 = vmatpush1.bf16.msra.mxu0 0
      %5728 = vmatprep.subr.bf16.mxu0 0
      %5729 = vmatpush1.bf16.msra.mxu0 0
      %5730 = vmatprep.subr.bf16.mxu0 0
      %5731 = vmatpush1.bf16.msra.mxu0 0
      %5732 = vmatprep.subr.bf16.mxu0 0
      %5733 = vmatpush1.bf16.msra.mxu0 0
      %5734 = vmatprep.subr.bf16.mxu0 0
      %5735 = vmatpush1.bf16.msra.mxu0 0
      %5736 = vmatprep.subr.bf16.mxu0 0
      %5737 = vmatpush1.bf16.msra.mxu0 0
      %5738 = vmatprep.mubr.bf16.mxu0 0
      %5739 = vmatmul.mubr.bf16.gmra.mrb[0].mxu0 %v5619
      %v5740 = vpop.f32.mrb[0].mxu0
      %v5741 = vadd.f32 %v5656, %v5740
      %v5742 = vpop.f32.mrb[0].mxu0
      %v5743 = vpop.f32.mrb[0].mxu0
      %v5744 = vadd.f32 %v5656, %v5743
      %v5745 = vpop.f32.mrb[0].mxu0
      %5746 = vmatprep.mubr.bf16.mxu0 0
      %5747 = vmatmul.mubr.bf16.gmra.mrb[0].mxu0 %v5620
      %v5748 = vpop.f32.mrb[0].mxu0
      %v5749 = vadd.f32 %v5656, %v5748
      %v5750 = vpop.f32.mrb[0].mxu0
      %v5751 = vpop.f32.mrb[0].mxu0
      %v5752 = vadd.f32 %v5656, %v5751
      %v5753 = vpop.f32.mrb[0].mxu0
      %5754 = vmatprep.mubr.bf16.mxu0 0
      %5755 = vmatmul.mubr.bf16.gmra.mrb[0].mxu0 %v5621
      %v5756 = vpop.f32.mrb[0].mxu0
      %v5757 = vadd.f32 %v5656, %v5756
      %v5758 = vpop.f32.mrb[0].mxu0
      %v5759 = vpop.f32.mrb[0].mxu0
      %v5760 = vadd.f32 %v5656, %v5759
      %v5761 = vpop.f32.mrb[0].mxu0
      %5762 = vmatprep.mubr.bf16.mxu0 0
      %5763 = vmatmul.mubr.bf16.gmra.mrb[0].mxu0 %v5622
      %v5764 = vpop.f32.mrb[0].mxu0
      %v5765 = vadd.f32 %v5656, %v5764
      %v5766 = vpop.f32.mrb[0].mxu0
      %v5767 = vpop.f32.mrb[0].mxu0
      %v5768 = vadd.f32 %v5656, %v5767
      %v5769 = vpop.f32.mrb[0].mxu0
      %5770 = vmatprep.mubr.bf16.mxu0 0
      %5771 = vmatmul.mubr.bf16.gmra.mrb[0].mxu0 %v5623
      %v5772 = vpop.f32.mrb[0].mxu0
      %v5773 = vadd.f32 %v5656, %v5772
      %v5774 = vpop.f32.mrb[0].mxu0
      %v5775 = vpop.f32.mrb[0].mxu0
      %v5776 = vadd.f32 %v5656, %v5775
      %v5777 = vpop.f32.mrb[0].mxu0
      %5778 = vmatprep.mubr.bf16.mxu0 0
      %5779 = vmatmul.mubr.bf16.gmra.mrb[0].mxu0 %v5624
      %v5780 = vpop.f32.mrb[0].mxu0
      %v5781 = vadd.f32 %v5656, %v5780
      %v5782 = vpop.f32.mrb[0].mxu0
      %v5783 = vpop.f32.mrb[0].mxu0
      %v5784 = vadd.f32 %v5656, %v5783
      %v5785 = vpop.f32.mrb[0].mxu0
      %5786 = vmatprep.mubr.bf16.mxu0 0
      %5787 = vmatmul.mubr.bf16.gmra.mrb[0].mxu0 %v5625
      %v5788 = vpop.f32.mrb[0].mxu0
      %v5789 = vadd.f32 %v5656, %v5788
      %v5790 = vpop.f32.mrb[0].mxu0
      %v5791 = vpop.f32.mrb[0].mxu0
      %v5792 = vadd.f32 %v5656, %v5791
      %v5793 = vpop.f32.mrb[0].mxu0
      %5794 = vmatprep.mubr.bf16.mxu0 0
      %5795 = vmatmul.mubr.bf16.gmra.mrb[0].mxu0 %v5626
      %v5796 = vpop.f32.mrb[0].mxu0
      %v5797 = vadd.f32 %v5656, %v5796
      %v5798 = vpop.f32.mrb[0].mxu0
      %v5799 = vpop.f32.mrb[0].mxu0
      %v5800 = vadd.f32 %v5656, %v5799
      %v5801 = vpop.f32.mrb[0].mxu0
      %5802 = vmatprep.mubr.bf16.mxu0 0
      %5803 = vmatmul.mubr.bf16.gmra.mrb[0].mxu0 %v5627
      %v5804 = vpop.f32.mrb[0].mxu0
      %v5805 = vadd.f32 %v5656, %v5804
      %v5806 = vpop.f32.mrb[0].mxu0
      %v5807 = vpop.f32.mrb[0].mxu0
      %v5808 = vadd.f32 %v5656, %v5807
      %v5809 = vpop.f32.mrb[0].mxu0
      %5810 = vmatprep.mubr.bf16.mxu0 0
      %5811 = vmatmul.mubr.bf16.gmra.mrb[0].mxu0 %v5628
      %v5812 = vpop.f32.mrb[0].mxu0
      %v5813 = vadd.f32 %v5656, %v5812
      %v5814 = vpop.f32.mrb[0].mxu0
      %v5815 = vpop.f32.mrb[0].mxu0
      %v5816 = vadd.f32 %v5656, %v5815
      %v5817 = vpop.f32.mrb[0].mxu0
      %5818 = vmatprep.mubr.bf16.mxu0 0
      %5819 = vmatmul.mubr.bf16.gmra.mrb[0].mxu0 %v5629
      %v5820 = vpop.f32.mrb[0].mxu0
      %v5821 = vadd.f32 %v5656, %v5820
      %v5822 = vpop.f32.mrb[0].mxu0
      %v5823 = vpop.f32.mrb[0].mxu0
      %v5824 = vadd.f32 %v5656, %v5823
      %v5825 = vpop.f32.mrb[0].mxu0
      %5826 = vmatprep.mubr.bf16.mxu0 0
      %5827 = vmatmul.mubr.bf16.gmra.mrb[0].mxu0 %v5630
      %v5828 = vpop.f32.mrb[0].mxu0
      %v5829 = vadd.f32 %v5656, %v5828
      %v5830 = vpop.f32.mrb[0].mxu0
      %v5831 = vpop.f32.mrb[0].mxu0
      %v5832 = vadd.f32 %v5656, %v5831
      %v5833 = vpop.f32.mrb[0].mxu0
      %5834 = vmatprep.mubr.bf16.mxu0 0
      %5835 = vmatmul.mubr.bf16.gmra.mrb[0].mxu0 %v5631
      %v5836 = vpop.f32.mrb[0].mxu0
      %v5837 = vadd.f32 %v5656, %v5836
      %v5838 = vpop.f32.mrb[0].mxu0
      %v5839 = vpop.f32.mrb[0].mxu0
      %v5840 = vadd.f32 %v5656, %v5839
      %v5841 = vpop.f32.mrb[0].mxu0
      %5842 = vmatprep.mubr.bf16.mxu0 0
      %5843 = vmatmul.mubr.bf16.gmra.mrb[0].mxu0 %v5632
      %v5844 = vpop.f32.mrb[0].mxu0
      %v5845 = vadd.f32 %v5656, %v5844
      %v5846 = vpop.f32.mrb[0].mxu0
      %v5847 = vpop.f32.mrb[0].mxu0
      %v5848 = vadd.f32 %v5656, %v5847
      %v5849 = vpop.f32.mrb[0].mxu0
      %5850 = vmatprep.mubr.bf16.mxu0 0
      %5851 = vmatmul.mubr.bf16.gmra.mrb[0].mxu0 %v5633
      %v5852 = vpop.f32.mrb[0].mxu0
      %v5853 = vadd.f32 %v5656, %v5852
      %v5854 = vpop.f32.mrb[0].mxu0
      %v5855 = vpop.f32.mrb[0].mxu0
      %v5856 = vadd.f32 %v5656, %v5855
      %v5857 = vpop.f32.mrb[0].mxu0
      %5858 = vmatprep.mubr.bf16.mxu0 0
      %5859 = vmatmul.mubr.bf16.gmra.mrb[0].mxu0 %v5634
      %v5860 = vpop.f32.mrb[0].mxu0
      %v5861 = vadd.f32 %v5656, %v5860
      %v5862 = vpop.f32.mrb[0].mxu0
      %v5863 = vpop.f32.mrb[0].mxu0
      %v5864 = vadd.f32 %v5656, %v5863
      %v5865 = vpop.f32.mrb[0].mxu0
      %5866 = vdwg.mxu0
      %5867 = vst [vmem:[%s359] sm:$0xff] %v5741
      %5868 = vst [vmem:[%s359 + $0x8] sm:$0xff] %v5744
      %5869 = vst [vmem:[%s359 + $0x10] sm:$0xff] %v5749
      %5870 = vst [vmem:[%s359 + $0x18] sm:$0xff] %v5752
      %5871 = vst [vmem:[%s359 + $0x20] sm:$0xff] %v5757
      %5872 = vst [vmem:[%s359 + $0x28] sm:$0xff] %v5760
      %5873 = vst [vmem:[%s359 + $0x30] sm:$0xff] %v5765
      %5874 = vst [vmem:[%s359 + $0x38] sm:$0xff] %v5768
      %5875 = vst [vmem:[%s359 + $0x40] sm:$0xff] %v5773
      %5876 = vst [vmem:[%s359 + $0x48] sm:$0xff] %v5776
      %5877 = vst [vmem:[%s359 + $0x50] sm:$0xff] %v5781
      %5878 = vst [vmem:[%s359 + $0x58] sm:$0xff] %v5784
      %5879 = vst [vmem:[%s359 + $0x60] sm:$0xff] %v5789
      %5880 = vst [vmem:[%s359 + $0x68] sm:$0xff] %v5792
      %5881 = vst [vmem:[%s359 + $0x70] sm:$0xff] %v5797
      %5882 = vst [vmem:[%s359 + $0x78] sm:$0xff] %v5800
      %5883 = vst [vmem:[%s359 + $0x80] sm:$0xff] %v5805
      %5884 = vst [vmem:[%s359 + $0x88] sm:$0xff] %v5808
      %5885 = vst [vmem:[%s359 + $0x90] sm:$0xff] %v5813
      %5886 = vst [vmem:[%s359 + $0x98] sm:$0xff] %v5816
      %5887 = vst [vmem:[%s359 + $0xa0] sm:$0xff] %v5821
      %5888 = vst [vmem:[%s359 + $0xa8] sm:$0xff] %v5824
      %5889 = vst [vmem:[%s359 + $0xb0] sm:$0xff] %v5829
      %5890 = vst [vmem:[%s359 + $0xb8] sm:$0xff] %v5832
      %5891 = vst [vmem:[%s359 + $0xc0] sm:$0xff] %v5837
      %5892 = vst [vmem:[%s359 + $0xc8] sm:$0xff] %v5840
      %5893 = vst [vmem:[%s359 + $0xd0] sm:$0xff] %v5845
      %5894 = vst [vmem:[%s359 + $0xd8] sm:$0xff] %v5848
      %5895 = vst [vmem:[%s359 + $0xe0] sm:$0xff] %v5853
      %5896 = vst [vmem:[%s359 + $0xe8] sm:$0xff] %v5856
      %5897 = vst [vmem:[%s359 + $0xf0] sm:$0xff] %v5861
      %5898 = vst [vmem:[%s359 + $0xf8] sm:$0xff] %v5864
      %s5899 = smul.u32 32, %s20
      %p5900 = scmp.lt.s32.totalorder %s5899, 63
      %s5901 = scalar_select %p5900, %s5899, 63
      %s5902 = smul.addr %s5901, 8
      %s5903 = scalar_lea.vmem %s9, %s5902
      // Predicated region
      $region57: #{sc_comp_small_forward.1} parent=55 // pred_check
        %p5904 = pneg %p237
      $region58: #{sc_comp_small_forward.1} parent=55 // pred_check_branch
        %5906 = sbr.rel (%p5904) target = $region60
      $region59: #{sc_comp_small_forward.1} parent=55 // pred_region
        %s5907 = smul.u32 32, %s20
      $region60: #{sc_comp_small_forward.1} parent=55 // pred_fallthru
        _
    $region56: #{sc_comp_small_forward.1} parent=5 // pred_fallthru
      _
    %p5908 = scmp.le.s32.totalorder 2, %s15
    // Predicated region
    $region61: #{sc_comp_small_forward.1} parent=5 // pred_check
      %p5909 = pneg %p5908
    $region62: #{sc_comp_small_forward.1} parent=5 // pred_check_branch
      %5911 = sbr.rel (%p5909) target = $region64
    $region63: #{sc_comp_small_forward.1} parent=5 // pred_region
      %s5912 = ssub.s32 %s15, 2
      // Predicated region
      $region65: #{sc_comp_small_forward.1} parent=63 // pred_check
        %p5913 = pneg %p243
      $region66: #{sc_comp_small_forward.1} parent=63 // pred_check_branch
        %5915 = sbr.rel (%p5913) target = $region68
      $region67: #{sc_comp_small_forward.1} parent=63 // pred_region
        %s5916 = smul.u32 32, %s21
        %p5917 = scmp.lt.s32.totalorder %s5916, 63
        %s5918 = scalar_select %p5917, %s5916, 63
        %s5919 = smul.addr %s5918, 8
        %s5920 = scalar_lea.vmem %s9, %s5919
      $region68: #{sc_comp_small_forward.1} parent=63 // pred_fallthru
        _
    $region64: #{sc_comp_small_forward.1} parent=5 // pred_fallthru
      _
  $region6: #{sc_comp_small_forward.1} parent=0 // loop_footer
    %s19 = sadd.s32 1, %s15
  $region7: #{sc_comp_small_forward.1} parent=0 // loop_footer_branch
    %14 = sbr.rel target = $region3
  $region8: #{sc_comp_small_forward.1} parent=0 // loop_exit
    _

</llo_original>
